<compile_context>
chip_gen: v7x
topology: tpu7x:2x2x1
jax: 0.10.0
libtpu: 0.0.40
codegen_flags: <defaults>
</compile_context>

<pallas_src>
import numpy as np
import jax
import jax.numpy as jnp
from jax import lax
from jax.experimental import pallas as pl
from jax.experimental.pallas import tpu as pltpu


# ---------------------------------------------------------------------------
# fused ConvBlockRes kernel
# ---------------------------------------------------------------------------
def _make_conv_block_res_kernel(H, W, cin, cout, has_shortcut):
    Hp, Wp = H + 2, W + 2  # zero-padded activation grid (1-ring halo)

    def im2col_pack(src_ref, pack_ref, c):
        # Pack the 9 shifted taps of the zero-padded activation along K.
        # The dy/dx shifts are done exactly once here (into the packed
        # buffer); the pack stores slice only the lane axis, at offsets k*c.
        for dy in range(3):
            for dx in range(3):
                k = dy * 3 + dx
                pack_ref[:, :, k * c:(k + 1) * c] = (
                    src_ref[dy:dy + H, dx:dx + W, :].astype(jnp.bfloat16))

    def kernel(x_ref, w1_ref, s1_ref, b1_ref, w2_ref, s2_ref, b2_ref, *rest):
        if has_shortcut:
            wsc_ref, bsc_ref, o_ref, xp_ref, h1p_ref, p1_ref, p2_ref = rest
        else:
            o_ref, xp_ref, h1p_ref, p1_ref, p2_ref = rest

        # ---- zero-padded input lives in VMEM (no HBM pad round trip).
        xp_ref[...] = jnp.zeros((Hp, Wp, cin), jnp.float32)
        xp_ref[1:H + 1, 1:W + 1, :] = x_ref[...].astype(jnp.float32)

        # ---- conv1 + folded BN + ReLU: one im2col matmul, K = 9*cin
        im2col_pack(xp_ref, p1_ref, cin)
        a1 = jnp.dot(p1_ref[...].reshape(H * W, 9 * cin), w1_ref[...],
                     preferred_element_type=jnp.float32)
        h1 = jnp.maximum(a1 * s1_ref[...] + b1_ref[...], 0.0)

        # ---- h1 stays entirely in VMEM, zero halo + interior-only store
        h1p_ref[...] = jnp.zeros((Hp, Wp, cout), jnp.float32)
        h1p_ref[1:H + 1, 1:W + 1, :] = h1.reshape(H, W, cout)

        # ---- conv2 + folded BN + ReLU: one im2col matmul, K = 9*cout
        im2col_pack(h1p_ref, p2_ref, cout)
        a2 = jnp.dot(p2_ref[...].reshape(H * W, 9 * cout), w2_ref[...],
                     preferred_element_type=jnp.float32)
        y = jnp.maximum(a2 * s2_ref[...] + b2_ref[...], 0.0)

        # ---- residual path
        xc = x_ref[...].reshape(H * W, cin)
        if has_shortcut:
            res = jnp.dot(xc, wsc_ref[...],
                          preferred_element_type=jnp.float32) + bsc_ref[...]
        else:
            res = xc.astype(jnp.float32)  # identity add, no MXU

        # TODO(synk): at production RMVPE sizes with cout < 128, present a
        # lane-dense output slab (pad cout or fold row blocks into M) so the
        # final store is an unmasked vst; at cout=8 this store is lane-masked.
        o_ref[...] = (y + res).reshape(H, W, cout)

    return kernel


# ---------------------------------------------------------------------------
# wrapper
# ---------------------------------------------------------------------------
def conv_block_res_forward(x_nchw, params):
    """ConvBlockRes forward: NCHW in -> NCHW out via one fused Pallas kernel."""
    x = jnp.transpose(x_nchw, (0, 2, 3, 1))  # NCHW -> NHWC
    n, h, w, cin = x.shape
    cout = params['w1'].shape[-1]
    has_shortcut = 'wsc' in params

    # Single bf16 cast of the activation (halves input DMA; MXU operand dtype).
    x_bf = x.astype(jnp.bfloat16)

    # im2col weight layout: (3,3,Cin,Cout) -> (9*Cin, Cout), bf16.
    w1r = params['w1'].reshape(9 * cin, cout).astype(jnp.bfloat16)
    w2r = params['w2'].reshape(9 * cout, cout).astype(jnp.bfloat16)

    args = [x_bf, w1r, params['s1'], params['b1'],
            w2r, params['s2'], params['b2']]
    in_specs = [
        pl.BlockSpec((None, h, w, cin), lambda i: (i, 0, 0, 0)),
        pl.BlockSpec((9 * cin, cout), lambda i: (0, 0)),
        pl.BlockSpec((1, cout), lambda i: (0, 0)),
        pl.BlockSpec((1, cout), lambda i: (0, 0)),
        pl.BlockSpec((9 * cout, cout), lambda i: (0, 0)),
        pl.BlockSpec((1, cout), lambda i: (0, 0)),
        pl.BlockSpec((1, cout), lambda i: (0, 0)),
    ]
    if has_shortcut:
        args += [params['wsc'].astype(jnp.bfloat16), params['bsc']]
        in_specs += [pl.BlockSpec((cin, cout), lambda i: (0, 0)),
                     pl.BlockSpec((1, cout), lambda i: (0, 0))]

    kernel = _make_conv_block_res_kernel(h, w, cin, cout, has_shortcut)

    # TODO(synk): at production RMVPE sizes add an H row-block grid axis
    # (2-row halo) as a second "parallel" dim and budget the resident tiles
    # against v7x's 64 MiB VMEM (set vmem_limit_bytes with ~30% headroom);
    # on v5e fold several images/row-blocks per step into the matmul M dim to
    # amortize the ~0.35 us per-step overhead.
    # TODO(synk): emit bf16 block output when chaining ConvBlockRes blocks
    # (halves writeback + next block's input DMA); f32 kept here to match the
    # PyTorch module boundary.
    out = pl.pallas_call(
        kernel,
        grid=(n,),
        in_specs=in_specs,
        out_specs=pl.BlockSpec((None, h, w, cout), lambda i: (i, 0, 0, 0)),
        out_shape=jax.ShapeDtypeStruct((n, h, w, cout), jnp.float32),
        scratch_shapes=[
            pltpu.VMEM((h + 2, w + 2, cin), jnp.float32),    # padded x
            pltpu.VMEM((h + 2, w + 2, cout), jnp.float32),   # padded h1
            pltpu.VMEM((h, w, 9 * cin), jnp.bfloat16),       # im2col pack 1
            pltpu.VMEM((h, w, 9 * cout), jnp.bfloat16),      # im2col pack 2
        ],
        compiler_params=pltpu.CompilerParams(
            dimension_semantics=("parallel",)),
    )(*args)

    return jnp.transpose(out, (0, 3, 1, 2))  # NHWC -> NCHW


# ---------------------------------------------------------------------------
# deterministic synthetic parameters (BatchNorm folded, inference mode)
# ---------------------------------------------------------------------------
def init_conv_block_res_params(key, in_channels, out_channels, eps=1e-5):
    # TODO(synk): BatchNorm2d is folded with running statistics (inference
    # mode); training-mode batch statistics are not modeled.
    ks = jax.random.split(key, 12)

    def bn_fold(kg, kb, km, kv, c):
        gamma = 1.0 + 0.1 * jax.random.normal(kg, (c,), jnp.float32)
        beta = 0.1 * jax.random.normal(kb, (c,), jnp.float32)
        rmean = 0.1 * jax.random.normal(km, (c,), jnp.float32)
        rvar = 0.5 + jax.random.uniform(kv, (c,), jnp.float32)
        scale = gamma / jnp.sqrt(rvar + eps)
        bias = beta - rmean * scale
        return scale.reshape(1, c), bias.reshape(1, c)

    w1 = 0.2 * jax.random.normal(ks[0], (3, 3, in_channels, out_channels), jnp.float32)
    s1, b1 = bn_fold(ks[1], ks[2], ks[3], ks[4], out_channels)
    w2 = 0.2 * jax.random.normal(ks[5], (3, 3, out_channels, out_channels), jnp.float32)
    s2, b2 = bn_fold(ks[6], ks[7], ks[8], ks[9], out_channels)
    params = dict(w1=w1, s1=s1, b1=b1, w2=w2, s2=s2, b2=b2)
    if in_channels != out_channels:
        params['wsc'] = 0.2 * jax.random.normal(ks[10], (in_channels, out_channels), jnp.float32)
        params['bsc'] = 0.1 * jax.random.normal(ks[11], (1, out_channels), jnp.float32)
    return params


# ---------------------------------------------------------------------------
# pure-JAX reference (independent lax.conv implementation, mirrors the
# kernel's bf16-operand / f32-accumulation numerics and bf16 input DMA)
# ---------------------------------------------------------------------------
def conv_block_res_reference(x_nchw, params):
    x = jnp.transpose(x_nchw, (0, 2, 3, 1)).astype(jnp.float32)
    xb = x.astype(jnp.bfloat16)   # mirror the kernel's one-time bf16 cast
    n, h, w, cin = x.shape
    cout = params['w1'].shape[-1]

    def conv3x3(a, wgt):
        return lax.conv_general_dilated(
            a.astype(jnp.bfloat16), wgt.astype(jnp.bfloat16), (1, 1), 'SAME',
            dimension_numbers=('NHWC', 'HWIO', 'NHWC'),
            preferred_element_type=jnp.float32)

    y = jnp.maximum(conv3x3(xb, params['w1']) * params['s1'] + params['b1'], 0.0)
    y = jnp.maximum(conv3x3(y, params['w2']) * params['s2'] + params['b2'], 0.0)
    if 'wsc' in params:
        res = lax.dot_general(
            xb.reshape(n * h * w, cin),
            params['wsc'].astype(jnp.bfloat16),
            (((1,), (0,)), ((), ())),
            preferred_element_type=jnp.float32).reshape(n, h, w, cout)
        res = res + params['bsc']
    else:
        res = xb.astype(jnp.float32)
    return jnp.transpose(y + res, (0, 3, 1, 2))


# ---------------------------------------------------------------------------
if __name__ == "__main__":
    key = jax.random.PRNGKey(0)
    n, h, w = 2, 16, 16

    # Tolerance note: matmul operands (and the on-chip h1 intermediate fed to
    # conv2) are deliberately bf16 -- the native MXU dtype -- so kernel and
    # reference may differ by O(|h1| * 2^-8 * |w2|) ~ 1e-3..1e-2 on isolated
    # elements due to boundary-of-rounding differences.  Genuine indexing /
    # layout bugs produce O(0.1 - 1) errors, well outside this bound.
    RTOL = ATOL = 1e-2

    # case 1: in_channels != out_channels  ->  1x1 shortcut conv path
    k1, k2, k3, k4 = jax.random.split(key, 4)
    x1 = jax.random.normal(k1, (n, 4, h, w), jnp.float32)  # NCHW, like PyTorch
    p1 = init_conv_block_res_params(k2, 4, 8)
    out1 = jax.block_until_ready(conv_block_res_forward(x1, p1))
    assert out1.shape == (n, 8, h, w)
    np.testing.assert_allclose(np.asarray(out1),
                               np.asarray(conv_block_res_reference(x1, p1)),
                               rtol=RTOL, atol=ATOL)

    # case 2: in_channels == out_channels  ->  identity residual (no matmul)
    x2 = jax.random.normal(k3, (n, 8, h, w), jnp.float32)
    p2 = init_conv_block_res_params(k4, 8, 8)
    out2 = jax.block_until_ready(conv_block_res_forward(x2, p2))
    assert out2.shape == (n, 8, h, w)
    np.testing.assert_allclose(np.asarray(out2),
                               np.asarray(conv_block_res_reference(x2, p2)),
                               rtol=RTOL, atol=ATOL)

    print("KERNEL_OK")
</pallas_src>

<mosaic_0001>
module attributes {stable_mosaic.version = 11 : i64} {
  func.func @kernel(%arg0: i32, %arg1: memref<1x16x16x4xbf16, #tpu.memory_space<vmem>>, %arg2: memref<36x8xbf16, #tpu.memory_space<vmem>>, %arg3: memref<1x8xf32, #tpu.memory_space<vmem>>, %arg4: memref<1x8xf32, #tpu.memory_space<vmem>>, %arg5: memref<72x8xbf16, #tpu.memory_space<vmem>>, %arg6: memref<1x8xf32, #tpu.memory_space<vmem>>, %arg7: memref<1x8xf32, #tpu.memory_space<vmem>>, %arg8: memref<4x8xbf16, #tpu.memory_space<vmem>>, %arg9: memref<1x8xf32, #tpu.memory_space<vmem>>, %arg10: memref<1x16x16x8xf32, #tpu.memory_space<vmem>>, %arg11: memref<18x18x4xf32, #tpu.memory_space<vmem>>, %arg12: memref<18x18x8xf32, #tpu.memory_space<vmem>>, %arg13: memref<16x16x36xbf16, #tpu.memory_space<vmem>>, %arg14: memref<16x16x72xbf16, #tpu.memory_space<vmem>>) attributes {dimension_semantics = [#tpu.dimension_semantics<parallel>], iteration_bounds = array<i64: 2>, scalar_prefetch = 0 : i64, scratch_operands = 4 : i64, tpu.core_type = #tpu.core_type<tc>, window_params = [{transform_indices = @transform_0, window_bounds = array<i64: 1, 16, 16, 4>}, {pipeline_mode = #tpu.pipeline_mode<synchronous>, transform_indices = @transform_1, window_bounds = array<i64: 36, 8>}, {pipeline_mode = #tpu.pipeline_mode<synchronous>, transform_indices = @transform_2, window_bounds = array<i64: 1, 8>}, {pipeline_mode = #tpu.pipeline_mode<synchronous>, transform_indices = @transform_3, window_bounds = array<i64: 1, 8>}, {pipeline_mode = #tpu.pipeline_mode<synchronous>, transform_indices = @transform_4, window_bounds = array<i64: 72, 8>}, {pipeline_mode = #tpu.pipeline_mode<synchronous>, transform_indices = @transform_5, window_bounds = array<i64: 1, 8>}, {pipeline_mode = #tpu.pipeline_mode<synchronous>, transform_indices = @transform_6, window_bounds = array<i64: 1, 8>}, {pipeline_mode = #tpu.pipeline_mode<synchronous>, transform_indices = @transform_7, window_bounds = array<i64: 4, 8>}, {pipeline_mode = #tpu.pipeline_mode<synchronous>, transform_indices = @transform_8, window_bounds = array<i64: 1, 8>}, {transform_indices = @transform_9, window_bounds = array<i64: 1, 16, 16, 8>}]} {
    %cst = arith.constant 0.000000e+00 : f32
    %0 = vector.broadcast %cst : f32 to vector<18x18x4xf32>
    %c0 = arith.constant 0 : index
    %c0_0 = arith.constant 0 : index
    %c0_1 = arith.constant 0 : index
    %1 = vector.load %arg11[%c0, %c0_0, %c0_1] : memref<18x18x4xf32, #tpu.memory_space<vmem>>, vector<18x18x4xf32>
    tpu.vector_store %arg11[%c0, %c0_0, %c0_1], %0 {strides = array<i32>} : memref<18x18x4xf32, #tpu.memory_space<vmem>>, vector<18x18x4xf32>,
    %c0_2 = arith.constant 0 : index
    %c0_3 = arith.constant 0 : index
    %c0_4 = arith.constant 0 : index
    %c0_5 = arith.constant 0 : index
    %2 = vector.load %arg1[%c0_2, %c0_3, %c0_4, %c0_5] : memref<1x16x16x4xbf16, #tpu.memory_space<vmem>>, vector<1x16x16x4xbf16>
    %3 = vector.shape_cast %2 : vector<1x16x16x4xbf16> to vector<16x16x4xbf16>
    %4 = arith.extf %3 : vector<16x16x4xbf16> to vector<16x16x4xf32>
    %c1 = arith.constant 1 : index
    %c1_6 = arith.constant 1 : index
    %c0_7 = arith.constant 0 : index
    %5 = vector.load %arg11[%c1, %c1_6, %c0_7] : memref<18x18x4xf32, #tpu.memory_space<vmem>>, vector<16x16x4xf32>
    tpu.vector_store %arg11[%c1, %c1_6, %c0_7], %4 {strides = array<i32>} : memref<18x18x4xf32, #tpu.memory_space<vmem>>, vector<16x16x4xf32>,
    %c0_8 = arith.constant 0 : index
    %c0_9 = arith.constant 0 : index
    %c0_10 = arith.constant 0 : index
    %6 = vector.load %arg11[%c0_8, %c0_9, %c0_10] : memref<18x18x4xf32, #tpu.memory_space<vmem>>, vector<16x16x4xf32>
    %7 = arith.truncf %6 : vector<16x16x4xf32> to vector<16x16x4xbf16>
    %c0_11 = arith.constant 0 : index
    %c0_12 = arith.constant 0 : index
    %c0_13 = arith.constant 0 : index
    %8 = vector.load %arg13[%c0_11, %c0_12, %c0_13] : memref<16x16x36xbf16, #tpu.memory_space<vmem>>, vector<16x16x4xbf16>
    tpu.vector_store %arg13[%c0_11, %c0_12, %c0_13], %7 {strides = array<i32>} : memref<16x16x36xbf16, #tpu.memory_space<vmem>>, vector<16x16x4xbf16>,
    %c0_14 = arith.constant 0 : index
    %c1_15 = arith.constant 1 : index
    %c0_16 = arith.constant 0 : index
    %9 = vector.load %arg11[%c0_14, %c1_15, %c0_16] : memref<18x18x4xf32, #tpu.memory_space<vmem>>, vector<16x16x4xf32>
    %10 = arith.truncf %9 : vector<16x16x4xf32> to vector<16x16x4xbf16>
    %c0_17 = arith.constant 0 : index
    %c0_18 = arith.constant 0 : index
    %c4 = arith.constant 4 : index
    %11 = vector.load %arg13[%c0_17, %c0_18, %c4] : memref<16x16x36xbf16, #tpu.memory_space<vmem>>, vector<16x16x4xbf16>
    tpu.vector_store %arg13[%c0_17, %c0_18, %c4], %10 {strides = array<i32>} : memref<16x16x36xbf16, #tpu.memory_space<vmem>>, vector<16x16x4xbf16>,
    %c0_19 = arith.constant 0 : index
    %c2 = arith.constant 2 : index
    %c0_20 = arith.constant 0 : index
    %12 = vector.load %arg11[%c0_19, %c2, %c0_20] : memref<18x18x4xf32, #tpu.memory_space<vmem>>, vector<16x16x4xf32>
    %13 = arith.truncf %12 : vector<16x16x4xf32> to vector<16x16x4xbf16>
    %c0_21 = arith.constant 0 : index
    %c0_22 = arith.constant 0 : index
    %c8 = arith.constant 8 : index
    %14 = vector.load %arg13[%c0_21, %c0_22, %c8] : memref<16x16x36xbf16, #tpu.memory_space<vmem>>, vector<16x16x4xbf16>
    tpu.vector_store %arg13[%c0_21, %c0_22, %c8], %13 {strides = array<i32>} : memref<16x16x36xbf16, #tpu.memory_space<vmem>>, vector<16x16x4xbf16>,
    %c1_23 = arith.constant 1 : index
    %c0_24 = arith.constant 0 : index
    %c0_25 = arith.constant 0 : index
    %15 = vector.load %arg11[%c1_23, %c0_24, %c0_25] : memref<18x18x4xf32, #tpu.memory_space<vmem>>, vector<16x16x4xf32>
    %16 = arith.truncf %15 : vector<16x16x4xf32> to vector<16x16x4xbf16>
    %c0_26 = arith.constant 0 : index
    %c0_27 = arith.constant 0 : index
    %c12 = arith.constant 12 : index
    %17 = vector.load %arg13[%c0_26, %c0_27, %c12] : memref<16x16x36xbf16, #tpu.memory_space<vmem>>, vector<16x16x4xbf16>
    tpu.vector_store %arg13[%c0_26, %c0_27, %c12], %16 {strides = array<i32>} : memref<16x16x36xbf16, #tpu.memory_space<vmem>>, vector<16x16x4xbf16>,
    %c1_28 = arith.constant 1 : index
    %c1_29 = arith.constant 1 : index
    %c0_30 = arith.constant 0 : index
    %18 = vector.load %arg11[%c1_28, %c1_29, %c0_30] : memref<18x18x4xf32, #tpu.memory_space<vmem>>, vector<16x16x4xf32>
    %19 = arith.truncf %18 : vector<16x16x4xf32> to vector<16x16x4xbf16>
    %c0_31 = arith.constant 0 : index
    %c0_32 = arith.constant 0 : index
    %c16 = arith.constant 16 : index
    %20 = vector.load %arg13[%c0_31, %c0_32, %c16] : memref<16x16x36xbf16, #tpu.memory_space<vmem>>, vector<16x16x4xbf16>
    tpu.vector_store %arg13[%c0_31, %c0_32, %c16], %19 {strides = array<i32>} : memref<16x16x36xbf16, #tpu.memory_space<vmem>>, vector<16x16x4xbf16>,
    %c1_33 = arith.constant 1 : index
    %c2_34 = arith.constant 2 : index
    %c0_35 = arith.constant 0 : index
    %21 = vector.load %arg11[%c1_33, %c2_34, %c0_35] : memref<18x18x4xf32, #tpu.memory_space<vmem>>, vector<16x16x4xf32>
    %22 = arith.truncf %21 : vector<16x16x4xf32> to vector<16x16x4xbf16>
    %c0_36 = arith.constant 0 : index
    %c0_37 = arith.constant 0 : index
    %c20 = arith.constant 20 : index
    %23 = vector.load %arg13[%c0_36, %c0_37, %c20] : memref<16x16x36xbf16, #tpu.memory_space<vmem>>, vector<16x16x4xbf16>
    tpu.vector_store %arg13[%c0_36, %c0_37, %c20], %22 {strides = array<i32>} : memref<16x16x36xbf16, #tpu.memory_space<vmem>>, vector<16x16x4xbf16>,
    %c2_38 = arith.constant 2 : index
    %c0_39 = arith.constant 0 : index
    %c0_40 = arith.constant 0 : index
    %24 = vector.load %arg11[%c2_38, %c0_39, %c0_40] : memref<18x18x4xf32, #tpu.memory_space<vmem>>, vector<16x16x4xf32>
    %25 = arith.truncf %24 : vector<16x16x4xf32> to vector<16x16x4xbf16>
    %c0_41 = arith.constant 0 : index
    %c0_42 = arith.constant 0 : index
    %c24 = arith.constant 24 : index
    %26 = vector.load %arg13[%c0_41, %c0_42, %c24] : memref<16x16x36xbf16, #tpu.memory_space<vmem>>, vector<16x16x4xbf16>
    tpu.vector_store %arg13[%c0_41, %c0_42, %c24], %25 {strides = array<i32>} : memref<16x16x36xbf16, #tpu.memory_space<vmem>>, vector<16x16x4xbf16>,
    %c2_43 = arith.constant 2 : index
    %c1_44 = arith.constant 1 : index
    %c0_45 = arith.constant 0 : index
    %27 = vector.load %arg11[%c2_43, %c1_44, %c0_45] : memref<18x18x4xf32, #tpu.memory_space<vmem>>, vector<16x16x4xf32>
    %28 = arith.truncf %27 : vector<16x16x4xf32> to vector<16x16x4xbf16>
    %c0_46 = arith.constant 0 : index
    %c0_47 = arith.constant 0 : index
    %c28 = arith.constant 28 : index
    %29 = vector.load %arg13[%c0_46, %c0_47, %c28] : memref<16x16x36xbf16, #tpu.memory_space<vmem>>, vector<16x16x4xbf16>
    tpu.vector_store %arg13[%c0_46, %c0_47, %c28], %28 {strides = array<i32>} : memref<16x16x36xbf16, #tpu.memory_space<vmem>>, vector<16x16x4xbf16>,
    %c2_48 = arith.constant 2 : index
    %c2_49 = arith.constant 2 : index
    %c0_50 = arith.constant 0 : index
    %30 = vector.load %arg11[%c2_48, %c2_49, %c0_50] : memref<18x18x4xf32, #tpu.memory_space<vmem>>, vector<16x16x4xf32>
    %31 = arith.truncf %30 : vector<16x16x4xf32> to vector<16x16x4xbf16>
    %c0_51 = arith.constant 0 : index
    %c0_52 = arith.constant 0 : index
    %c32 = arith.constant 32 : index
    %32 = vector.load %arg13[%c0_51, %c0_52, %c32] : memref<16x16x36xbf16, #tpu.memory_space<vmem>>, vector<16x16x4xbf16>
    tpu.vector_store %arg13[%c0_51, %c0_52, %c32], %31 {strides = array<i32>} : memref<16x16x36xbf16, #tpu.memory_space<vmem>>, vector<16x16x4xbf16>,
    %c0_53 = arith.constant 0 : index
    %c0_54 = arith.constant 0 : index
    %c0_55 = arith.constant 0 : index
    %33 = vector.load %arg13[%c0_53, %c0_54, %c0_55] : memref<16x16x36xbf16, #tpu.memory_space<vmem>>, vector<16x16x36xbf16>
    %34 = vector.shape_cast %33 : vector<16x16x36xbf16> to vector<256x36xbf16>
    %c0_56 = arith.constant 0 : index
    %c0_57 = arith.constant 0 : index
    %35 = vector.load %arg2[%c0_56, %c0_57] : memref<36x8xbf16, #tpu.memory_space<vmem>>, vector<36x8xbf16>
    %cst_58 = arith.constant dense<0.000000e+00> : vector<256x8xf32>
    %36 = tpu.matmul %34, %35, %cst_58 {dimension_numbers = #tpu.dot_dimension_numbers<[1], [0], [0], [1], [0, 0, 1, 1], [], []>} : vector<256x36xbf16>, vector<36x8xbf16>, vector<256x8xf32> -> vector<256x8xf32>
    %c0_59 = arith.constant 0 : index
    %c0_60 = arith.constant 0 : index
    %37 = vector.load %arg3[%c0_59, %c0_60] : memref<1x8xf32, #tpu.memory_space<vmem>>, vector<1x8xf32>
    %38 = vector.broadcast %37 : vector<1x8xf32> to vector<256x8xf32>
    %39 = arith.mulf %36, %38 : vector<256x8xf32>
    %c0_61 = arith.constant 0 : index
    %c0_62 = arith.constant 0 : index
    %40 = vector.load %arg4[%c0_61, %c0_62] : memref<1x8xf32, #tpu.memory_space<vmem>>, vector<1x8xf32>
    %41 = vector.broadcast %40 : vector<1x8xf32> to vector<256x8xf32>
    %42 = arith.addf %39, %41 : vector<256x8xf32>
    %cst_63 = arith.constant 0.000000e+00 : f32
    %43 = vector.broadcast %cst_63 : f32 to vector<256x8xf32>
    %44 = arith.maximumf %42, %43 : vector<256x8xf32>
    %cst_64 = arith.constant 0.000000e+00 : f32
    %45 = vector.broadcast %cst_64 : f32 to vector<18x18x8xf32>
    %c0_65 = arith.constant 0 : index
    %c0_66 = arith.constant 0 : index
    %c0_67 = arith.constant 0 : index
    %46 = vector.load %arg12[%c0_65, %c0_66, %c0_67] : memref<18x18x8xf32, #tpu.memory_space<vmem>>, vector<18x18x8xf32>
    tpu.vector_store %arg12[%c0_65, %c0_66, %c0_67], %45 {strides = array<i32>} : memref<18x18x8xf32, #tpu.memory_space<vmem>>, vector<18x18x8xf32>,
    %47 = vector.shape_cast %44 : vector<256x8xf32> to vector<16x16x8xf32>
    %c1_68 = arith.constant 1 : index
    %c1_69 = arith.constant 1 : index
    %c0_70 = arith.constant 0 : index
    %48 = vector.load %arg12[%c1_68, %c1_69, %c0_70] : memref<18x18x8xf32, #tpu.memory_space<vmem>>, vector<16x16x8xf32>
    tpu.vector_store %arg12[%c1_68, %c1_69, %c0_70], %47 {strides = array<i32>} : memref<18x18x8xf32, #tpu.memory_space<vmem>>, vector<16x16x8xf32>,
    %c0_71 = arith.constant 0 : index
    %c0_72 = arith.constant 0 : index
    %c0_73 = arith.constant 0 : index
    %49 = vector.load %arg12[%c0_71, %c0_72, %c0_73] : memref<18x18x8xf32, #tpu.memory_space<vmem>>, vector<16x16x8xf32>
    %50 = arith.truncf %49 : vector<16x16x8xf32> to vector<16x16x8xbf16>
    %c0_74 = arith.constant 0 : index
    %c0_75 = arith.constant 0 : index
    %c0_76 = arith.constant 0 : index
    %51 = vector.load %arg14[%c0_74, %c0_75, %c0_76] : memref<16x16x72xbf16, #tpu.memory_space<vmem>>, vector<16x16x8xbf16>
    tpu.vector_store %arg14[%c0_74, %c0_75, %c0_76], %50 {strides = array<i32>} : memref<16x16x72xbf16, #tpu.memory_space<vmem>>, vector<16x16x8xbf16>,
    %c0_77 = arith.constant 0 : index
    %c1_78 = arith.constant 1 : index
    %c0_79 = arith.constant 0 : index
    %52 = vector.load %arg12[%c0_77, %c1_78, %c0_79] : memref<18x18x8xf32, #tpu.memory_space<vmem>>, vector<16x16x8xf32>
    %53 = arith.truncf %52 : vector<16x16x8xf32> to vector<16x16x8xbf16>
    %c0_80 = arith.constant 0 : index
    %c0_81 = arith.constant 0 : index
    %c8_82 = arith.constant 8 : index
    %54 = vector.load %arg14[%c0_80, %c0_81, %c8_82] : memref<16x16x72xbf16, #tpu.memory_space<vmem>>, vector<16x16x8xbf16>
    tpu.vector_store %arg14[%c0_80, %c0_81, %c8_82], %53 {strides = array<i32>} : memref<16x16x72xbf16, #tpu.memory_space<vmem>>, vector<16x16x8xbf16>,
    %c0_83 = arith.constant 0 : index
    %c2_84 = arith.constant 2 : index
    %c0_85 = arith.constant 0 : index
    %55 = vector.load %arg12[%c0_83, %c2_84, %c0_85] : memref<18x18x8xf32, #tpu.memory_space<vmem>>, vector<16x16x8xf32>
    %56 = arith.truncf %55 : vector<16x16x8xf32> to vector<16x16x8xbf16>
    %c0_86 = arith.constant 0 : index
    %c0_87 = arith.constant 0 : index
    %c16_88 = arith.constant 16 : index
    %57 = vector.load %arg14[%c0_86, %c0_87, %c16_88] : memref<16x16x72xbf16, #tpu.memory_space<vmem>>, vector<16x16x8xbf16>
    tpu.vector_store %arg14[%c0_86, %c0_87, %c16_88], %56 {strides = array<i32>} : memref<16x16x72xbf16, #tpu.memory_space<vmem>>, vector<16x16x8xbf16>,
    %c1_89 = arith.constant 1 : index
    %c0_90 = arith.constant 0 : index
    %c0_91 = arith.constant 0 : index
    %58 = vector.load %arg12[%c1_89, %c0_90, %c0_91] : memref<18x18x8xf32, #tpu.memory_space<vmem>>, vector<16x16x8xf32>
    %59 = arith.truncf %58 : vector<16x16x8xf32> to vector<16x16x8xbf16>
    %c0_92 = arith.constant 0 : index
    %c0_93 = arith.constant 0 : index
    %c24_94 = arith.constant 24 : index
    %60 = vector.load %arg14[%c0_92, %c0_93, %c24_94] : memref<16x16x72xbf16, #tpu.memory_space<vmem>>, vector<16x16x8xbf16>
    tpu.vector_store %arg14[%c0_92, %c0_93, %c24_94], %59 {strides = array<i32>} : memref<16x16x72xbf16, #tpu.memory_space<vmem>>, vector<16x16x8xbf16>,
    %c1_95 = arith.constant 1 : index
    %c1_96 = arith.constant 1 : index
    %c0_97 = arith.constant 0 : index
    %61 = vector.load %arg12[%c1_95, %c1_96, %c0_97] : memref<18x18x8xf32, #tpu.memory_space<vmem>>, vector<16x16x8xf32>
    %62 = arith.truncf %61 : vector<16x16x8xf32> to vector<16x16x8xbf16>
    %c0_98 = arith.constant 0 : index
    %c0_99 = arith.constant 0 : index
    %c32_100 = arith.constant 32 : index
    %63 = vector.load %arg14[%c0_98, %c0_99, %c32_100] : memref<16x16x72xbf16, #tpu.memory_space<vmem>>, vector<16x16x8xbf16>
    tpu.vector_store %arg14[%c0_98, %c0_99, %c32_100], %62 {strides = array<i32>} : memref<16x16x72xbf16, #tpu.memory_space<vmem>>, vector<16x16x8xbf16>,
    %c1_101 = arith.constant 1 : index
    %c2_102 = arith.constant 2 : index
    %c0_103 = arith.constant 0 : index
    %64 = vector.load %arg12[%c1_101, %c2_102, %c0_103] : memref<18x18x8xf32, #tpu.memory_space<vmem>>, vector<16x16x8xf32>
    %65 = arith.truncf %64 : vector<16x16x8xf32> to vector<16x16x8xbf16>
    %c0_104 = arith.constant 0 : index
    %c0_105 = arith.constant 0 : index
    %c40 = arith.constant 40 : index
    %66 = vector.load %arg14[%c0_104, %c0_105, %c40] : memref<16x16x72xbf16, #tpu.memory_space<vmem>>, vector<16x16x8xbf16>
    tpu.vector_store %arg14[%c0_104, %c0_105, %c40], %65 {strides = array<i32>} : memref<16x16x72xbf16, #tpu.memory_space<vmem>>, vector<16x16x8xbf16>,
    %c2_106 = arith.constant 2 : index
    %c0_107 = arith.constant 0 : index
    %c0_108 = arith.constant 0 : index
    %67 = vector.load %arg12[%c2_106, %c0_107, %c0_108] : memref<18x18x8xf32, #tpu.memory_space<vmem>>, vector<16x16x8xf32>
    %68 = arith.truncf %67 : vector<16x16x8xf32> to vector<16x16x8xbf16>
    %c0_109 = arith.constant 0 : index
    %c0_110 = arith.constant 0 : index
    %c48 = arith.constant 48 : index
    %69 = vector.load %arg14[%c0_109, %c0_110, %c48] : memref<16x16x72xbf16, #tpu.memory_space<vmem>>, vector<16x16x8xbf16>
    tpu.vector_store %arg14[%c0_109, %c0_110, %c48], %68 {strides = array<i32>} : memref<16x16x72xbf16, #tpu.memory_space<vmem>>, vector<16x16x8xbf16>,
    %c2_111 = arith.constant 2 : index
    %c1_112 = arith.constant 1 : index
    %c0_113 = arith.constant 0 : index
    %70 = vector.load %arg12[%c2_111, %c1_112, %c0_113] : memref<18x18x8xf32, #tpu.memory_space<vmem>>, vector<16x16x8xf32>
    %71 = arith.truncf %70 : vector<16x16x8xf32> to vector<16x16x8xbf16>
    %c0_114 = arith.constant 0 : index
    %c0_115 = arith.constant 0 : index
    %c56 = arith.constant 56 : index
    %72 = vector.load %arg14[%c0_114, %c0_115, %c56] : memref<16x16x72xbf16, #tpu.memory_space<vmem>>, vector<16x16x8xbf16>
    tpu.vector_store %arg14[%c0_114, %c0_115, %c56], %71 {strides = array<i32>} : memref<16x16x72xbf16, #tpu.memory_space<vmem>>, vector<16x16x8xbf16>,
    %c2_116 = arith.constant 2 : index
    %c2_117 = arith.constant 2 : index
    %c0_118 = arith.constant 0 : index
    %73 = vector.load %arg12[%c2_116, %c2_117, %c0_118] : memref<18x18x8xf32, #tpu.memory_space<vmem>>, vector<16x16x8xf32>
    %74 = arith.truncf %73 : vector<16x16x8xf32> to vector<16x16x8xbf16>
    %c0_119 = arith.constant 0 : index
    %c0_120 = arith.constant 0 : index
    %c64 = arith.constant 64 : index
    %75 = vector.load %arg14[%c0_119, %c0_120, %c64] : memref<16x16x72xbf16, #tpu.memory_space<vmem>>, vector<16x16x8xbf16>
    tpu.vector_store %arg14[%c0_119, %c0_120, %c64], %74 {strides = array<i32>} : memref<16x16x72xbf16, #tpu.memory_space<vmem>>, vector<16x16x8xbf16>,
    %c0_121 = arith.constant 0 : index
    %c0_122 = arith.constant 0 : index
    %c0_123 = arith.constant 0 : index
    %76 = vector.load %arg14[%c0_121, %c0_122, %c0_123] : memref<16x16x72xbf16, #tpu.memory_space<vmem>>, vector<16x16x72xbf16>
    %77 = vector.shape_cast %76 : vector<16x16x72xbf16> to vector<256x72xbf16>
    %c0_124 = arith.constant 0 : index
    %c0_125 = arith.constant 0 : index
    %78 = vector.load %arg5[%c0_124, %c0_125] : memref<72x8xbf16, #tpu.memory_space<vmem>>, vector<72x8xbf16>
    %cst_126 = arith.constant dense<0.000000e+00> : vector<256x8xf32>
    %79 = tpu.matmul %77, %78, %cst_126 {dimension_numbers = #tpu.dot_dimension_numbers<[1], [0], [0], [1], [0, 0, 1, 1], [], []>} : vector<256x72xbf16>, vector<72x8xbf16>, vector<256x8xf32> -> vector<256x8xf32>
    %c0_127 = arith.constant 0 : index
    %c0_128 = arith.constant 0 : index
    %80 = vector.load %arg6[%c0_127, %c0_128] : memref<1x8xf32, #tpu.memory_space<vmem>>, vector<1x8xf32>
    %81 = vector.broadcast %80 : vector<1x8xf32> to vector<256x8xf32>
    %82 = arith.mulf %79, %81 : vector<256x8xf32>
    %c0_129 = arith.constant 0 : index
    %c0_130 = arith.constant 0 : index
    %83 = vector.load %arg7[%c0_129, %c0_130] : memref<1x8xf32, #tpu.memory_space<vmem>>, vector<1x8xf32>
    %84 = vector.broadcast %83 : vector<1x8xf32> to vector<256x8xf32>
    %85 = arith.addf %82, %84 : vector<256x8xf32>
    %cst_131 = arith.constant 0.000000e+00 : f32
    %86 = vector.broadcast %cst_131 : f32 to vector<256x8xf32>
    %87 = arith.maximumf %85, %86 : vector<256x8xf32>
    %c0_132 = arith.constant 0 : index
    %c0_133 = arith.constant 0 : index
    %c0_134 = arith.constant 0 : index
    %c0_135 = arith.constant 0 : index
    %88 = vector.load %arg1[%c0_132, %c0_133, %c0_134, %c0_135] : memref<1x16x16x4xbf16, #tpu.memory_space<vmem>>, vector<1x16x16x4xbf16>
    %89 = vector.shape_cast %88 : vector<1x16x16x4xbf16> to vector<16x16x4xbf16>
    %90 = vector.shape_cast %89 : vector<16x16x4xbf16> to vector<256x4xbf16>
    %c0_136 = arith.constant 0 : index
    %c0_137 = arith.constant 0 : index
    %91 = vector.load %arg8[%c0_136, %c0_137] : memref<4x8xbf16, #tpu.memory_space<vmem>>, vector<4x8xbf16>
    %cst_138 = arith.constant dense<0.000000e+00> : vector<256x8xf32>
    %92 = tpu.matmul %90, %91, %cst_138 {dimension_numbers = #tpu.dot_dimension_numbers<[1], [0], [0], [1], [0, 0, 1, 1], [], []>} : vector<256x4xbf16>, vector<4x8xbf16>, vector<256x8xf32> -> vector<256x8xf32>
    %c0_139 = arith.constant 0 : index
    %c0_140 = arith.constant 0 : index
    %93 = vector.load %arg9[%c0_139, %c0_140] : memref<1x8xf32, #tpu.memory_space<vmem>>, vector<1x8xf32>
    %94 = vector.broadcast %93 : vector<1x8xf32> to vector<256x8xf32>
    %95 = arith.addf %92, %94 : vector<256x8xf32>
    %96 = arith.addf %87, %95 : vector<256x8xf32>
    %97 = vector.shape_cast %96 : vector<256x8xf32> to vector<16x16x8xf32>
    %c0_141 = arith.constant 0 : index
    %c0_142 = arith.constant 0 : index
    %c0_143 = arith.constant 0 : index
    %c0_144 = arith.constant 0 : index
    %98 = vector.load %arg10[%c0_141, %c0_142, %c0_143, %c0_144] : memref<1x16x16x8xf32, #tpu.memory_space<vmem>>, vector<1x16x16x8xf32>
    %99 = vector.shape_cast %98 : vector<1x16x16x8xf32> to vector<16x16x8xf32>
    %100 = vector.shape_cast %97 : vector<16x16x8xf32> to vector<1x16x16x8xf32>
    tpu.vector_store %arg10[%c0_141, %c0_142, %c0_143, %c0_144], %100 {strides = array<i32>} : memref<1x16x16x8xf32, #tpu.memory_space<vmem>>, vector<1x16x16x8xf32>,
    return
  }
  func.func @transform_0(%arg0: i32) -> (i32, i32, i32, i32) {
    %c0_i32 = arith.constant 0 : i32
    %c0_i32_0 = arith.constant 0 : i32
    %c0_i32_1 = arith.constant 0 : i32
    %c0_i32_2 = arith.constant 0 : i32
    return %arg0, %c0_i32, %c0_i32_0, %c0_i32_1 : i32, i32, i32, i32
  }
  func.func @transform_1(%arg0: i32) -> (i32, i32) {
    %c0_i32 = arith.constant 0 : i32
    %c0_i32_0 = arith.constant 0 : i32
    %c0_i32_1 = arith.constant 0 : i32
    return %c0_i32, %c0_i32_0 : i32, i32
  }
  func.func @transform_2(%arg0: i32) -> (i32, i32) {
    %c0_i32 = arith.constant 0 : i32
    %c0_i32_0 = arith.constant 0 : i32
    %c0_i32_1 = arith.constant 0 : i32
    return %c0_i32, %c0_i32_0 : i32, i32
  }
  func.func @transform_3(%arg0: i32) -> (i32, i32) {
    %c0_i32 = arith.constant 0 : i32
    %c0_i32_0 = arith.constant 0 : i32
    %c0_i32_1 = arith.constant 0 : i32
    return %c0_i32, %c0_i32_0 : i32, i32
  }
  func.func @transform_4(%arg0: i32) -> (i32, i32) {
    %c0_i32 = arith.constant 0 : i32
    %c0_i32_0 = arith.constant 0 : i32
    %c0_i32_1 = arith.constant 0 : i32
    return %c0_i32, %c0_i32_0 : i32, i32
  }
  func.func @transform_5(%arg0: i32) -> (i32, i32) {
    %c0_i32 = arith.constant 0 : i32
    %c0_i32_0 = arith.constant 0 : i32
    %c0_i32_1 = arith.constant 0 : i32
    return %c0_i32, %c0_i32_0 : i32, i32
  }
  func.func @transform_6(%arg0: i32) -> (i32, i32) {
    %c0_i32 = arith.constant 0 : i32
    %c0_i32_0 = arith.constant 0 : i32
    %c0_i32_1 = arith.constant 0 : i32
    return %c0_i32, %c0_i32_0 : i32, i32
  }
  func.func @transform_7(%arg0: i32) -> (i32, i32) {
    %c0_i32 = arith.constant 0 : i32
    %c0_i32_0 = arith.constant 0 : i32
    %c0_i32_1 = arith.constant 0 : i32
    return %c0_i32, %c0_i32_0 : i32, i32
  }
  func.func @transform_8(%arg0: i32) -> (i32, i32) {
    %c0_i32 = arith.constant 0 : i32
    %c0_i32_0 = arith.constant 0 : i32
    %c0_i32_1 = arith.constant 0 : i32
    return %c0_i32, %c0_i32_0 : i32, i32
  }
  func.func @transform_9(%arg0: i32) -> (i32, i32, i32, i32) {
    %c0_i32 = arith.constant 0 : i32
    %c0_i32_0 = arith.constant 0 : i32
    %c0_i32_1 = arith.constant 0 : i32
    %c0_i32_2 = arith.constant 0 : i32
    return %arg0, %c0_i32, %c0_i32_0, %c0_i32_1 : i32, i32, i32, i32
  }
}

</mosaic_0001>

<llo_original>
// kernel: tpu_custom_call.1
$region0: #{tpu_custom_call.1}
  #allocation0 [shape = 'u32[]', space=smem, size = 0x4, offset = 0x4, fixed_abs, tag = 'smem constant byte address 0x4 - core index']
  #allocation1 [shape = 'u32[144,128]{1,0:T(1,128)}', space=vmem, size = 0x12000, scoped, tag = 'internal scratch']
  #allocation2 [shape = 'f32[18,18,4]{2,1,0:T(8,128)}', space=vmem, size = 0x36000, scoped, tag = 'scratch operand']
  #allocation3 [shape = 'f32[18,18,8]{2,1,0:T(8,128)}', space=vmem, size = 0x36000, scoped, tag = 'scratch operand']
  #allocation4 [shape = 'bf16[16,16,36]{2,1,0:T(16,128)(2,1)}', space=vmem, size = 0x10000, scoped, tag = 'scratch operand']
  #allocation5 [shape = 'bf16[16,16,72]{2,1,0:T(16,128)(2,1)}', space=vmem, size = 0x10000, scoped, tag = 'scratch operand']
  %s0 = inlined_call_operand.vmem [shape: bf16[2,16,16,4], index: 0, kind: input, shape index: {}]
  %s1 = inlined_call_operand.vmem [shape: bf16[36,8], index: 1, kind: input, shape index: {}]
  %s2 = inlined_call_operand.vmem [shape: f32[1,8], index: 2, kind: input, shape index: {}]
  %s3 = inlined_call_operand.vmem [shape: f32[1,8], index: 3, kind: input, shape index: {}]
  %s4 = inlined_call_operand.vmem [shape: bf16[72,8], index: 4, kind: input, shape index: {}]
  %s5 = inlined_call_operand.vmem [shape: f32[1,8], index: 5, kind: input, shape index: {}]
  %s6 = inlined_call_operand.vmem [shape: f32[1,8], index: 6, kind: input, shape index: {}]
  %s7 = inlined_call_operand.vmem [shape: bf16[4,8], index: 7, kind: input, shape index: {}]
  %s8 = inlined_call_operand.vmem [shape: f32[1,8], index: 8, kind: input, shape index: {}]
  %s9 = inlined_call_operand.vmem [shape: f32[2,16,16,8], index: 9, kind: output, shape index: {}]
  %s10 = sld [smem:[#allocation0]]
  $region69: #{tpu_custom_call.1} parent=0
    _
  %s12 = ssub.s32 1, %s10
  %s13 = scalar_select 0, %s12, %s10
  loop: start=0, step=1, limit=4
  $region2: #{tpu_custom_call.1} parent=0 // loop_pre_header
    _
  $region3: #{tpu_custom_call.1} parent=0 // loop_header
    %s15 = sphi 0, %s19
    %p16 = scmp.ge.s32.totalorder %s15, 4
    %s25 = sphi 0, %s27
    %s28 = sphi 0, %s25
    %s29 = sphi 0, %s28
    %s45 = sphi 0, %s29
    %s49 = sphi 0, %s49
    %s51 = sphi 0, %s49
    %s52 = sphi 0, %s51
    %s66 = sphi 0, %s52
    %s70 = sphi 0, %s70
    %s72 = sphi 0, %s70
    %s73 = sphi 0, %s72
    %s87 = sphi 0, %s73
    %s91 = sphi 0, %s91
    %s93 = sphi 0, %s91
    %s94 = sphi 0, %s93
    %s108 = sphi 0, %s94
    %s112 = sphi 0, %s112
    %s114 = sphi 0, %s112
    %s115 = sphi 0, %s114
    %s129 = sphi 0, %s115
    %s133 = sphi 0, %s133
    %s135 = sphi 0, %s133
    %s136 = sphi 0, %s135
    %s150 = sphi 0, %s136
    %s154 = sphi 0, %s154
    %s156 = sphi 0, %s154
    %s157 = sphi 0, %s156
    %s171 = sphi 0, %s157
    %s175 = sphi 0, %s175
    %s177 = sphi 0, %s175
    %s178 = sphi 0, %s177
    %s192 = sphi 0, %s178
    %s196 = sphi 0, %s196
    %s198 = sphi 0, %s196
    %s199 = sphi 0, %s198
    %s213 = sphi 0, %s199
    %s219 = sphi 0, %s221
    %s222 = sphi 0, %s219
    %s223 = sphi 0, %s222
    %s239 = sphi 0, %s223
  $region4: #{tpu_custom_call.1} parent=0 // loop_header_branch
    %18 = sbr.rel (%p16) target = $region8
  $region5: #{tpu_custom_call.1} parent=0 // loop_body
    %s20 = ssub.s32 %s15, 1
    %s21 = ssub.s32 %s15, 2
    %s22 = sadd.s32 %s15, 1
    %s23 = ssub.s32 %s15, %s22
    %p24 = scmp.eq.s32.totalorder %s23, 0
    %s26 = sadd.s32 %s25, 1
    %s27 = scalar_select %p24, %s25, %s26
    %p30 = pneg %p24
    %p31 = scmp.eq.s32.totalorder %s15, 1
    %p32 = por %p30, %p31
    %p33 = scmp.ne.s32.totalorder %s25, %s28
    %p34 = scmp.eq.s32.totalorder %s15, 0
    %p35 = por %p33, %p34
    %p36 = scmp.ne.s32.totalorder %s25, %s28
    %p37 = scmp.eq.s32.totalorder %s20, 1
    %p38 = por %p36, %p37
    %p39 = scmp.ne.s32.totalorder %s28, %s29
    %p40 = scmp.eq.s32.totalorder %s20, 0
    %p41 = por %p39, %p40
    %p42 = scmp.ne.s32.totalorder %s28, %s29
    %p43 = scmp.eq.s32.totalorder %s21, 1
    %p44 = por %p42, %p43
    %p46 = scmp.ne.s32.totalorder %s29, %s45
    %p47 = scmp.eq.s32.totalorder %s21, 0
    %p48 = por %p46, %p47
    %s50 = sadd.s32 %s49, 1
    %p53 = scmp.eq.s32.totalorder %s15, 1
    %p54 = scmp.ne.s32.totalorder %s49, %s51
    %p55 = scmp.eq.s32.totalorder %s15, 0
    %p56 = por %p54, %p55
    %p57 = scmp.ne.s32.totalorder %s49, %s51
    %p58 = scmp.eq.s32.totalorder %s20, 1
    %p59 = por %p57, %p58
    %p60 = scmp.ne.s32.totalorder %s51, %s52
    %p61 = scmp.eq.s32.totalorder %s20, 0
    %p62 = por %p60, %p61
    %p63 = scmp.ne.s32.totalorder %s51, %s52
    %p64 = scmp.eq.s32.totalorder %s21, 1
    %p65 = por %p63, %p64
    %p67 = scmp.ne.s32.totalorder %s52, %s66
    %p68 = scmp.eq.s32.totalorder %s21, 0
    %p69 = por %p67, %p68
    %s71 = sadd.s32 %s70, 1
    %p74 = scmp.eq.s32.totalorder %s15, 1
    %p75 = scmp.ne.s32.totalorder %s70, %s72
    %p76 = scmp.eq.s32.totalorder %s15, 0
    %p77 = por %p75, %p76
    %p78 = scmp.ne.s32.totalorder %s70, %s72
    %p79 = scmp.eq.s32.totalorder %s20, 1
    %p80 = por %p78, %p79
    %p81 = scmp.ne.s32.totalorder %s72, %s73
    %p82 = scmp.eq.s32.totalorder %s20, 0
    %p83 = por %p81, %p82
    %p84 = scmp.ne.s32.totalorder %s72, %s73
    %p85 = scmp.eq.s32.totalorder %s21, 1
    %p86 = por %p84, %p85
    %p88 = scmp.ne.s32.totalorder %s73, %s87
    %p89 = scmp.eq.s32.totalorder %s21, 0
    %p90 = por %p88, %p89
    %s92 = sadd.s32 %s91, 1
    %p95 = scmp.eq.s32.totalorder %s15, 1
    %p96 = scmp.ne.s32.totalorder %s91, %s93
    %p97 = scmp.eq.s32.totalorder %s15, 0
    %p98 = por %p96, %p97
    %p99 = scmp.ne.s32.totalorder %s91, %s93
    %p100 = scmp.eq.s32.totalorder %s20, 1
    %p101 = por %p99, %p100
    %p102 = scmp.ne.s32.totalorder %s93, %s94
    %p103 = scmp.eq.s32.totalorder %s20, 0
    %p104 = por %p102, %p103
    %p105 = scmp.ne.s32.totalorder %s93, %s94
    %p106 = scmp.eq.s32.totalorder %s21, 1
    %p107 = por %p105, %p106
    %p109 = scmp.ne.s32.totalorder %s94, %s108
    %p110 = scmp.eq.s32.totalorder %s21, 0
    %p111 = por %p109, %p110
    %s113 = sadd.s32 %s112, 1
    %p116 = scmp.eq.s32.totalorder %s15, 1
    %p117 = scmp.ne.s32.totalorder %s112, %s114
    %p118 = scmp.eq.s32.totalorder %s15, 0
    %p119 = por %p117, %p118
    %p120 = scmp.ne.s32.totalorder %s112, %s114
    %p121 = scmp.eq.s32.totalorder %s20, 1
    %p122 = por %p120, %p121
    %p123 = scmp.ne.s32.totalorder %s114, %s115
    %p124 = scmp.eq.s32.totalorder %s20, 0
    %p125 = por %p123, %p124
    %p126 = scmp.ne.s32.totalorder %s114, %s115
    %p127 = scmp.eq.s32.totalorder %s21, 1
    %p128 = por %p126, %p127
    %p130 = scmp.ne.s32.totalorder %s115, %s129
    %p131 = scmp.eq.s32.totalorder %s21, 0
    %p132 = por %p130, %p131
    %s134 = sadd.s32 %s133, 1
    %p137 = scmp.eq.s32.totalorder %s15, 1
    %p138 = scmp.ne.s32.totalorder %s133, %s135
    %p139 = scmp.eq.s32.totalorder %s15, 0
    %p140 = por %p138, %p139
    %p141 = scmp.ne.s32.totalorder %s133, %s135
    %p142 = scmp.eq.s32.totalorder %s20, 1
    %p143 = por %p141, %p142
    %p144 = scmp.ne.s32.totalorder %s135, %s136
    %p145 = scmp.eq.s32.totalorder %s20, 0
    %p146 = por %p144, %p145
    %p147 = scmp.ne.s32.totalorder %s135, %s136
    %p148 = scmp.eq.s32.totalorder %s21, 1
    %p149 = por %p147, %p148
    %p151 = scmp.ne.s32.totalorder %s136, %s150
    %p152 = scmp.eq.s32.totalorder %s21, 0
    %p153 = por %p151, %p152
    %s155 = sadd.s32 %s154, 1
    %p158 = scmp.eq.s32.totalorder %s15, 1
    %p159 = scmp.ne.s32.totalorder %s154, %s156
    %p160 = scmp.eq.s32.totalorder %s15, 0
    %p161 = por %p159, %p160
    %p162 = scmp.ne.s32.totalorder %s154, %s156
    %p163 = scmp.eq.s32.totalorder %s20, 1
    %p164 = por %p162, %p163
    %p165 = scmp.ne.s32.totalorder %s156, %s157
    %p166 = scmp.eq.s32.totalorder %s20, 0
    %p167 = por %p165, %p166
    %p168 = scmp.ne.s32.totalorder %s156, %s157
    %p169 = scmp.eq.s32.totalorder %s21, 1
    %p170 = por %p168, %p169
    %p172 = scmp.ne.s32.totalorder %s157, %s171
    %p173 = scmp.eq.s32.totalorder %s21, 0
    %p174 = por %p172, %p173
    %s176 = sadd.s32 %s175, 1
    %p179 = scmp.eq.s32.totalorder %s15, 1
    %p180 = scmp.ne.s32.totalorder %s175, %s177
    %p181 = scmp.eq.s32.totalorder %s15, 0
    %p182 = por %p180, %p181
    %p183 = scmp.ne.s32.totalorder %s175, %s177
    %p184 = scmp.eq.s32.totalorder %s20, 1
    %p185 = por %p183, %p184
    %p186 = scmp.ne.s32.totalorder %s177, %s178
    %p187 = scmp.eq.s32.totalorder %s20, 0
    %p188 = por %p186, %p187
    %p189 = scmp.ne.s32.totalorder %s177, %s178
    %p190 = scmp.eq.s32.totalorder %s21, 1
    %p191 = por %p189, %p190
    %p193 = scmp.ne.s32.totalorder %s178, %s192
    %p194 = scmp.eq.s32.totalorder %s21, 0
    %p195 = por %p193, %p194
    %s197 = sadd.s32 %s196, 1
    %p200 = scmp.eq.s32.totalorder %s15, 1
    %p201 = scmp.ne.s32.totalorder %s196, %s198
    %p202 = scmp.eq.s32.totalorder %s15, 0
    %p203 = por %p201, %p202
    %p204 = scmp.ne.s32.totalorder %s196, %s198
    %p205 = scmp.eq.s32.totalorder %s20, 1
    %p206 = por %p204, %p205
    %p207 = scmp.ne.s32.totalorder %s198, %s199
    %p208 = scmp.eq.s32.totalorder %s20, 0
    %p209 = por %p207, %p208
    %p210 = scmp.ne.s32.totalorder %s198, %s199
    %p211 = scmp.eq.s32.totalorder %s21, 1
    %p212 = por %p210, %p211
    %p214 = scmp.ne.s32.totalorder %s199, %s213
    %p215 = scmp.eq.s32.totalorder %s21, 0
    %p216 = por %p214, %p215
    %s217 = ssub.s32 %s15, %s22
    %p218 = scmp.eq.s32.totalorder %s217, 0
    %s220 = sadd.s32 %s219, 1
    %s221 = scalar_select %p218, %s219, %s220
    %p224 = pneg %p218
    %p225 = scmp.eq.s32.totalorder %s15, 1
    %p226 = por %p224, %p225
    %p227 = scmp.ne.s32.totalorder %s219, %s222
    %p228 = scmp.eq.s32.totalorder %s15, 0
    %p229 = por %p227, %p228
    %p230 = scmp.ne.s32.totalorder %s219, %s222
    %p231 = scmp.eq.s32.totalorder %s20, 1
    %p232 = por %p230, %p231
    %p233 = scmp.ne.s32.totalorder %s222, %s223
    %p234 = scmp.eq.s32.totalorder %s20, 0
    %p235 = por %p233, %p234
    %p236 = scmp.ne.s32.totalorder %s222, %s223
    %p237 = scmp.eq.s32.totalorder %s21, 1
    %p238 = por %p236, %p237
    %p240 = scmp.ne.s32.totalorder %s223, %s239
    %p241 = scmp.eq.s32.totalorder %s21, 0
    %p242 = por %p240, %p241
    %p243 = scmp.le.s32.totalorder 1, %s15
    %p244 = scmp.lt.s32.totalorder %s15, 3
    %p245 = pnand %p243, %p244
    %p246 = pneg %p245
    // Predicated region
    $region9: #{tpu_custom_call.1} parent=5 // pred_check
      _
    $region10: #{tpu_custom_call.1} parent=5 // pred_check_branch
      %248 = sbr.rel (%p245) target = $region12
    $region11: #{tpu_custom_call.1} parent=5 // pred_region
      %s249 = ssub.s32 %s15, 1
      // Predicated region
      $region13: #{tpu_custom_call.1} parent=11 // pred_check
        %p250 = pneg %p62
      $region14: #{tpu_custom_call.1} parent=11 // pred_check_branch
        %252 = sbr.rel (%p250) target = $region16
      $region15: #{tpu_custom_call.1} parent=11 // pred_region
        _
      $region16: #{tpu_custom_call.1} parent=11 // pred_fallthru
        _
      // Predicated region
      $region17: #{tpu_custom_call.1} parent=11 // pred_check
        %p253 = pneg %p83
      $region18: #{tpu_custom_call.1} parent=11 // pred_check_branch
        %255 = sbr.rel (%p253) target = $region20
      $region19: #{tpu_custom_call.1} parent=11 // pred_region
        _
      $region20: #{tpu_custom_call.1} parent=11 // pred_fallthru
        _
      // Predicated region
      $region21: #{tpu_custom_call.1} parent=11 // pred_check
        %p256 = pneg %p104
      $region22: #{tpu_custom_call.1} parent=11 // pred_check_branch
        %258 = sbr.rel (%p256) target = $region24
      $region23: #{tpu_custom_call.1} parent=11 // pred_region
        _
      $region24: #{tpu_custom_call.1} parent=11 // pred_fallthru
        _
      // Predicated region
      $region25: #{tpu_custom_call.1} parent=11 // pred_check
        %p259 = pneg %p125
      $region26: #{tpu_custom_call.1} parent=11 // pred_check_branch
        %261 = sbr.rel (%p259) target = $region28
      $region27: #{tpu_custom_call.1} parent=11 // pred_region
        _
      $region28: #{tpu_custom_call.1} parent=11 // pred_fallthru
        _
      // Predicated region
      $region29: #{tpu_custom_call.1} parent=11 // pred_check
        %p262 = pneg %p146
      $region30: #{tpu_custom_call.1} parent=11 // pred_check_branch
        %264 = sbr.rel (%p262) target = $region32
      $region31: #{tpu_custom_call.1} parent=11 // pred_region
        _
      $region32: #{tpu_custom_call.1} parent=11 // pred_fallthru
        _
      // Predicated region
      $region33: #{tpu_custom_call.1} parent=11 // pred_check
        %p265 = pneg %p167
      $region34: #{tpu_custom_call.1} parent=11 // pred_check_branch
        %267 = sbr.rel (%p265) target = $region36
      $region35: #{tpu_custom_call.1} parent=11 // pred_region
        _
      $region36: #{tpu_custom_call.1} parent=11 // pred_fallthru
        _
      // Predicated region
      $region37: #{tpu_custom_call.1} parent=11 // pred_check
        %p268 = pneg %p188
      $region38: #{tpu_custom_call.1} parent=11 // pred_check_branch
        %270 = sbr.rel (%p268) target = $region40
      $region39: #{tpu_custom_call.1} parent=11 // pred_region
        _
      $region40: #{tpu_custom_call.1} parent=11 // pred_fallthru
        _
      // Predicated region
      $region41: #{tpu_custom_call.1} parent=11 // pred_check
        %p271 = pneg %p209
      $region42: #{tpu_custom_call.1} parent=11 // pred_check_branch
        %273 = sbr.rel (%p271) target = $region44
      $region43: #{tpu_custom_call.1} parent=11 // pred_region
        _
      $region44: #{tpu_custom_call.1} parent=11 // pred_fallthru
        _
    $region12: #{tpu_custom_call.1} parent=5 // pred_fallthru
      _
    %p274 = scmp.lt.s32.totalorder %s15, 2
    // Predicated region
    $region45: #{tpu_custom_call.1} parent=5 // pred_check
      %p275 = pneg %p274
    $region46: #{tpu_custom_call.1} parent=5 // pred_check_branch
      %277 = sbr.rel (%p275) target = $region48
    $region47: #{tpu_custom_call.1} parent=5 // pred_region
      // Predicated region
      $region49: #{tpu_custom_call.1} parent=47 // pred_check
        %p278 = pneg %p35
      $region50: #{tpu_custom_call.1} parent=47 // pred_check_branch
        %280 = sbr.rel (%p278) target = $region52
      $region51: #{tpu_custom_call.1} parent=47 // pred_region
        %p281 = scmp.lt.s32.totalorder %s15, 1
        %s282 = scalar_select %p281, %s15, 1
        %s283 = smul.addr %s282, 32
        %s284 = smul.addr %s283, 4
        %s285 = scalar_lea.vmem %s0, %s284
      $region52: #{tpu_custom_call.1} parent=47 // pred_fallthru
        _
    $region48: #{tpu_custom_call.1} parent=5 // pred_fallthru
      _
    %p286 = scmp.le.s32.totalorder 1, %s15
    %p287 = scmp.lt.s32.totalorder %s15, 3
    %p288 = pnand %p286, %p287
    %p289 = pneg %p288
    // Predicated region
    $region53: #{tpu_custom_call.1} parent=5 // pred_check
      _
    $region54: #{tpu_custom_call.1} parent=5 // pred_check_branch
      %291 = sbr.rel (%p288) target = $region56
    $region55: #{tpu_custom_call.1} parent=5 // pred_region
      %s292 = ssub.s32 %s15, 1
      %p293 = scmp.lt.s32.totalorder %s20, 1
      %s294 = scalar_select %p293, %s20, 1
      %s295 = smul.addr %s294, 32
      %s296 = smul.addr %s295, 4
      %s297 = scalar_lea.vmem %s0, %s296
      %p298 = pneg %p41
      %p299 = pneg %p38
      %p300 = pneg %p62
      %p301 = pneg %p59
      %p302 = pneg %p83
      %p303 = pneg %p80
      %p304 = pneg %p104
      %p305 = pneg %p101
      %p306 = pneg %p125
      %p307 = pneg %p122
      %p308 = pneg %p146
      %p309 = pneg %p143
      %p310 = pneg %p167
      %p311 = pneg %p164
      %p312 = pneg %p188
      %p313 = pneg %p185
      %p314 = pneg %p209
      %p315 = pneg %p206
      %p316 = pneg %p235
      %p317 = pneg %p232
      %p318 = scmp.lt.s32.totalorder %s20, 1
      %s319 = scalar_select %p318, %s20, 1
      %s320 = smul.addr %s319, 32
      %s321 = smul.addr %s320, 8
      %s322 = scalar_lea.vmem %s9, %s321
      %p323 = scmp.lt.s32.totalorder %s20, 1
      %s324 = scalar_select %p323, %s20, 1
      %s325 = smul.addr %s324, 32
      %s326 = smul.addr %s325, 4
      %s327 = scalar_lea.vmem %s0, %s326
      %p328 = scmp.lt.s32.totalorder %s20, 1
      %s329 = scalar_select %p328, %s20, 1
      %s330 = smul.addr %s329, 32
      %s331 = smul.addr %s330, 8
      %s332 = scalar_lea.vmem %s9, %s331
      %vm334 = vcmask 31744
      %335 = vst.msk [vmem:[#allocation2] sm:$0xff] %vm334, 0.0
      %336 = vst.msk [vmem:[#allocation2 + $0x8] sm:$0xff] %vm334, 0.0
      %vm337 = vcmask 25600
      %338 = vst.msk [vmem:[#allocation2 + $0x10] sm:$0x3] %vm337, 0.0
      %339 = vst.msk [vmem:[#allocation2 + $0x18] sm:$0xff] %vm334, 0.0
      %340 = vst.msk [vmem:[#allocation2 + $0x20] sm:$0xff] %vm334, 0.0
      %341 = vst.msk [vmem:[#allocation2 + $0x28] sm:$0x3] %vm337, 0.0
      %342 = vst.msk [vmem:[#allocation2 + $0x30] sm:$0xff] %vm334, 0.0
      %343 = vst.msk [vmem:[#allocation2 + $0x38] sm:$0xff] %vm334, 0.0
      %344 = vst.msk [vmem:[#allocation2 + $0x40] sm:$0x3] %vm337, 0.0
      %345 = vst.msk [vmem:[#allocation2 + $0x48] sm:$0xff] %vm334, 0.0
      %346 = vst.msk [vmem:[#allocation2 + $0x50] sm:$0xff] %vm334, 0.0
      %347 = vst.msk [vmem:[#allocation2 + $0x58] sm:$0x3] %vm337, 0.0
      %348 = vst.msk [vmem:[#allocation2 + $0x60] sm:$0xff] %vm334, 0.0
      %349 = vst.msk [vmem:[#allocation2 + $0x68] sm:$0xff] %vm334, 0.0
      %350 = vst.msk [vmem:[#allocation2 + $0x70] sm:$0x3] %vm337, 0.0
      %351 = vst.msk [vmem:[#allocation2 + $0x78] sm:$0xff] %vm334, 0.0
      %352 = vst.msk [vmem:[#allocation2 + $0x80] sm:$0xff] %vm334, 0.0
      %353 = vst.msk [vmem:[#allocation2 + $0x88] sm:$0x3] %vm337, 0.0
      %354 = vst.msk [vmem:[#allocation2 + $0x90] sm:$0xff] %vm334, 0.0
      %355 = vst.msk [vmem:[#allocation2 + $0x98] sm:$0xff] %vm334, 0.0
      %356 = vst.msk [vmem:[#allocation2 + $0xa0] sm:$0x3] %vm337, 0.0
      %357 = vst.msk [vmem:[#allocation2 + $0xa8] sm:$0xff] %vm334, 0.0
      %358 = vst.msk [vmem:[#allocation2 + $0xb0] sm:$0xff] %vm334, 0.0
      %359 = vst.msk [vmem:[#allocation2 + $0xb8] sm:$0x3] %vm337, 0.0
      %360 = vst.msk [vmem:[#allocation2 + $0xc0] sm:$0xff] %vm334, 0.0
      %361 = vst.msk [vmem:[#allocation2 + $0xc8] sm:$0xff] %vm334, 0.0
      %362 = vst.msk [vmem:[#allocation2 + $0xd0] sm:$0x3] %vm337, 0.0
      %363 = vst.msk [vmem:[#allocation2 + $0xd8] sm:$0xff] %vm334, 0.0
      %364 = vst.msk [vmem:[#allocation2 + $0xe0] sm:$0xff] %vm334, 0.0
      %365 = vst.msk [vmem:[#allocation2 + $0xe8] sm:$0x3] %vm337, 0.0
      %366 = vst.msk [vmem:[#allocation2 + $0xf0] sm:$0xff] %vm334, 0.0
      %367 = vst.msk [vmem:[#allocation2 + $0xf8] sm:$0xff] %vm334, 0.0
      %368 = vst.msk [vmem:[#allocation2 + $0x100] sm:$0x3] %vm337, 0.0
      %369 = vst.msk [vmem:[#allocation2 + $0x108] sm:$0xff] %vm334, 0.0
      %370 = vst.msk [vmem:[#allocation2 + $0x110] sm:$0xff] %vm334, 0.0
      %371 = vst.msk [vmem:[#allocation2 + $0x118] sm:$0x3] %vm337, 0.0
      %372 = vst.msk [vmem:[#allocation2 + $0x120] sm:$0xff] %vm334, 0.0
      %373 = vst.msk [vmem:[#allocation2 + $0x128] sm:$0xff] %vm334, 0.0
      %374 = vst.msk [vmem:[#allocation2 + $0x130] sm:$0x3] %vm337, 0.0
      %375 = vst.msk [vmem:[#allocation2 + $0x138] sm:$0xff] %vm334, 0.0
      %376 = vst.msk [vmem:[#allocation2 + $0x140] sm:$0xff] %vm334, 0.0
      %377 = vst.msk [vmem:[#allocation2 + $0x148] sm:$0x3] %vm337, 0.0
      %378 = vst.msk [vmem:[#allocation2 + $0x150] sm:$0xff] %vm334, 0.0
      %379 = vst.msk [vmem:[#allocation2 + $0x158] sm:$0xff] %vm334, 0.0
      %380 = vst.msk [vmem:[#allocation2 + $0x160] sm:$0x3] %vm337, 0.0
      %381 = vst.msk [vmem:[#allocation2 + $0x168] sm:$0xff] %vm334, 0.0
      %382 = vst.msk [vmem:[#allocation2 + $0x170] sm:$0xff] %vm334, 0.0
      %383 = vst.msk [vmem:[#allocation2 + $0x178] sm:$0x3] %vm337, 0.0
      %384 = vst.msk [vmem:[#allocation2 + $0x180] sm:$0xff] %vm334, 0.0
      %385 = vst.msk [vmem:[#allocation2 + $0x188] sm:$0xff] %vm334, 0.0
      %386 = vst.msk [vmem:[#allocation2 + $0x190] sm:$0x3] %vm337, 0.0
      %387 = vst.msk [vmem:[#allocation2 + $0x198] sm:$0xff] %vm334, 0.0
      %388 = vst.msk [vmem:[#allocation2 + $0x1a0] sm:$0xff] %vm334, 0.0
      %389 = vst.msk [vmem:[#allocation2 + $0x1a8] sm:$0x3] %vm337, 0.0
      %v390 = vld [vmem:[%s327] sm:$0xf]
      %v391 = vld [vmem:[%s327 + $0x4] sm:$0xf]
      %v392 = vld [vmem:[%s327 + $0x8] sm:$0xf]
      %v393 = vld [vmem:[%s327 + $0xc] sm:$0xf]
      %v394 = vld [vmem:[%s327 + $0x10] sm:$0xf]
      %v395 = vld [vmem:[%s327 + $0x14] sm:$0xf]
      %v396 = vld [vmem:[%s327 + $0x18] sm:$0xf]
      %v397 = vld [vmem:[%s327 + $0x1c] sm:$0xf]
      %v398 = vld [vmem:[%s327 + $0x20] sm:$0xf]
      %v399 = vld [vmem:[%s327 + $0x24] sm:$0xf]
      %v400 = vld [vmem:[%s327 + $0x28] sm:$0xf]
      %v401 = vld [vmem:[%s327 + $0x2c] sm:$0xf]
      %v402 = vld [vmem:[%s327 + $0x30] sm:$0xf]
      %v403 = vld [vmem:[%s327 + $0x34] sm:$0xf]
      %v404 = vld [vmem:[%s327 + $0x38] sm:$0xf]
      %v405 = vld [vmem:[%s327 + $0x3c] sm:$0xf]
      %v406 = vld [vmem:[%s327 + $0x40] sm:$0xf]
      %v407 = vld [vmem:[%s327 + $0x44] sm:$0xf]
      %v408 = vld [vmem:[%s327 + $0x48] sm:$0xf]
      %v409 = vld [vmem:[%s327 + $0x4c] sm:$0xf]
      %v410 = vld [vmem:[%s327 + $0x50] sm:$0xf]
      %v411 = vld [vmem:[%s327 + $0x54] sm:$0xf]
      %v412 = vld [vmem:[%s327 + $0x58] sm:$0xf]
      %v413 = vld [vmem:[%s327 + $0x5c] sm:$0xf]
      %v414 = vld [vmem:[%s327 + $0x60] sm:$0xf]
      %v415 = vld [vmem:[%s327 + $0x64] sm:$0xf]
      %v416 = vld [vmem:[%s327 + $0x68] sm:$0xf]
      %v417 = vld [vmem:[%s327 + $0x6c] sm:$0xf]
      %v418 = vld [vmem:[%s327 + $0x70] sm:$0xf]
      %v419 = vld [vmem:[%s327 + $0x74] sm:$0xf]
      %v420 = vld [vmem:[%s327 + $0x78] sm:$0xf]
      %v421 = vld [vmem:[%s327 + $0x7c] sm:$0xf]
      %v422 = vunpack.c.l.bf16 %v390
      %v423 = vunpack.c.l.bf16 %v391
      %v424 = vunpack.c.l.bf16 %v392
      %v425 = vunpack.c.l.bf16 %v393
      %v426 = vunpack.c.l.bf16 %v394
      %v427 = vunpack.c.l.bf16 %v395
      %v428 = vunpack.c.l.bf16 %v396
      %v429 = vunpack.c.l.bf16 %v397
      %v430 = vunpack.c.l.bf16 %v398
      %v431 = vunpack.c.l.bf16 %v399
      %v432 = vunpack.c.l.bf16 %v400
      %v433 = vunpack.c.l.bf16 %v401
      %v434 = vunpack.c.l.bf16 %v402
      %v435 = vunpack.c.l.bf16 %v403
      %v436 = vunpack.c.l.bf16 %v404
      %v437 = vunpack.c.l.bf16 %v405
      %v438 = vunpack.c.l.bf16 %v406
      %v439 = vunpack.c.l.bf16 %v407
      %v440 = vunpack.c.l.bf16 %v408
      %v441 = vunpack.c.l.bf16 %v409
      %v442 = vunpack.c.l.bf16 %v410
      %v443 = vunpack.c.l.bf16 %v411
      %v444 = vunpack.c.l.bf16 %v412
      %v445 = vunpack.c.l.bf16 %v413
      %v446 = vunpack.c.l.bf16 %v414
      %v447 = vunpack.c.l.bf16 %v415
      %v448 = vunpack.c.l.bf16 %v416
      %v449 = vunpack.c.l.bf16 %v417
      %v450 = vunpack.c.l.bf16 %v418
      %v451 = vunpack.c.l.bf16 %v419
      %v452 = vunpack.c.l.bf16 %v420
      %v453 = vunpack.c.l.bf16 %v421
      %s454 = scalar_lea.vmem [#allocation2], 24
      %455 = vst.msk [vmem:[%s454 + $0x1] sm:$0xff] %vm334, %v422
      %456 = vst.msk [vmem:[%s454 + $0x9] sm:$0xff] %vm334, %v423
      %457 = vst.msk [vmem:[%s454 + $0x19] sm:$0xff] %vm334, %v424
      %458 = vst.msk [vmem:[%s454 + $0x21] sm:$0xff] %vm334, %v425
      %459 = vst.msk [vmem:[%s454 + $0x31] sm:$0xff] %vm334, %v426
      %460 = vst.msk [vmem:[%s454 + $0x39] sm:$0xff] %vm334, %v427
      %461 = vst.msk [vmem:[%s454 + $0x49] sm:$0xff] %vm334, %v428
      %462 = vst.msk [vmem:[%s454 + $0x51] sm:$0xff] %vm334, %v429
      %463 = vst.msk [vmem:[%s454 + $0x61] sm:$0xff] %vm334, %v430
      %464 = vst.msk [vmem:[%s454 + $0x69] sm:$0xff] %vm334, %v431
      %465 = vst.msk [vmem:[%s454 + $0x79] sm:$0xff] %vm334, %v432
      %466 = vst.msk [vmem:[%s454 + $0x81] sm:$0xff] %vm334, %v433
      %467 = vst.msk [vmem:[%s454 + $0x91] sm:$0xff] %vm334, %v434
      %468 = vst.msk [vmem:[%s454 + $0x99] sm:$0xff] %vm334, %v435
      %469 = vst.msk [vmem:[%s454 + $0xa9] sm:$0xff] %vm334, %v436
      %470 = vst.msk [vmem:[%s454 + $0xb1] sm:$0xff] %vm334, %v437
      %471 = vst.msk [vmem:[%s454 + $0xc1] sm:$0xff] %vm334, %v438
      %472 = vst.msk [vmem:[%s454 + $0xc9] sm:$0xff] %vm334, %v439
      %473 = vst.msk [vmem:[%s454 + $0xd9] sm:$0xff] %vm334, %v440
      %474 = vst.msk [vmem:[%s454 + $0xe1] sm:$0xff] %vm334, %v441
      %475 = vst.msk [vmem:[%s454 + $0xf1] sm:$0xff] %vm334, %v442
      %476 = vst.msk [vmem:[%s454 + $0xf9] sm:$0xff] %vm334, %v443
      %477 = vst.msk [vmem:[%s454 + $0x109] sm:$0xff] %vm334, %v444
      %478 = vst.msk [vmem:[%s454 + $0x111] sm:$0xff] %vm334, %v445
      %479 = vst.msk [vmem:[%s454 + $0x121] sm:$0xff] %vm334, %v446
      %480 = vst.msk [vmem:[%s454 + $0x129] sm:$0xff] %vm334, %v447
      %481 = vst.msk [vmem:[%s454 + $0x139] sm:$0xff] %vm334, %v448
      %482 = vst.msk [vmem:[%s454 + $0x141] sm:$0xff] %vm334, %v449
      %483 = vst.msk [vmem:[%s454 + $0x151] sm:$0xff] %vm334, %v450
      %484 = vst.msk [vmem:[%s454 + $0x159] sm:$0xff] %vm334, %v451
      %485 = vst.msk [vmem:[%s454 + $0x169] sm:$0xff] %vm334, %v452
      %486 = vst.msk [vmem:[%s454 + $0x171] sm:$0xff] %vm334, %v453
      %v487 = vld [vmem:[#allocation2] sm:$0xff]
      %v488 = vld [vmem:[#allocation2 + $0x8] sm:$0xff]
      %v489 = vld [vmem:[#allocation2 + $0x18] sm:$0xff]
      %v490 = vld [vmem:[#allocation2 + $0x20] sm:$0xff]
      %v491 = vld [vmem:[#allocation2 + $0x30] sm:$0xff]
      %v492 = vld [vmem:[#allocation2 + $0x38] sm:$0xff]
      %v493 = vld [vmem:[#allocation2 + $0x48] sm:$0xff]
      %v494 = vld [vmem:[#allocation2 + $0x50] sm:$0xff]
      %v495 = vld [vmem:[#allocation2 + $0x60] sm:$0xff]
      %v496 = vld [vmem:[#allocation2 + $0x68] sm:$0xff]
      %v497 = vld [vmem:[#allocation2 + $0x78] sm:$0xff]
      %v498 = vld [vmem:[#allocation2 + $0x80] sm:$0xff]
      %v499 = vld [vmem:[#allocation2 + $0x90] sm:$0xff]
      %v500 = vld [vmem:[#allocation2 + $0x98] sm:$0xff]
      %v501 = vld [vmem:[#allocation2 + $0xa8] sm:$0xff]
      %v502 = vld [vmem:[#allocation2 + $0xb0] sm:$0xff]
      %v503 = vld [vmem:[#allocation2 + $0xc0] sm:$0xff]
      %v504 = vld [vmem:[#allocation2 + $0xc8] sm:$0xff]
      %v505 = vld [vmem:[#allocation2 + $0xd8] sm:$0xff]
      %v506 = vld [vmem:[#allocation2 + $0xe0] sm:$0xff]
      %v507 = vld [vmem:[#allocation2 + $0xf0] sm:$0xff]
      %v508 = vld [vmem:[#allocation2 + $0xf8] sm:$0xff]
      %v509 = vld [vmem:[#allocation2 + $0x108] sm:$0xff]
      %v510 = vld [vmem:[#allocation2 + $0x110] sm:$0xff]
      %v511 = vld [vmem:[#allocation2 + $0x120] sm:$0xff]
      %v512 = vld [vmem:[#allocation2 + $0x128] sm:$0xff]
      %v513 = vld [vmem:[#allocation2 + $0x138] sm:$0xff]
      %v514 = vld [vmem:[#allocation2 + $0x140] sm:$0xff]
      %v515 = vld [vmem:[#allocation2 + $0x150] sm:$0xff]
      %v516 = vld [vmem:[#allocation2 + $0x158] sm:$0xff]
      %v517 = vld [vmem:[#allocation2 + $0x168] sm:$0xff]
      %v518 = vld [vmem:[#allocation2 + $0x170] sm:$0xff]
      %v519 = vpack.c.bf16 %v488, %v487
      %v520 = vpack.c.bf16 %v490, %v489
      %v521 = vpack.c.bf16 %v492, %v491
      %v522 = vpack.c.bf16 %v494, %v493
      %v523 = vpack.c.bf16 %v496, %v495
      %v524 = vpack.c.bf16 %v498, %v497
      %v525 = vpack.c.bf16 %v500, %v499
      %v526 = vpack.c.bf16 %v502, %v501
      %v527 = vpack.c.bf16 %v504, %v503
      %v528 = vpack.c.bf16 %v506, %v505
      %v529 = vpack.c.bf16 %v508, %v507
      %v530 = vpack.c.bf16 %v510, %v509
      %v531 = vpack.c.bf16 %v512, %v511
      %v532 = vpack.c.bf16 %v514, %v513
      %v533 = vpack.c.bf16 %v516, %v515
      %v534 = vpack.c.bf16 %v518, %v517
      %535 = vst.msk [vmem:[#allocation4] sm:$0xff] %vm334, %v519
      %536 = vst.msk [vmem:[#allocation4 + $0x8] sm:$0xff] %vm334, %v520
      %537 = vst.msk [vmem:[#allocation4 + $0x10] sm:$0xff] %vm334, %v521
      %538 = vst.msk [vmem:[#allocation4 + $0x18] sm:$0xff] %vm334, %v522
      %539 = vst.msk [vmem:[#allocation4 + $0x20] sm:$0xff] %vm334, %v523
      %540 = vst.msk [vmem:[#allocation4 + $0x28] sm:$0xff] %vm334, %v524
      %541 = vst.msk [vmem:[#allocation4 + $0x30] sm:$0xff] %vm334, %v525
      %542 = vst.msk [vmem:[#allocation4 + $0x38] sm:$0xff] %vm334, %v526
      %543 = vst.msk [vmem:[#allocation4 + $0x40] sm:$0xff] %vm334, %v527
      %544 = vst.msk [vmem:[#allocation4 + $0x48] sm:$0xff] %vm334, %v528
      %545 = vst.msk [vmem:[#allocation4 + $0x50] sm:$0xff] %vm334, %v529
      %546 = vst.msk [vmem:[#allocation4 + $0x58] sm:$0xff] %vm334, %v530
      %547 = vst.msk [vmem:[#allocation4 + $0x60] sm:$0xff] %vm334, %v531
      %548 = vst.msk [vmem:[#allocation4 + $0x68] sm:$0xff] %vm334, %v532
      %549 = vst.msk [vmem:[#allocation4 + $0x70] sm:$0xff] %vm334, %v533
      %550 = vst.msk [vmem:[#allocation4 + $0x78] sm:$0xff] %vm334, %v534
      %v551 = vld [vmem:[#allocation2 + $0x1] sm:$0xff]
      %v552 = vld [vmem:[#allocation2 + $0x9] sm:$0xff]
      %v553 = vld [vmem:[#allocation2 + $0x19] sm:$0xff]
      %v554 = vld [vmem:[#allocation2 + $0x21] sm:$0xff]
      %v555 = vld [vmem:[#allocation2 + $0x31] sm:$0xff]
      %v556 = vld [vmem:[#allocation2 + $0x39] sm:$0xff]
      %v557 = vld [vmem:[#allocation2 + $0x49] sm:$0xff]
      %v558 = vld [vmem:[#allocation2 + $0x51] sm:$0xff]
      %v559 = vld [vmem:[#allocation2 + $0x61] sm:$0xff]
      %v560 = vld [vmem:[#allocation2 + $0x69] sm:$0xff]
      %v561 = vld [vmem:[#allocation2 + $0x79] sm:$0xff]
      %v562 = vld [vmem:[#allocation2 + $0x81] sm:$0xff]
      %v563 = vld [vmem:[#allocation2 + $0x91] sm:$0xff]
      %v564 = vld [vmem:[#allocation2 + $0x99] sm:$0xff]
      %v565 = vld [vmem:[#allocation2 + $0xa9] sm:$0xff]
      %v566 = vld [vmem:[#allocation2 + $0xb1] sm:$0xff]
      %v567 = vld [vmem:[#allocation2 + $0xc1] sm:$0xff]
      %v568 = vld [vmem:[#allocation2 + $0xc9] sm:$0xff]
      %v569 = vld [vmem:[#allocation2 + $0xd9] sm:$0xff]
      %v570 = vld [vmem:[#allocation2 + $0xe1] sm:$0xff]
      %v571 = vld [vmem:[#allocation2 + $0xf1] sm:$0xff]
      %v572 = vld [vmem:[#allocation2 + $0xf9] sm:$0xff]
      %v573 = vld [vmem:[#allocation2 + $0x109] sm:$0xff]
      %v574 = vld [vmem:[#allocation2 + $0x111] sm:$0xff]
      %v575 = vld [vmem:[#allocation2 + $0x121] sm:$0xff]
      %v576 = vld [vmem:[#allocation2 + $0x129] sm:$0xff]
      %v577 = vld [vmem:[#allocation2 + $0x139] sm:$0xff]
      %v578 = vld [vmem:[#allocation2 + $0x141] sm:$0xff]
      %v579 = vld [vmem:[#allocation2 + $0x151] sm:$0xff]
      %v580 = vld [vmem:[#allocation2 + $0x159] sm:$0xff]
      %v581 = vld [vmem:[#allocation2 + $0x169] sm:$0xff]
      %v582 = vld [vmem:[#allocation2 + $0x171] sm:$0xff]
      %v583 = vpack.c.bf16 %v552, %v551
      %v584 = vpack.c.bf16 %v554, %v553
      %v585 = vpack.c.bf16 %v556, %v555
      %v586 = vpack.c.bf16 %v558, %v557
      %v587 = vpack.c.bf16 %v560, %v559
      %v588 = vpack.c.bf16 %v562, %v561
      %v589 = vpack.c.bf16 %v564, %v563
      %v590 = vpack.c.bf16 %v566, %v565
      %v591 = vpack.c.bf16 %v568, %v567
      %v592 = vpack.c.bf16 %v570, %v569
      %v593 = vpack.c.bf16 %v572, %v571
      %v594 = vpack.c.bf16 %v574, %v573
      %v595 = vpack.c.bf16 %v576, %v575
      %v596 = vpack.c.bf16 %v578, %v577
      %v597 = vpack.c.bf16 %v580, %v579
      %v598 = vpack.c.bf16 %v582, %v581
      %615 = vrot.lane.b32.xlu0 %v583, 4
      %v616 = vpop.permute.xlu0 %615
      %617 = vrot.lane.b32.xlu0 %v584, 4
      %v618 = vpop.permute.xlu0 %617
      %619 = vrot.lane.b32.xlu0 %v585, 4
      %v620 = vpop.permute.xlu0 %619
      %621 = vrot.lane.b32.xlu0 %v586, 4
      %v622 = vpop.permute.xlu0 %621
      %623 = vrot.lane.b32.xlu0 %v587, 4
      %v624 = vpop.permute.xlu0 %623
      %625 = vrot.lane.b32.xlu0 %v588, 4
      %v626 = vpop.permute.xlu0 %625
      %627 = vrot.lane.b32.xlu0 %v589, 4
      %v628 = vpop.permute.xlu0 %627
      %629 = vrot.lane.b32.xlu0 %v590, 4
      %v630 = vpop.permute.xlu0 %629
      %631 = vrot.lane.b32.xlu0 %v591, 4
      %v632 = vpop.permute.xlu0 %631
      %633 = vrot.lane.b32.xlu0 %v592, 4
      %v634 = vpop.permute.xlu0 %633
      %635 = vrot.lane.b32.xlu0 %v593, 4
      %v636 = vpop.permute.xlu0 %635
      %637 = vrot.lane.b32.xlu0 %v594, 4
      %v638 = vpop.permute.xlu0 %637
      %639 = vrot.lane.b32.xlu0 %v595, 4
      %v640 = vpop.permute.xlu0 %639
      %641 = vrot.lane.b32.xlu0 %v596, 4
      %v642 = vpop.permute.xlu0 %641
      %643 = vrot.lane.b32.xlu0 %v597, 4
      %v644 = vpop.permute.xlu0 %643
      %645 = vrot.lane.b32.xlu0 %v598, 4
      %v646 = vpop.permute.xlu0 %645
      %vm663 = vcmask 64544
      %664 = vst.msk [vmem:[#allocation4] sm:$0xff] %vm663, %v616
      %665 = vst.msk [vmem:[#allocation4 + $0x8] sm:$0xff] %vm663, %v618
      %666 = vst.msk [vmem:[#allocation4 + $0x10] sm:$0xff] %vm663, %v620
      %667 = vst.msk [vmem:[#allocation4 + $0x18] sm:$0xff] %vm663, %v622
      %668 = vst.msk [vmem:[#allocation4 + $0x20] sm:$0xff] %vm663, %v624
      %669 = vst.msk [vmem:[#allocation4 + $0x28] sm:$0xff] %vm663, %v626
      %670 = vst.msk [vmem:[#allocation4 + $0x30] sm:$0xff] %vm663, %v628
      %671 = vst.msk [vmem:[#allocation4 + $0x38] sm:$0xff] %vm663, %v630
      %672 = vst.msk [vmem:[#allocation4 + $0x40] sm:$0xff] %vm663, %v632
      %673 = vst.msk [vmem:[#allocation4 + $0x48] sm:$0xff] %vm663, %v634
      %674 = vst.msk [vmem:[#allocation4 + $0x50] sm:$0xff] %vm663, %v636
      %675 = vst.msk [vmem:[#allocation4 + $0x58] sm:$0xff] %vm663, %v638
      %676 = vst.msk [vmem:[#allocation4 + $0x60] sm:$0xff] %vm663, %v640
      %677 = vst.msk [vmem:[#allocation4 + $0x68] sm:$0xff] %vm663, %v642
      %678 = vst.msk [vmem:[#allocation4 + $0x70] sm:$0xff] %vm663, %v644
      %679 = vst.msk [vmem:[#allocation4 + $0x78] sm:$0xff] %vm663, %v646
      %v680 = vld [vmem:[#allocation2 + $0x2] sm:$0xff]
      %v681 = vld [vmem:[#allocation2 + $0xa] sm:$0xff]
      %v682 = vld [vmem:[#allocation2 + $0x1a] sm:$0xff]
      %v683 = vld [vmem:[#allocation2 + $0x22] sm:$0xff]
      %v684 = vld [vmem:[#allocation2 + $0x32] sm:$0xff]
      %v685 = vld [vmem:[#allocation2 + $0x3a] sm:$0xff]
      %v686 = vld [vmem:[#allocation2 + $0x4a] sm:$0xff]
      %v687 = vld [vmem:[#allocation2 + $0x52] sm:$0xff]
      %v688 = vld [vmem:[#allocation2 + $0x62] sm:$0xff]
      %v689 = vld [vmem:[#allocation2 + $0x6a] sm:$0xff]
      %v690 = vld [vmem:[#allocation2 + $0x7a] sm:$0xff]
      %v691 = vld [vmem:[#allocation2 + $0x82] sm:$0xff]
      %v692 = vld [vmem:[#allocation2 + $0x92] sm:$0xff]
      %v693 = vld [vmem:[#allocation2 + $0x9a] sm:$0xff]
      %v694 = vld [vmem:[#allocation2 + $0xaa] sm:$0xff]
      %v695 = vld [vmem:[#allocation2 + $0xb2] sm:$0xff]
      %v696 = vld [vmem:[#allocation2 + $0xc2] sm:$0xff]
      %v697 = vld [vmem:[#allocation2 + $0xca] sm:$0xff]
      %v698 = vld [vmem:[#allocation2 + $0xda] sm:$0xff]
      %v699 = vld [vmem:[#allocation2 + $0xe2] sm:$0xff]
      %v700 = vld [vmem:[#allocation2 + $0xf2] sm:$0xff]
      %v701 = vld [vmem:[#allocation2 + $0xfa] sm:$0xff]
      %v702 = vld [vmem:[#allocation2 + $0x10a] sm:$0xff]
      %v703 = vld [vmem:[#allocation2 + $0x112] sm:$0xff]
      %v704 = vld [vmem:[#allocation2 + $0x122] sm:$0xff]
      %v705 = vld [vmem:[#allocation2 + $0x12a] sm:$0xff]
      %v706 = vld [vmem:[#allocation2 + $0x13a] sm:$0xff]
      %v707 = vld [vmem:[#allocation2 + $0x142] sm:$0xff]
      %v708 = vld [vmem:[#allocation2 + $0x152] sm:$0xff]
      %v709 = vld [vmem:[#allocation2 + $0x15a] sm:$0xff]
      %v710 = vld [vmem:[#allocation2 + $0x16a] sm:$0xff]
      %v711 = vld [vmem:[#allocation2 + $0x172] sm:$0xff]
      %v712 = vpack.c.bf16 %v681, %v680
      %v713 = vpack.c.bf16 %v683, %v682
      %v714 = vpack.c.bf16 %v685, %v684
      %v715 = vpack.c.bf16 %v687, %v686
      %v716 = vpack.c.bf16 %v689, %v688
      %v717 = vpack.c.bf16 %v691, %v690
      %v718 = vpack.c.bf16 %v693, %v692
      %v719 = vpack.c.bf16 %v695, %v694
      %v720 = vpack.c.bf16 %v697, %v696
      %v721 = vpack.c.bf16 %v699, %v698
      %v722 = vpack.c.bf16 %v701, %v700
      %v723 = vpack.c.bf16 %v703, %v702
      %v724 = vpack.c.bf16 %v705, %v704
      %v725 = vpack.c.bf16 %v707, %v706
      %v726 = vpack.c.bf16 %v709, %v708
      %v727 = vpack.c.bf16 %v711, %v710
      %744 = vrot.lane.b32.xlu0 %v712, 8
      %v745 = vpop.permute.xlu0 %744
      %746 = vrot.lane.b32.xlu0 %v713, 8
      %v747 = vpop.permute.xlu0 %746
      %748 = vrot.lane.b32.xlu0 %v714, 8
      %v749 = vpop.permute.xlu0 %748
      %750 = vrot.lane.b32.xlu0 %v715, 8
      %v751 = vpop.permute.xlu0 %750
      %752 = vrot.lane.b32.xlu0 %v716, 8
      %v753 = vpop.permute.xlu0 %752
      %754 = vrot.lane.b32.xlu0 %v717, 8
      %v755 = vpop.permute.xlu0 %754
      %756 = vrot.lane.b32.xlu0 %v718, 8
      %v757 = vpop.permute.xlu0 %756
      %758 = vrot.lane.b32.xlu0 %v719, 8
      %v759 = vpop.permute.xlu0 %758
      %760 = vrot.lane.b32.xlu0 %v720, 8
      %v761 = vpop.permute.xlu0 %760
      %762 = vrot.lane.b32.xlu0 %v721, 8
      %v763 = vpop.permute.xlu0 %762
      %764 = vrot.lane.b32.xlu0 %v722, 8
      %v765 = vpop.permute.xlu0 %764
      %766 = vrot.lane.b32.xlu0 %v723, 8
      %v767 = vpop.permute.xlu0 %766
      %768 = vrot.lane.b32.xlu0 %v724, 8
      %v769 = vpop.permute.xlu0 %768
      %770 = vrot.lane.b32.xlu0 %v725, 8
      %v771 = vpop.permute.xlu0 %770
      %772 = vrot.lane.b32.xlu0 %v726, 8
      %v773 = vpop.permute.xlu0 %772
      %774 = vrot.lane.b32.xlu0 %v727, 8
      %v775 = vpop.permute.xlu0 %774
      %vm792 = vcmask 97344
      %793 = vst.msk [vmem:[#allocation4] sm:$0xff] %vm792, %v745
      %794 = vst.msk [vmem:[#allocation4 + $0x8] sm:$0xff] %vm792, %v747
      %795 = vst.msk [vmem:[#allocation4 + $0x10] sm:$0xff] %vm792, %v749
      %796 = vst.msk [vmem:[#allocation4 + $0x18] sm:$0xff] %vm792, %v751
      %797 = vst.msk [vmem:[#allocation4 + $0x20] sm:$0xff] %vm792, %v753
      %798 = vst.msk [vmem:[#allocation4 + $0x28] sm:$0xff] %vm792, %v755
      %799 = vst.msk [vmem:[#allocation4 + $0x30] sm:$0xff] %vm792, %v757
      %800 = vst.msk [vmem:[#allocation4 + $0x38] sm:$0xff] %vm792, %v759
      %801 = vst.msk [vmem:[#allocation4 + $0x40] sm:$0xff] %vm792, %v761
      %802 = vst.msk [vmem:[#allocation4 + $0x48] sm:$0xff] %vm792, %v763
      %803 = vst.msk [vmem:[#allocation4 + $0x50] sm:$0xff] %vm792, %v765
      %804 = vst.msk [vmem:[#allocation4 + $0x58] sm:$0xff] %vm792, %v767
      %805 = vst.msk [vmem:[#allocation4 + $0x60] sm:$0xff] %vm792, %v769
      %806 = vst.msk [vmem:[#allocation4 + $0x68] sm:$0xff] %vm792, %v771
      %807 = vst.msk [vmem:[#allocation4 + $0x70] sm:$0xff] %vm792, %v773
      %808 = vst.msk [vmem:[#allocation4 + $0x78] sm:$0xff] %vm792, %v775
      %v809 = vld [vmem:[%s454] sm:$0xff]
      %v810 = vld [vmem:[%s454 + $0x8] sm:$0xff]
      %v811 = vld [vmem:[%s454 + $0x18] sm:$0xff]
      %v812 = vld [vmem:[%s454 + $0x20] sm:$0xff]
      %v813 = vld [vmem:[%s454 + $0x30] sm:$0xff]
      %v814 = vld [vmem:[%s454 + $0x38] sm:$0xff]
      %v815 = vld [vmem:[%s454 + $0x48] sm:$0xff]
      %v816 = vld [vmem:[%s454 + $0x50] sm:$0xff]
      %v817 = vld [vmem:[%s454 + $0x60] sm:$0xff]
      %v818 = vld [vmem:[%s454 + $0x68] sm:$0xff]
      %v819 = vld [vmem:[%s454 + $0x78] sm:$0xff]
      %v820 = vld [vmem:[%s454 + $0x80] sm:$0xff]
      %v821 = vld [vmem:[%s454 + $0x90] sm:$0xff]
      %v822 = vld [vmem:[%s454 + $0x98] sm:$0xff]
      %v823 = vld [vmem:[%s454 + $0xa8] sm:$0xff]
      %v824 = vld [vmem:[%s454 + $0xb0] sm:$0xff]
      %v825 = vld [vmem:[%s454 + $0xc0] sm:$0xff]
      %v826 = vld [vmem:[%s454 + $0xc8] sm:$0xff]
      %v827 = vld [vmem:[%s454 + $0xd8] sm:$0xff]
      %v828 = vld [vmem:[%s454 + $0xe0] sm:$0xff]
      %v829 = vld [vmem:[%s454 + $0xf0] sm:$0xff]
      %v830 = vld [vmem:[%s454 + $0xf8] sm:$0xff]
      %v831 = vld [vmem:[%s454 + $0x108] sm:$0xff]
      %v832 = vld [vmem:[%s454 + $0x110] sm:$0xff]
      %v833 = vld [vmem:[%s454 + $0x120] sm:$0xff]
      %v834 = vld [vmem:[%s454 + $0x128] sm:$0xff]
      %v835 = vld [vmem:[%s454 + $0x138] sm:$0xff]
      %v836 = vld [vmem:[%s454 + $0x140] sm:$0xff]
      %v837 = vld [vmem:[%s454 + $0x150] sm:$0xff]
      %v838 = vld [vmem:[%s454 + $0x158] sm:$0xff]
      %v839 = vld [vmem:[%s454 + $0x168] sm:$0xff]
      %v840 = vld [vmem:[%s454 + $0x170] sm:$0xff]
      %v841 = vpack.c.bf16 %v810, %v809
      %v842 = vpack.c.bf16 %v812, %v811
      %v843 = vpack.c.bf16 %v814, %v813
      %v844 = vpack.c.bf16 %v816, %v815
      %v845 = vpack.c.bf16 %v818, %v817
      %v846 = vpack.c.bf16 %v820, %v819
      %v847 = vpack.c.bf16 %v822, %v821
      %v848 = vpack.c.bf16 %v824, %v823
      %v849 = vpack.c.bf16 %v826, %v825
      %v850 = vpack.c.bf16 %v828, %v827
      %v851 = vpack.c.bf16 %v830, %v829
      %v852 = vpack.c.bf16 %v832, %v831
      %v853 = vpack.c.bf16 %v834, %v833
      %v854 = vpack.c.bf16 %v836, %v835
      %v855 = vpack.c.bf16 %v838, %v837
      %v856 = vpack.c.bf16 %v840, %v839
      %873 = vrot.lane.b32.xlu0 %v841, 12
      %v874 = vpop.permute.xlu0 %873
      %875 = vrot.lane.b32.xlu0 %v842, 12
      %v876 = vpop.permute.xlu0 %875
      %877 = vrot.lane.b32.xlu0 %v843, 12
      %v878 = vpop.permute.xlu0 %877
      %879 = vrot.lane.b32.xlu0 %v844, 12
      %v880 = vpop.permute.xlu0 %879
      %881 = vrot.lane.b32.xlu0 %v845, 12
      %v882 = vpop.permute.xlu0 %881
      %883 = vrot.lane.b32.xlu0 %v846, 12
      %v884 = vpop.permute.xlu0 %883
      %885 = vrot.lane.b32.xlu0 %v847, 12
      %v886 = vpop.permute.xlu0 %885
      %887 = vrot.lane.b32.xlu0 %v848, 12
      %v888 = vpop.permute.xlu0 %887
      %889 = vrot.lane.b32.xlu0 %v849, 12
      %v890 = vpop.permute.xlu0 %889
      %891 = vrot.lane.b32.xlu0 %v850, 12
      %v892 = vpop.permute.xlu0 %891
      %893 = vrot.lane.b32.xlu0 %v851, 12
      %v894 = vpop.permute.xlu0 %893
      %895 = vrot.lane.b32.xlu0 %v852, 12
      %v896 = vpop.permute.xlu0 %895
      %897 = vrot.lane.b32.xlu0 %v853, 12
      %v898 = vpop.permute.xlu0 %897
      %899 = vrot.lane.b32.xlu0 %v854, 12
      %v900 = vpop.permute.xlu0 %899
      %901 = vrot.lane.b32.xlu0 %v855, 12
      %v902 = vpop.permute.xlu0 %901
      %903 = vrot.lane.b32.xlu0 %v856, 12
      %v904 = vpop.permute.xlu0 %903
      %vm921 = vcmask 130144
      %922 = vst.msk [vmem:[#allocation4] sm:$0xff] %vm921, %v874
      %923 = vst.msk [vmem:[#allocation4 + $0x8] sm:$0xff] %vm921, %v876
      %924 = vst.msk [vmem:[#allocation4 + $0x10] sm:$0xff] %vm921, %v878
      %925 = vst.msk [vmem:[#allocation4 + $0x18] sm:$0xff] %vm921, %v880
      %926 = vst.msk [vmem:[#allocation4 + $0x20] sm:$0xff] %vm921, %v882
      %927 = vst.msk [vmem:[#allocation4 + $0x28] sm:$0xff] %vm921, %v884
      %928 = vst.msk [vmem:[#allocation4 + $0x30] sm:$0xff] %vm921, %v886
      %929 = vst.msk [vmem:[#allocation4 + $0x38] sm:$0xff] %vm921, %v888
      %930 = vst.msk [vmem:[#allocation4 + $0x40] sm:$0xff] %vm921, %v890
      %931 = vst.msk [vmem:[#allocation4 + $0x48] sm:$0xff] %vm921, %v892
      %932 = vst.msk [vmem:[#allocation4 + $0x50] sm:$0xff] %vm921, %v894
      %933 = vst.msk [vmem:[#allocation4 + $0x58] sm:$0xff] %vm921, %v896
      %934 = vst.msk [vmem:[#allocation4 + $0x60] sm:$0xff] %vm921, %v898
      %935 = vst.msk [vmem:[#allocation4 + $0x68] sm:$0xff] %vm921, %v900
      %936 = vst.msk [vmem:[#allocation4 + $0x70] sm:$0xff] %vm921, %v902
      %937 = vst.msk [vmem:[#allocation4 + $0x78] sm:$0xff] %vm921, %v904
      %v938 = vld [vmem:[%s454 + $0x1] sm:$0xff]
      %v939 = vld [vmem:[%s454 + $0x9] sm:$0xff]
      %v940 = vld [vmem:[%s454 + $0x19] sm:$0xff]
      %v941 = vld [vmem:[%s454 + $0x21] sm:$0xff]
      %v942 = vld [vmem:[%s454 + $0x31] sm:$0xff]
      %v943 = vld [vmem:[%s454 + $0x39] sm:$0xff]
      %v944 = vld [vmem:[%s454 + $0x49] sm:$0xff]
      %v945 = vld [vmem:[%s454 + $0x51] sm:$0xff]
      %v946 = vld [vmem:[%s454 + $0x61] sm:$0xff]
      %v947 = vld [vmem:[%s454 + $0x69] sm:$0xff]
      %v948 = vld [vmem:[%s454 + $0x79] sm:$0xff]
      %v949 = vld [vmem:[%s454 + $0x81] sm:$0xff]
      %v950 = vld [vmem:[%s454 + $0x91] sm:$0xff]
      %v951 = vld [vmem:[%s454 + $0x99] sm:$0xff]
      %v952 = vld [vmem:[%s454 + $0xa9] sm:$0xff]
      %v953 = vld [vmem:[%s454 + $0xb1] sm:$0xff]
      %v954 = vld [vmem:[%s454 + $0xc1] sm:$0xff]
      %v955 = vld [vmem:[%s454 + $0xc9] sm:$0xff]
      %v956 = vld [vmem:[%s454 + $0xd9] sm:$0xff]
      %v957 = vld [vmem:[%s454 + $0xe1] sm:$0xff]
      %v958 = vld [vmem:[%s454 + $0xf1] sm:$0xff]
      %v959 = vld [vmem:[%s454 + $0xf9] sm:$0xff]
      %v960 = vld [vmem:[%s454 + $0x109] sm:$0xff]
      %v961 = vld [vmem:[%s454 + $0x111] sm:$0xff]
      %v962 = vld [vmem:[%s454 + $0x121] sm:$0xff]
      %v963 = vld [vmem:[%s454 + $0x129] sm:$0xff]
      %v964 = vld [vmem:[%s454 + $0x139] sm:$0xff]
      %v965 = vld [vmem:[%s454 + $0x141] sm:$0xff]
      %v966 = vld [vmem:[%s454 + $0x151] sm:$0xff]
      %v967 = vld [vmem:[%s454 + $0x159] sm:$0xff]
      %v968 = vld [vmem:[%s454 + $0x169] sm:$0xff]
      %v969 = vld [vmem:[%s454 + $0x171] sm:$0xff]
      %v970 = vpack.c.bf16 %v939, %v938
      %v971 = vpack.c.bf16 %v941, %v940
      %v972 = vpack.c.bf16 %v943, %v942
      %v973 = vpack.c.bf16 %v945, %v944
      %v974 = vpack.c.bf16 %v947, %v946
      %v975 = vpack.c.bf16 %v949, %v948
      %v976 = vpack.c.bf16 %v951, %v950
      %v977 = vpack.c.bf16 %v953, %v952
      %v978 = vpack.c.bf16 %v955, %v954
      %v979 = vpack.c.bf16 %v957, %v956
      %v980 = vpack.c.bf16 %v959, %v958
      %v981 = vpack.c.bf16 %v961, %v960
      %v982 = vpack.c.bf16 %v963, %v962
      %v983 = vpack.c.bf16 %v965, %v964
      %v984 = vpack.c.bf16 %v967, %v966
      %v985 = vpack.c.bf16 %v969, %v968
      %1002 = vrot.lane.b32.xlu0 %v970, 16
      %v1003 = vpop.permute.xlu0 %1002
      %1004 = vrot.lane.b32.xlu0 %v971, 16
      %v1005 = vpop.permute.xlu0 %1004
      %1006 = vrot.lane.b32.xlu0 %v972, 16
      %v1007 = vpop.permute.xlu0 %1006
      %1008 = vrot.lane.b32.xlu0 %v973, 16
      %v1009 = vpop.permute.xlu0 %1008
      %1010 = vrot.lane.b32.xlu0 %v974, 16
      %v1011 = vpop.permute.xlu0 %1010
      %1012 = vrot.lane.b32.xlu0 %v975, 16
      %v1013 = vpop.permute.xlu0 %1012
      %1014 = vrot.lane.b32.xlu0 %v976, 16
      %v1015 = vpop.permute.xlu0 %1014
      %1016 = vrot.lane.b32.xlu0 %v977, 16
      %v1017 = vpop.permute.xlu0 %1016
      %1018 = vrot.lane.b32.xlu0 %v978, 16
      %v1019 = vpop.permute.xlu0 %1018
      %1020 = vrot.lane.b32.xlu0 %v979, 16
      %v1021 = vpop.permute.xlu0 %1020
      %1022 = vrot.lane.b32.xlu0 %v980, 16
      %v1023 = vpop.permute.xlu0 %1022
      %1024 = vrot.lane.b32.xlu0 %v981, 16
      %v1025 = vpop.permute.xlu0 %1024
      %1026 = vrot.lane.b32.xlu0 %v982, 16
      %v1027 = vpop.permute.xlu0 %1026
      %1028 = vrot.lane.b32.xlu0 %v983, 16
      %v1029 = vpop.permute.xlu0 %1028
      %1030 = vrot.lane.b32.xlu0 %v984, 16
      %v1031 = vpop.permute.xlu0 %1030
      %1032 = vrot.lane.b32.xlu0 %v985, 16
      %v1033 = vpop.permute.xlu0 %1032
      %vm1050 = vcmask 162944
      %1051 = vst.msk [vmem:[#allocation4] sm:$0xff] %vm1050, %v1003
      %1052 = vst.msk [vmem:[#allocation4 + $0x8] sm:$0xff] %vm1050, %v1005
      %1053 = vst.msk [vmem:[#allocation4 + $0x10] sm:$0xff] %vm1050, %v1007
      %1054 = vst.msk [vmem:[#allocation4 + $0x18] sm:$0xff] %vm1050, %v1009
      %1055 = vst.msk [vmem:[#allocation4 + $0x20] sm:$0xff] %vm1050, %v1011
      %1056 = vst.msk [vmem:[#allocation4 + $0x28] sm:$0xff] %vm1050, %v1013
      %1057 = vst.msk [vmem:[#allocation4 + $0x30] sm:$0xff] %vm1050, %v1015
      %1058 = vst.msk [vmem:[#allocation4 + $0x38] sm:$0xff] %vm1050, %v1017
      %1059 = vst.msk [vmem:[#allocation4 + $0x40] sm:$0xff] %vm1050, %v1019
      %1060 = vst.msk [vmem:[#allocation4 + $0x48] sm:$0xff] %vm1050, %v1021
      %1061 = vst.msk [vmem:[#allocation4 + $0x50] sm:$0xff] %vm1050, %v1023
      %1062 = vst.msk [vmem:[#allocation4 + $0x58] sm:$0xff] %vm1050, %v1025
      %1063 = vst.msk [vmem:[#allocation4 + $0x60] sm:$0xff] %vm1050, %v1027
      %1064 = vst.msk [vmem:[#allocation4 + $0x68] sm:$0xff] %vm1050, %v1029
      %1065 = vst.msk [vmem:[#allocation4 + $0x70] sm:$0xff] %vm1050, %v1031
      %1066 = vst.msk [vmem:[#allocation4 + $0x78] sm:$0xff] %vm1050, %v1033
      %v1067 = vld [vmem:[%s454 + $0x2] sm:$0xff]
      %v1068 = vld [vmem:[%s454 + $0xa] sm:$0xff]
      %v1069 = vld [vmem:[%s454 + $0x1a] sm:$0xff]
      %v1070 = vld [vmem:[%s454 + $0x22] sm:$0xff]
      %v1071 = vld [vmem:[%s454 + $0x32] sm:$0xff]
      %v1072 = vld [vmem:[%s454 + $0x3a] sm:$0xff]
      %v1073 = vld [vmem:[%s454 + $0x4a] sm:$0xff]
      %v1074 = vld [vmem:[%s454 + $0x52] sm:$0xff]
      %v1075 = vld [vmem:[%s454 + $0x62] sm:$0xff]
      %v1076 = vld [vmem:[%s454 + $0x6a] sm:$0xff]
      %v1077 = vld [vmem:[%s454 + $0x7a] sm:$0xff]
      %v1078 = vld [vmem:[%s454 + $0x82] sm:$0xff]
      %v1079 = vld [vmem:[%s454 + $0x92] sm:$0xff]
      %v1080 = vld [vmem:[%s454 + $0x9a] sm:$0xff]
      %v1081 = vld [vmem:[%s454 + $0xaa] sm:$0xff]
      %v1082 = vld [vmem:[%s454 + $0xb2] sm:$0xff]
      %v1083 = vld [vmem:[%s454 + $0xc2] sm:$0xff]
      %v1084 = vld [vmem:[%s454 + $0xca] sm:$0xff]
      %v1085 = vld [vmem:[%s454 + $0xda] sm:$0xff]
      %v1086 = vld [vmem:[%s454 + $0xe2] sm:$0xff]
      %v1087 = vld [vmem:[%s454 + $0xf2] sm:$0xff]
      %v1088 = vld [vmem:[%s454 + $0xfa] sm:$0xff]
      %v1089 = vld [vmem:[%s454 + $0x10a] sm:$0xff]
      %v1090 = vld [vmem:[%s454 + $0x112] sm:$0xff]
      %v1091 = vld [vmem:[%s454 + $0x122] sm:$0xff]
      %v1092 = vld [vmem:[%s454 + $0x12a] sm:$0xff]
      %v1093 = vld [vmem:[%s454 + $0x13a] sm:$0xff]
      %v1094 = vld [vmem:[%s454 + $0x142] sm:$0xff]
      %v1095 = vld [vmem:[%s454 + $0x152] sm:$0xff]
      %v1096 = vld [vmem:[%s454 + $0x15a] sm:$0xff]
      %v1097 = vld [vmem:[%s454 + $0x16a] sm:$0xff]
      %v1098 = vld [vmem:[%s454 + $0x172] sm:$0xff]
      %v1099 = vpack.c.bf16 %v1068, %v1067
      %v1100 = vpack.c.bf16 %v1070, %v1069
      %v1101 = vpack.c.bf16 %v1072, %v1071
      %v1102 = vpack.c.bf16 %v1074, %v1073
      %v1103 = vpack.c.bf16 %v1076, %v1075
      %v1104 = vpack.c.bf16 %v1078, %v1077
      %v1105 = vpack.c.bf16 %v1080, %v1079
      %v1106 = vpack.c.bf16 %v1082, %v1081
      %v1107 = vpack.c.bf16 %v1084, %v1083
      %v1108 = vpack.c.bf16 %v1086, %v1085
      %v1109 = vpack.c.bf16 %v1088, %v1087
      %v1110 = vpack.c.bf16 %v1090, %v1089
      %v1111 = vpack.c.bf16 %v1092, %v1091
      %v1112 = vpack.c.bf16 %v1094, %v1093
      %v1113 = vpack.c.bf16 %v1096, %v1095
      %v1114 = vpack.c.bf16 %v1098, %v1097
      %1131 = vrot.lane.b32.xlu0 %v1099, 20
      %v1132 = vpop.permute.xlu0 %1131
      %1133 = vrot.lane.b32.xlu0 %v1100, 20
      %v1134 = vpop.permute.xlu0 %1133
      %1135 = vrot.lane.b32.xlu0 %v1101, 20
      %v1136 = vpop.permute.xlu0 %1135
      %1137 = vrot.lane.b32.xlu0 %v1102, 20
      %v1138 = vpop.permute.xlu0 %1137
      %1139 = vrot.lane.b32.xlu0 %v1103, 20
      %v1140 = vpop.permute.xlu0 %1139
      %1141 = vrot.lane.b32.xlu0 %v1104, 20
      %v1142 = vpop.permute.xlu0 %1141
      %1143 = vrot.lane.b32.xlu0 %v1105, 20
      %v1144 = vpop.permute.xlu0 %1143
      %1145 = vrot.lane.b32.xlu0 %v1106, 20
      %v1146 = vpop.permute.xlu0 %1145
      %1147 = vrot.lane.b32.xlu0 %v1107, 20
      %v1148 = vpop.permute.xlu0 %1147
      %1149 = vrot.lane.b32.xlu0 %v1108, 20
      %v1150 = vpop.permute.xlu0 %1149
      %1151 = vrot.lane.b32.xlu0 %v1109, 20
      %v1152 = vpop.permute.xlu0 %1151
      %1153 = vrot.lane.b32.xlu0 %v1110, 20
      %v1154 = vpop.permute.xlu0 %1153
      %1155 = vrot.lane.b32.xlu0 %v1111, 20
      %v1156 = vpop.permute.xlu0 %1155
      %1157 = vrot.lane.b32.xlu0 %v1112, 20
      %v1158 = vpop.permute.xlu0 %1157
      %1159 = vrot.lane.b32.xlu0 %v1113, 20
      %v1160 = vpop.permute.xlu0 %1159
      %1161 = vrot.lane.b32.xlu0 %v1114, 20
      %v1162 = vpop.permute.xlu0 %1161
      %vm1179 = vcmask 195744
      %1180 = vst.msk [vmem:[#allocation4] sm:$0xff] %vm1179, %v1132
      %1181 = vst.msk [vmem:[#allocation4 + $0x8] sm:$0xff] %vm1179, %v1134
      %1182 = vst.msk [vmem:[#allocation4 + $0x10] sm:$0xff] %vm1179, %v1136
      %1183 = vst.msk [vmem:[#allocation4 + $0x18] sm:$0xff] %vm1179, %v1138
      %1184 = vst.msk [vmem:[#allocation4 + $0x20] sm:$0xff] %vm1179, %v1140
      %1185 = vst.msk [vmem:[#allocation4 + $0x28] sm:$0xff] %vm1179, %v1142
      %1186 = vst.msk [vmem:[#allocation4 + $0x30] sm:$0xff] %vm1179, %v1144
      %1187 = vst.msk [vmem:[#allocation4 + $0x38] sm:$0xff] %vm1179, %v1146
      %1188 = vst.msk [vmem:[#allocation4 + $0x40] sm:$0xff] %vm1179, %v1148
      %1189 = vst.msk [vmem:[#allocation4 + $0x48] sm:$0xff] %vm1179, %v1150
      %1190 = vst.msk [vmem:[#allocation4 + $0x50] sm:$0xff] %vm1179, %v1152
      %1191 = vst.msk [vmem:[#allocation4 + $0x58] sm:$0xff] %vm1179, %v1154
      %1192 = vst.msk [vmem:[#allocation4 + $0x60] sm:$0xff] %vm1179, %v1156
      %1193 = vst.msk [vmem:[#allocation4 + $0x68] sm:$0xff] %vm1179, %v1158
      %1194 = vst.msk [vmem:[#allocation4 + $0x70] sm:$0xff] %vm1179, %v1160
      %1195 = vst.msk [vmem:[#allocation4 + $0x78] sm:$0xff] %vm1179, %v1162
      %s1196 = scalar_lea.vmem [#allocation2], 48
      %v1197 = vld [vmem:[%s1196] sm:$0xff]
      %v1198 = vld [vmem:[%s1196 + $0x8] sm:$0xff]
      %v1199 = vld [vmem:[%s1196 + $0x18] sm:$0xff]
      %v1200 = vld [vmem:[%s1196 + $0x20] sm:$0xff]
      %v1201 = vld [vmem:[%s1196 + $0x30] sm:$0xff]
      %v1202 = vld [vmem:[%s1196 + $0x38] sm:$0xff]
      %v1203 = vld [vmem:[%s1196 + $0x48] sm:$0xff]
      %v1204 = vld [vmem:[%s1196 + $0x50] sm:$0xff]
      %v1205 = vld [vmem:[%s1196 + $0x60] sm:$0xff]
      %v1206 = vld [vmem:[%s1196 + $0x68] sm:$0xff]
      %v1207 = vld [vmem:[%s1196 + $0x78] sm:$0xff]
      %v1208 = vld [vmem:[%s1196 + $0x80] sm:$0xff]
      %v1209 = vld [vmem:[%s1196 + $0x90] sm:$0xff]
      %v1210 = vld [vmem:[%s1196 + $0x98] sm:$0xff]
      %v1211 = vld [vmem:[%s1196 + $0xa8] sm:$0xff]
      %v1212 = vld [vmem:[%s1196 + $0xb0] sm:$0xff]
      %v1213 = vld [vmem:[%s1196 + $0xc0] sm:$0xff]
      %v1214 = vld [vmem:[%s1196 + $0xc8] sm:$0xff]
      %v1215 = vld [vmem:[%s1196 + $0xd8] sm:$0xff]
      %v1216 = vld [vmem:[%s1196 + $0xe0] sm:$0xff]
      %v1217 = vld [vmem:[%s1196 + $0xf0] sm:$0xff]
      %v1218 = vld [vmem:[%s1196 + $0xf8] sm:$0xff]
      %v1219 = vld [vmem:[%s1196 + $0x108] sm:$0xff]
      %v1220 = vld [vmem:[%s1196 + $0x110] sm:$0xff]
      %v1221 = vld [vmem:[%s1196 + $0x120] sm:$0xff]
      %v1222 = vld [vmem:[%s1196 + $0x128] sm:$0xff]
      %v1223 = vld [vmem:[%s1196 + $0x138] sm:$0xff]
      %v1224 = vld [vmem:[%s1196 + $0x140] sm:$0xff]
      %v1225 = vld [vmem:[%s1196 + $0x150] sm:$0xff]
      %v1226 = vld [vmem:[%s1196 + $0x158] sm:$0xff]
      %v1227 = vld [vmem:[%s1196 + $0x168] sm:$0xff]
      %v1228 = vld [vmem:[%s1196 + $0x170] sm:$0xff]
      %v1229 = vpack.c.bf16 %v1198, %v1197
      %v1230 = vpack.c.bf16 %v1200, %v1199
      %v1231 = vpack.c.bf16 %v1202, %v1201
      %v1232 = vpack.c.bf16 %v1204, %v1203
      %v1233 = vpack.c.bf16 %v1206, %v1205
      %v1234 = vpack.c.bf16 %v1208, %v1207
      %v1235 = vpack.c.bf16 %v1210, %v1209
      %v1236 = vpack.c.bf16 %v1212, %v1211
      %v1237 = vpack.c.bf16 %v1214, %v1213
      %v1238 = vpack.c.bf16 %v1216, %v1215
      %v1239 = vpack.c.bf16 %v1218, %v1217
      %v1240 = vpack.c.bf16 %v1220, %v1219
      %v1241 = vpack.c.bf16 %v1222, %v1221
      %v1242 = vpack.c.bf16 %v1224, %v1223
      %v1243 = vpack.c.bf16 %v1226, %v1225
      %v1244 = vpack.c.bf16 %v1228, %v1227
      %1261 = vrot.lane.b32.xlu0 %v1229, 24
      %v1262 = vpop.permute.xlu0 %1261
      %1263 = vrot.lane.b32.xlu0 %v1230, 24
      %v1264 = vpop.permute.xlu0 %1263
      %1265 = vrot.lane.b32.xlu0 %v1231, 24
      %v1266 = vpop.permute.xlu0 %1265
      %1267 = vrot.lane.b32.xlu0 %v1232, 24
      %v1268 = vpop.permute.xlu0 %1267
      %1269 = vrot.lane.b32.xlu0 %v1233, 24
      %v1270 = vpop.permute.xlu0 %1269
      %1271 = vrot.lane.b32.xlu0 %v1234, 24
      %v1272 = vpop.permute.xlu0 %1271
      %1273 = vrot.lane.b32.xlu0 %v1235, 24
      %v1274 = vpop.permute.xlu0 %1273
      %1275 = vrot.lane.b32.xlu0 %v1236, 24
      %v1276 = vpop.permute.xlu0 %1275
      %1277 = vrot.lane.b32.xlu0 %v1237, 24
      %v1278 = vpop.permute.xlu0 %1277
      %1279 = vrot.lane.b32.xlu0 %v1238, 24
      %v1280 = vpop.permute.xlu0 %1279
      %1281 = vrot.lane.b32.xlu0 %v1239, 24
      %v1282 = vpop.permute.xlu0 %1281
      %1283 = vrot.lane.b32.xlu0 %v1240, 24
      %v1284 = vpop.permute.xlu0 %1283
      %1285 = vrot.lane.b32.xlu0 %v1241, 24
      %v1286 = vpop.permute.xlu0 %1285
      %1287 = vrot.lane.b32.xlu0 %v1242, 24
      %v1288 = vpop.permute.xlu0 %1287
      %1289 = vrot.lane.b32.xlu0 %v1243, 24
      %v1290 = vpop.permute.xlu0 %1289
      %1291 = vrot.lane.b32.xlu0 %v1244, 24
      %v1292 = vpop.permute.xlu0 %1291
      %vm1309 = vcmask 228544
      %1310 = vst.msk [vmem:[#allocation4] sm:$0xff] %vm1309, %v1262
      %1311 = vst.msk [vmem:[#allocation4 + $0x8] sm:$0xff] %vm1309, %v1264
      %1312 = vst.msk [vmem:[#allocation4 + $0x10] sm:$0xff] %vm1309, %v1266
      %1313 = vst.msk [vmem:[#allocation4 + $0x18] sm:$0xff] %vm1309, %v1268
      %1314 = vst.msk [vmem:[#allocation4 + $0x20] sm:$0xff] %vm1309, %v1270
      %1315 = vst.msk [vmem:[#allocation4 + $0x28] sm:$0xff] %vm1309, %v1272
      %1316 = vst.msk [vmem:[#allocation4 + $0x30] sm:$0xff] %vm1309, %v1274
      %1317 = vst.msk [vmem:[#allocation4 + $0x38] sm:$0xff] %vm1309, %v1276
      %1318 = vst.msk [vmem:[#allocation4 + $0x40] sm:$0xff] %vm1309, %v1278
      %1319 = vst.msk [vmem:[#allocation4 + $0x48] sm:$0xff] %vm1309, %v1280
      %1320 = vst.msk [vmem:[#allocation4 + $0x50] sm:$0xff] %vm1309, %v1282
      %1321 = vst.msk [vmem:[#allocation4 + $0x58] sm:$0xff] %vm1309, %v1284
      %1322 = vst.msk [vmem:[#allocation4 + $0x60] sm:$0xff] %vm1309, %v1286
      %1323 = vst.msk [vmem:[#allocation4 + $0x68] sm:$0xff] %vm1309, %v1288
      %1324 = vst.msk [vmem:[#allocation4 + $0x70] sm:$0xff] %vm1309, %v1290
      %1325 = vst.msk [vmem:[#allocation4 + $0x78] sm:$0xff] %vm1309, %v1292
      %v1326 = vld [vmem:[%s1196 + $0x1] sm:$0xff]
      %v1327 = vld [vmem:[%s1196 + $0x9] sm:$0xff]
      %v1328 = vld [vmem:[%s1196 + $0x19] sm:$0xff]
      %v1329 = vld [vmem:[%s1196 + $0x21] sm:$0xff]
      %v1330 = vld [vmem:[%s1196 + $0x31] sm:$0xff]
      %v1331 = vld [vmem:[%s1196 + $0x39] sm:$0xff]
      %v1332 = vld [vmem:[%s1196 + $0x49] sm:$0xff]
      %v1333 = vld [vmem:[%s1196 + $0x51] sm:$0xff]
      %v1334 = vld [vmem:[%s1196 + $0x61] sm:$0xff]
      %v1335 = vld [vmem:[%s1196 + $0x69] sm:$0xff]
      %v1336 = vld [vmem:[%s1196 + $0x79] sm:$0xff]
      %v1337 = vld [vmem:[%s1196 + $0x81] sm:$0xff]
      %v1338 = vld [vmem:[%s1196 + $0x91] sm:$0xff]
      %v1339 = vld [vmem:[%s1196 + $0x99] sm:$0xff]
      %v1340 = vld [vmem:[%s1196 + $0xa9] sm:$0xff]
      %v1341 = vld [vmem:[%s1196 + $0xb1] sm:$0xff]
      %v1342 = vld [vmem:[%s1196 + $0xc1] sm:$0xff]
      %v1343 = vld [vmem:[%s1196 + $0xc9] sm:$0xff]
      %v1344 = vld [vmem:[%s1196 + $0xd9] sm:$0xff]
      %v1345 = vld [vmem:[%s1196 + $0xe1] sm:$0xff]
      %v1346 = vld [vmem:[%s1196 + $0xf1] sm:$0xff]
      %v1347 = vld [vmem:[%s1196 + $0xf9] sm:$0xff]
      %v1348 = vld [vmem:[%s1196 + $0x109] sm:$0xff]
      %v1349 = vld [vmem:[%s1196 + $0x111] sm:$0xff]
      %v1350 = vld [vmem:[%s1196 + $0x121] sm:$0xff]
      %v1351 = vld [vmem:[%s1196 + $0x129] sm:$0xff]
      %v1352 = vld [vmem:[%s1196 + $0x139] sm:$0xff]
      %v1353 = vld [vmem:[%s1196 + $0x141] sm:$0xff]
      %v1354 = vld [vmem:[%s1196 + $0x151] sm:$0xff]
      %v1355 = vld [vmem:[%s1196 + $0x159] sm:$0xff]
      %v1356 = vld [vmem:[%s1196 + $0x169] sm:$0xff]
      %v1357 = vld [vmem:[%s1196 + $0x171] sm:$0xff]
      %v1358 = vpack.c.bf16 %v1327, %v1326
      %v1359 = vpack.c.bf16 %v1329, %v1328
      %v1360 = vpack.c.bf16 %v1331, %v1330
      %v1361 = vpack.c.bf16 %v1333, %v1332
      %v1362 = vpack.c.bf16 %v1335, %v1334
      %v1363 = vpack.c.bf16 %v1337, %v1336
      %v1364 = vpack.c.bf16 %v1339, %v1338
      %v1365 = vpack.c.bf16 %v1341, %v1340
      %v1366 = vpack.c.bf16 %v1343, %v1342
      %v1367 = vpack.c.bf16 %v1345, %v1344
      %v1368 = vpack.c.bf16 %v1347, %v1346
      %v1369 = vpack.c.bf16 %v1349, %v1348
      %v1370 = vpack.c.bf16 %v1351, %v1350
      %v1371 = vpack.c.bf16 %v1353, %v1352
      %v1372 = vpack.c.bf16 %v1355, %v1354
      %v1373 = vpack.c.bf16 %v1357, %v1356
      %1390 = vrot.lane.b32.xlu0 %v1358, 28
      %v1391 = vpop.permute.xlu0 %1390
      %1392 = vrot.lane.b32.xlu0 %v1359, 28
      %v1393 = vpop.permute.xlu0 %1392
      %1394 = vrot.lane.b32.xlu0 %v1360, 28
      %v1395 = vpop.permute.xlu0 %1394
      %1396 = vrot.lane.b32.xlu0 %v1361, 28
      %v1397 = vpop.permute.xlu0 %1396
      %1398 = vrot.lane.b32.xlu0 %v1362, 28
      %v1399 = vpop.permute.xlu0 %1398
      %1400 = vrot.lane.b32.xlu0 %v1363, 28
      %v1401 = vpop.permute.xlu0 %1400
      %1402 = vrot.lane.b32.xlu0 %v1364, 28
      %v1403 = vpop.permute.xlu0 %1402
      %1404 = vrot.lane.b32.xlu0 %v1365, 28
      %v1405 = vpop.permute.xlu0 %1404
      %1406 = vrot.lane.b32.xlu0 %v1366, 28
      %v1407 = vpop.permute.xlu0 %1406
      %1408 = vrot.lane.b32.xlu0 %v1367, 28
      %v1409 = vpop.permute.xlu0 %1408
      %1410 = vrot.lane.b32.xlu0 %v1368, 28
      %v1411 = vpop.permute.xlu0 %1410
      %1412 = vrot.lane.b32.xlu0 %v1369, 28
      %v1413 = vpop.permute.xlu0 %1412
      %1414 = vrot.lane.b32.xlu0 %v1370, 28
      %v1415 = vpop.permute.xlu0 %1414
      %1416 = vrot.lane.b32.xlu0 %v1371, 28
      %v1417 = vpop.permute.xlu0 %1416
      %1418 = vrot.lane.b32.xlu0 %v1372, 28
      %v1419 = vpop.permute.xlu0 %1418
      %1420 = vrot.lane.b32.xlu0 %v1373, 28
      %v1421 = vpop.permute.xlu0 %1420
      %vm1438 = vcmask 261344
      %1439 = vst.msk [vmem:[#allocation4] sm:$0xff] %vm1438, %v1391
      %1440 = vst.msk [vmem:[#allocation4 + $0x8] sm:$0xff] %vm1438, %v1393
      %1441 = vst.msk [vmem:[#allocation4 + $0x10] sm:$0xff] %vm1438, %v1395
      %1442 = vst.msk [vmem:[#allocation4 + $0x18] sm:$0xff] %vm1438, %v1397
      %1443 = vst.msk [vmem:[#allocation4 + $0x20] sm:$0xff] %vm1438, %v1399
      %1444 = vst.msk [vmem:[#allocation4 + $0x28] sm:$0xff] %vm1438, %v1401
      %1445 = vst.msk [vmem:[#allocation4 + $0x30] sm:$0xff] %vm1438, %v1403
      %1446 = vst.msk [vmem:[#allocation4 + $0x38] sm:$0xff] %vm1438, %v1405
      %1447 = vst.msk [vmem:[#allocation4 + $0x40] sm:$0xff] %vm1438, %v1407
      %1448 = vst.msk [vmem:[#allocation4 + $0x48] sm:$0xff] %vm1438, %v1409
      %1449 = vst.msk [vmem:[#allocation4 + $0x50] sm:$0xff] %vm1438, %v1411
      %1450 = vst.msk [vmem:[#allocation4 + $0x58] sm:$0xff] %vm1438, %v1413
      %1451 = vst.msk [vmem:[#allocation4 + $0x60] sm:$0xff] %vm1438, %v1415
      %1452 = vst.msk [vmem:[#allocation4 + $0x68] sm:$0xff] %vm1438, %v1417
      %1453 = vst.msk [vmem:[#allocation4 + $0x70] sm:$0xff] %vm1438, %v1419
      %1454 = vst.msk [vmem:[#allocation4 + $0x78] sm:$0xff] %vm1438, %v1421
      %v1455 = vld [vmem:[%s1196 + $0x2] sm:$0xff]
      %v1456 = vld [vmem:[%s1196 + $0xa] sm:$0xff]
      %v1457 = vld [vmem:[%s1196 + $0x1a] sm:$0xff]
      %v1458 = vld [vmem:[%s1196 + $0x22] sm:$0xff]
      %v1459 = vld [vmem:[%s1196 + $0x32] sm:$0xff]
      %v1460 = vld [vmem:[%s1196 + $0x3a] sm:$0xff]
      %v1461 = vld [vmem:[%s1196 + $0x4a] sm:$0xff]
      %v1462 = vld [vmem:[%s1196 + $0x52] sm:$0xff]
      %v1463 = vld [vmem:[%s1196 + $0x62] sm:$0xff]
      %v1464 = vld [vmem:[%s1196 + $0x6a] sm:$0xff]
      %v1465 = vld [vmem:[%s1196 + $0x7a] sm:$0xff]
      %v1466 = vld [vmem:[%s1196 + $0x82] sm:$0xff]
      %v1467 = vld [vmem:[%s1196 + $0x92] sm:$0xff]
      %v1468 = vld [vmem:[%s1196 + $0x9a] sm:$0xff]
      %v1469 = vld [vmem:[%s1196 + $0xaa] sm:$0xff]
      %v1470 = vld [vmem:[%s1196 + $0xb2] sm:$0xff]
      %v1471 = vld [vmem:[%s1196 + $0xc2] sm:$0xff]
      %v1472 = vld [vmem:[%s1196 + $0xca] sm:$0xff]
      %v1473 = vld [vmem:[%s1196 + $0xda] sm:$0xff]
      %v1474 = vld [vmem:[%s1196 + $0xe2] sm:$0xff]
      %v1475 = vld [vmem:[%s1196 + $0xf2] sm:$0xff]
      %v1476 = vld [vmem:[%s1196 + $0xfa] sm:$0xff]
      %v1477 = vld [vmem:[%s1196 + $0x10a] sm:$0xff]
      %v1478 = vld [vmem:[%s1196 + $0x112] sm:$0xff]
      %v1479 = vld [vmem:[%s1196 + $0x122] sm:$0xff]
      %v1480 = vld [vmem:[%s1196 + $0x12a] sm:$0xff]
      %v1481 = vld [vmem:[%s1196 + $0x13a] sm:$0xff]
      %v1482 = vld [vmem:[%s1196 + $0x142] sm:$0xff]
      %v1483 = vld [vmem:[%s1196 + $0x152] sm:$0xff]
      %v1484 = vld [vmem:[%s1196 + $0x15a] sm:$0xff]
      %v1485 = vld [vmem:[%s1196 + $0x16a] sm:$0xff]
      %v1486 = vld [vmem:[%s1196 + $0x172] sm:$0xff]
      %v1487 = vpack.c.bf16 %v1456, %v1455
      %v1488 = vpack.c.bf16 %v1458, %v1457
      %v1489 = vpack.c.bf16 %v1460, %v1459
      %v1490 = vpack.c.bf16 %v1462, %v1461
      %v1491 = vpack.c.bf16 %v1464, %v1463
      %v1492 = vpack.c.bf16 %v1466, %v1465
      %v1493 = vpack.c.bf16 %v1468, %v1467
      %v1494 = vpack.c.bf16 %v1470, %v1469
      %v1495 = vpack.c.bf16 %v1472, %v1471
      %v1496 = vpack.c.bf16 %v1474, %v1473
      %v1497 = vpack.c.bf16 %v1476, %v1475
      %v1498 = vpack.c.bf16 %v1478, %v1477
      %v1499 = vpack.c.bf16 %v1480, %v1479
      %v1500 = vpack.c.bf16 %v1482, %v1481
      %v1501 = vpack.c.bf16 %v1484, %v1483
      %v1502 = vpack.c.bf16 %v1486, %v1485
      %1519 = vrot.lane.b32.xlu0 %v1487, 32
      %v1520 = vpop.permute.xlu0 %1519
      %1521 = vrot.lane.b32.xlu0 %v1488, 32
      %v1522 = vpop.permute.xlu0 %1521
      %1523 = vrot.lane.b32.xlu0 %v1489, 32
      %v1524 = vpop.permute.xlu0 %1523
      %1525 = vrot.lane.b32.xlu0 %v1490, 32
      %v1526 = vpop.permute.xlu0 %1525
      %1527 = vrot.lane.b32.xlu0 %v1491, 32
      %v1528 = vpop.permute.xlu0 %1527
      %1529 = vrot.lane.b32.xlu0 %v1492, 32
      %v1530 = vpop.permute.xlu0 %1529
      %1531 = vrot.lane.b32.xlu0 %v1493, 32
      %v1532 = vpop.permute.xlu0 %1531
      %1533 = vrot.lane.b32.xlu0 %v1494, 32
      %v1534 = vpop.permute.xlu0 %1533
      %1535 = vrot.lane.b32.xlu0 %v1495, 32
      %v1536 = vpop.permute.xlu0 %1535
      %1537 = vrot.lane.b32.xlu0 %v1496, 32
      %v1538 = vpop.permute.xlu0 %1537
      %1539 = vrot.lane.b32.xlu0 %v1497, 32
      %v1540 = vpop.permute.xlu0 %1539
      %1541 = vrot.lane.b32.xlu0 %v1498, 32
      %v1542 = vpop.permute.xlu0 %1541
      %1543 = vrot.lane.b32.xlu0 %v1499, 32
      %v1544 = vpop.permute.xlu0 %1543
      %1545 = vrot.lane.b32.xlu0 %v1500, 32
      %v1546 = vpop.permute.xlu0 %1545
      %1547 = vrot.lane.b32.xlu0 %v1501, 32
      %v1548 = vpop.permute.xlu0 %1547
      %1549 = vrot.lane.b32.xlu0 %v1502, 32
      %v1550 = vpop.permute.xlu0 %1549
      %vm1567 = vcmask 294144
      %1568 = vst.msk [vmem:[#allocation4] sm:$0xff] %vm1567, %v1520
      %1569 = vst.msk [vmem:[#allocation4 + $0x8] sm:$0xff] %vm1567, %v1522
      %1570 = vst.msk [vmem:[#allocation4 + $0x10] sm:$0xff] %vm1567, %v1524
      %1571 = vst.msk [vmem:[#allocation4 + $0x18] sm:$0xff] %vm1567, %v1526
      %1572 = vst.msk [vmem:[#allocation4 + $0x20] sm:$0xff] %vm1567, %v1528
      %1573 = vst.msk [vmem:[#allocation4 + $0x28] sm:$0xff] %vm1567, %v1530
      %1574 = vst.msk [vmem:[#allocation4 + $0x30] sm:$0xff] %vm1567, %v1532
      %1575 = vst.msk [vmem:[#allocation4 + $0x38] sm:$0xff] %vm1567, %v1534
      %1576 = vst.msk [vmem:[#allocation4 + $0x40] sm:$0xff] %vm1567, %v1536
      %1577 = vst.msk [vmem:[#allocation4 + $0x48] sm:$0xff] %vm1567, %v1538
      %1578 = vst.msk [vmem:[#allocation4 + $0x50] sm:$0xff] %vm1567, %v1540
      %1579 = vst.msk [vmem:[#allocation4 + $0x58] sm:$0xff] %vm1567, %v1542
      %1580 = vst.msk [vmem:[#allocation4 + $0x60] sm:$0xff] %vm1567, %v1544
      %1581 = vst.msk [vmem:[#allocation4 + $0x68] sm:$0xff] %vm1567, %v1546
      %1582 = vst.msk [vmem:[#allocation4 + $0x70] sm:$0xff] %vm1567, %v1548
      %1583 = vst.msk [vmem:[#allocation4 + $0x78] sm:$0xff] %vm1567, %v1550
      %v1584 = vld [vmem:[#allocation4] sm:$0xff]
      %v1585 = vld [vmem:[#allocation4 + $0x8] sm:$0xff]
      %v1586 = vld [vmem:[#allocation4 + $0x10] sm:$0xff]
      %v1587 = vld [vmem:[#allocation4 + $0x18] sm:$0xff]
      %v1588 = vld [vmem:[#allocation4 + $0x20] sm:$0xff]
      %v1589 = vld [vmem:[#allocation4 + $0x28] sm:$0xff]
      %v1590 = vld [vmem:[#allocation4 + $0x30] sm:$0xff]
      %v1591 = vld [vmem:[#allocation4 + $0x38] sm:$0xff]
      %v1592 = vld [vmem:[#allocation4 + $0x40] sm:$0xff]
      %v1593 = vld [vmem:[#allocation4 + $0x48] sm:$0xff]
      %v1594 = vld [vmem:[#allocation4 + $0x50] sm:$0xff]
      %v1595 = vld [vmem:[#allocation4 + $0x58] sm:$0xff]
      %v1596 = vld [vmem:[#allocation4 + $0x60] sm:$0xff]
      %v1597 = vld [vmem:[#allocation4 + $0x68] sm:$0xff]
      %v1598 = vld [vmem:[#allocation4 + $0x70] sm:$0xff]
      %v1599 = vld [vmem:[#allocation4 + $0x78] sm:$0xff]
      %v1600 = vld [vmem:[%s1] sm:$0xf]
      %v1601 = vld [vmem:[%s1 + $0x4] sm:$0xf]
      %v1602 = vld [vmem:[%s1 + $0x8] sm:$0xf]
      %v1603 = vld [vmem:[%s1 + $0xc] sm:$0xf]
      %v1604 = vld [vmem:[%s1 + $0x10] sm:$0x3]
      %v1610 = vunpack.c.l.b16 %v1600
      %v1611 = vunpack.c.l.b16 %v1601
      %v1612 = vunpack.c.l.b16 %v1602
      %v1613 = vunpack.c.l.b16 %v1603
      %v1614 = vunpack.c.l.b16 %v1604
      %v1615 = vpack.c.b16 %v1611, %v1610
      %v1616 = vpack.c.b16 %v1613, %v1612
      %v1617 = vpack.c.b16 %v1614, %v1614
      %vm1620 = vcmask 293888
      %v1622 = vsel %vm1620, %v1584, 0
      %v1625 = vsel %vm1620, %v1585, 0
      %v1628 = vsel %vm1620, %v1586, 0
      %v1631 = vsel %vm1620, %v1587, 0
      %v1634 = vsel %vm1620, %v1588, 0
      %v1637 = vsel %vm1620, %v1589, 0
      %v1640 = vsel %vm1620, %v1590, 0
      %v1643 = vsel %vm1620, %v1591, 0
      %v1646 = vsel %vm1620, %v1592, 0
      %v1649 = vsel %vm1620, %v1593, 0
      %v1652 = vsel %vm1620, %v1594, 0
      %v1655 = vsel %vm1620, %v1595, 0
      %v1658 = vsel %vm1620, %v1596, 0
      %v1661 = vsel %vm1620, %v1597, 0
      %v1664 = vsel %vm1620, %v1598, 0
      %v1667 = vsel %vm1620, %v1599, 0
      %vm1669 = vcmask 1041408
      %v1671 = vsel %vm1669, %v1617, 0
      %1673 = vmatprep.subr.bf16.mxu0 0
      %1674 = vmatpush1.bf16.msra.mxu0 %v1615
      %1675 = vmatprep.subr.bf16.mxu0 0
      %1676 = vmatpush1.bf16.msra.mxu0 %v1616
      %1677 = vmatprep.subr.bf16.mxu0 0
      %1678 = vmatpush1.bf16.msra.mxu0 %v1671
      %1679 = vmatprep.subr.bf16.mxu0 0
      %1680 = vmatpush1.bf16.msra.mxu0 0
      %1681 = vmatprep.subr.bf16.mxu0 0
      %1682 = vmatpush1.bf16.msra.mxu0 0
      %1683 = vmatprep.subr.bf16.mxu0 0
      %1684 = vmatpush1.bf16.msra.mxu0 0
      %1685 = vmatprep.subr.bf16.mxu0 0
      %1686 = vmatpush1.bf16.msra.mxu0 0
      %1687 = vmatprep.subr.bf16.mxu0 0
      %1688 = vmatpush1.bf16.msra.mxu0 0
      %1689 = vmatprep.subr.bf16.mxu0 0
      %1690 = vmatpush1.bf16.msra.mxu0 0
      %1691 = vmatprep.subr.bf16.mxu0 0
      %1692 = vmatpush1.bf16.msra.mxu0 0
      %1693 = vmatprep.subr.bf16.mxu0 0
      %1694 = vmatpush1.bf16.msra.mxu0 0
      %1695 = vmatprep.subr.bf16.mxu0 0
      %1696 = vmatpush1.bf16.msra.mxu0 0
      %1697 = vmatprep.subr.bf16.mxu0 0
      %1698 = vmatpush1.bf16.msra.mxu0 0
      %1699 = vmatprep.subr.bf16.mxu0 0
      %1700 = vmatpush1.bf16.msra.mxu0 0
      %1701 = vmatprep.subr.bf16.mxu0 0
      %1702 = vmatpush1.bf16.msra.mxu0 0
      %1703 = vmatprep.subr.bf16.mxu0 0
      %1704 = vmatpush1.bf16.msra.mxu0 0
      %1705 = vmatprep.mubr.bf16.mxu0 0
      %1706 = vmatmul.mubr.bf16.gmra.mrb[0].mxu0 %v1622
      %v1707 = vpop.f32.mrb[0].mxu0
      %v1708 = vadd.f32 0.0, %v1707
      %v1709 = vpop.f32.mrb[0].mxu0
      %v1710 = vpop.f32.mrb[0].mxu0
      %v1711 = vadd.f32 0.0, %v1710
      %v1712 = vpop.f32.mrb[0].mxu0
      %1713 = vmatprep.mubr.bf16.mxu0 0
      %1714 = vmatmul.mubr.bf16.gmra.mrb[0].mxu0 %v1625
      %v1715 = vpop.f32.mrb[0].mxu0
      %v1716 = vadd.f32 0.0, %v1715
      %v1717 = vpop.f32.mrb[0].mxu0
      %v1718 = vpop.f32.mrb[0].mxu0
      %v1719 = vadd.f32 0.0, %v1718
      %v1720 = vpop.f32.mrb[0].mxu0
      %1721 = vmatprep.mubr.bf16.mxu0 0
      %1722 = vmatmul.mubr.bf16.gmra.mrb[0].mxu0 %v1628
      %v1723 = vpop.f32.mrb[0].mxu0
      %v1724 = vadd.f32 0.0, %v1723
      %v1725 = vpop.f32.mrb[0].mxu0
      %v1726 = vpop.f32.mrb[0].mxu0
      %v1727 = vadd.f32 0.0, %v1726
      %v1728 = vpop.f32.mrb[0].mxu0
      %1729 = vmatprep.mubr.bf16.mxu0 0
      %1730 = vmatmul.mubr.bf16.gmra.mrb[0].mxu0 %v1631
      %v1731 = vpop.f32.mrb[0].mxu0
      %v1732 = vadd.f32 0.0, %v1731
      %v1733 = vpop.f32.mrb[0].mxu0
      %v1734 = vpop.f32.mrb[0].mxu0
      %v1735 = vadd.f32 0.0, %v1734
      %v1736 = vpop.f32.mrb[0].mxu0
      %1737 = vmatprep.mubr.bf16.mxu0 0
      %1738 = vmatmul.mubr.bf16.gmra.mrb[0].mxu0 %v1634
      %v1739 = vpop.f32.mrb[0].mxu0
      %v1740 = vadd.f32 0.0, %v1739
      %v1741 = vpop.f32.mrb[0].mxu0
      %v1742 = vpop.f32.mrb[0].mxu0
      %v1743 = vadd.f32 0.0, %v1742
      %v1744 = vpop.f32.mrb[0].mxu0
      %1745 = vmatprep.mubr.bf16.mxu0 0
      %1746 = vmatmul.mubr.bf16.gmra.mrb[0].mxu0 %v1637
      %v1747 = vpop.f32.mrb[0].mxu0
      %v1748 = vadd.f32 0.0, %v1747
      %v1749 = vpop.f32.mrb[0].mxu0
      %v1750 = vpop.f32.mrb[0].mxu0
      %v1751 = vadd.f32 0.0, %v1750
      %v1752 = vpop.f32.mrb[0].mxu0
      %1753 = vmatprep.mubr.bf16.mxu0 0
      %1754 = vmatmul.mubr.bf16.gmra.mrb[0].mxu0 %v1640
      %v1755 = vpop.f32.mrb[0].mxu0
      %v1756 = vadd.f32 0.0, %v1755
      %v1757 = vpop.f32.mrb[0].mxu0
      %v1758 = vpop.f32.mrb[0].mxu0
      %v1759 = vadd.f32 0.0, %v1758
      %v1760 = vpop.f32.mrb[0].mxu0
      %1761 = vmatprep.mubr.bf16.mxu0 0
      %1762 = vmatmul.mubr.bf16.gmra.mrb[0].mxu0 %v1643
      %v1763 = vpop.f32.mrb[0].mxu0
      %v1764 = vadd.f32 0.0, %v1763
      %v1765 = vpop.f32.mrb[0].mxu0
      %v1766 = vpop.f32.mrb[0].mxu0
      %v1767 = vadd.f32 0.0, %v1766
      %v1768 = vpop.f32.mrb[0].mxu0
      %1769 = vmatprep.mubr.bf16.mxu0 0
      %1770 = vmatmul.mubr.bf16.gmra.mrb[0].mxu0 %v1646
      %v1771 = vpop.f32.mrb[0].mxu0
      %v1772 = vadd.f32 0.0, %v1771
      %v1773 = vpop.f32.mrb[0].mxu0
      %v1774 = vpop.f32.mrb[0].mxu0
      %v1775 = vadd.f32 0.0, %v1774
      %v1776 = vpop.f32.mrb[0].mxu0
      %1777 = vmatprep.mubr.bf16.mxu0 0
      %1778 = vmatmul.mubr.bf16.gmra.mrb[0].mxu0 %v1649
      %v1779 = vpop.f32.mrb[0].mxu0
      %v1780 = vadd.f32 0.0, %v1779
      %v1781 = vpop.f32.mrb[0].mxu0
      %v1782 = vpop.f32.mrb[0].mxu0
      %v1783 = vadd.f32 0.0, %v1782
      %v1784 = vpop.f32.mrb[0].mxu0
      %1785 = vmatprep.mubr.bf16.mxu0 0
      %1786 = vmatmul.mubr.bf16.gmra.mrb[0].mxu0 %v1652
      %v1787 = vpop.f32.mrb[0].mxu0
      %v1788 = vadd.f32 0.0, %v1787
      %v1789 = vpop.f32.mrb[0].mxu0
      %v1790 = vpop.f32.mrb[0].mxu0
      %v1791 = vadd.f32 0.0, %v1790
      %v1792 = vpop.f32.mrb[0].mxu0
      %1793 = vmatprep.mubr.bf16.mxu0 0
      %1794 = vmatmul.mubr.bf16.gmra.mrb[0].mxu0 %v1655
      %v1795 = vpop.f32.mrb[0].mxu0
      %v1796 = vadd.f32 0.0, %v1795
      %v1797 = vpop.f32.mrb[0].mxu0
      %v1798 = vpop.f32.mrb[0].mxu0
      %v1799 = vadd.f32 0.0, %v1798
      %v1800 = vpop.f32.mrb[0].mxu0
      %1801 = vmatprep.mubr.bf16.mxu0 0
      %1802 = vmatmul.mubr.bf16.gmra.mrb[0].mxu0 %v1658
      %v1803 = vpop.f32.mrb[0].mxu0
      %v1804 = vadd.f32 0.0, %v1803
      %v1805 = vpop.f32.mrb[0].mxu0
      %v1806 = vpop.f32.mrb[0].mxu0
      %v1807 = vadd.f32 0.0, %v1806
      %v1808 = vpop.f32.mrb[0].mxu0
      %1809 = vmatprep.mubr.bf16.mxu0 0
      %1810 = vmatmul.mubr.bf16.gmra.mrb[0].mxu0 %v1661
      %v1811 = vpop.f32.mrb[0].mxu0
      %v1812 = vadd.f32 0.0, %v1811
      %v1813 = vpop.f32.mrb[0].mxu0
      %v1814 = vpop.f32.mrb[0].mxu0
      %v1815 = vadd.f32 0.0, %v1814
      %v1816 = vpop.f32.mrb[0].mxu0
      %1817 = vmatprep.mubr.bf16.mxu0 0
      %1818 = vmatmul.mubr.bf16.gmra.mrb[0].mxu0 %v1664
      %v1819 = vpop.f32.mrb[0].mxu0
      %v1820 = vadd.f32 0.0, %v1819
      %v1821 = vpop.f32.mrb[0].mxu0
      %v1822 = vpop.f32.mrb[0].mxu0
      %v1823 = vadd.f32 0.0, %v1822
      %v1824 = vpop.f32.mrb[0].mxu0
      %1825 = vmatprep.mubr.bf16.mxu0 0
      %1826 = vmatmul.mubr.bf16.gmra.mrb[0].mxu0 %v1667
      %v1827 = vpop.f32.mrb[0].mxu0
      %v1828 = vadd.f32 0.0, %v1827
      %v1829 = vpop.f32.mrb[0].mxu0
      %v1830 = vpop.f32.mrb[0].mxu0
      %v1831 = vadd.f32 0.0, %v1830
      %v1832 = vpop.f32.mrb[0].mxu0
      %1833 = vdwg.mxu0
      %v1834 = vld [vmem:[%s2] sm:$0x1]
      %v1836 = vlaneseq
      %v1837 = vshrl.u32 %v1836, 7
      %v1838 = vsub.s32 0, %v1837
      %v1839 = vrot.slane %v1834, %v1838
      %v1841 = vmul.f32 %v1708, %v1839
      %v1842 = vmul.f32 %v1711, %v1839
      %v1843 = vmul.f32 %v1716, %v1839
      %v1844 = vmul.f32 %v1719, %v1839
      %v1845 = vmul.f32 %v1724, %v1839
      %v1846 = vmul.f32 %v1727, %v1839
      %v1847 = vmul.f32 %v1732, %v1839
      %v1848 = vmul.f32 %v1735, %v1839
      %v1849 = vmul.f32 %v1740, %v1839
      %v1850 = vmul.f32 %v1743, %v1839
      %v1851 = vmul.f32 %v1748, %v1839
      %v1852 = vmul.f32 %v1751, %v1839
      %v1853 = vmul.f32 %v1756, %v1839
      %v1854 = vmul.f32 %v1759, %v1839
      %v1855 = vmul.f32 %v1764, %v1839
      %v1856 = vmul.f32 %v1767, %v1839
      %v1857 = vmul.f32 %v1772, %v1839
      %v1858 = vmul.f32 %v1775, %v1839
      %v1859 = vmul.f32 %v1780, %v1839
      %v1860 = vmul.f32 %v1783, %v1839
      %v1861 = vmul.f32 %v1788, %v1839
      %v1862 = vmul.f32 %v1791, %v1839
      %v1863 = vmul.f32 %v1796, %v1839
      %v1864 = vmul.f32 %v1799, %v1839
      %v1865 = vmul.f32 %v1804, %v1839
      %v1866 = vmul.f32 %v1807, %v1839
      %v1867 = vmul.f32 %v1812, %v1839
      %v1868 = vmul.f32 %v1815, %v1839
      %v1869 = vmul.f32 %v1820, %v1839
      %v1870 = vmul.f32 %v1823, %v1839
      %v1871 = vmul.f32 %v1828, %v1839
      %v1872 = vmul.f32 %v1831, %v1839
      %v1873 = vld [vmem:[%s3] sm:$0x1]
      %v1875 = vlaneseq
      %v1876 = vshrl.u32 %v1875, 7
      %v1877 = vsub.s32 0, %v1876
      %v1878 = vrot.slane %v1873, %v1877
      %v1880 = vadd.f32 %v1841, %v1878
      %v1881 = vadd.f32 %v1842, %v1878
      %v1882 = vadd.f32 %v1843, %v1878
      %v1883 = vadd.f32 %v1844, %v1878
      %v1884 = vadd.f32 %v1845, %v1878
      %v1885 = vadd.f32 %v1846, %v1878
      %v1886 = vadd.f32 %v1847, %v1878
      %v1887 = vadd.f32 %v1848, %v1878
      %v1888 = vadd.f32 %v1849, %v1878
      %v1889 = vadd.f32 %v1850, %v1878
      %v1890 = vadd.f32 %v1851, %v1878
      %v1891 = vadd.f32 %v1852, %v1878
      %v1892 = vadd.f32 %v1853, %v1878
      %v1893 = vadd.f32 %v1854, %v1878
      %v1894 = vadd.f32 %v1855, %v1878
      %v1895 = vadd.f32 %v1856, %v1878
      %v1896 = vadd.f32 %v1857, %v1878
      %v1897 = vadd.f32 %v1858, %v1878
      %v1898 = vadd.f32 %v1859, %v1878
      %v1899 = vadd.f32 %v1860, %v1878
      %v1900 = vadd.f32 %v1861, %v1878
      %v1901 = vadd.f32 %v1862, %v1878
      %v1902 = vadd.f32 %v1863, %v1878
      %v1903 = vadd.f32 %v1864, %v1878
      %v1904 = vadd.f32 %v1865, %v1878
      %v1905 = vadd.f32 %v1866, %v1878
      %v1906 = vadd.f32 %v1867, %v1878
      %v1907 = vadd.f32 %v1868, %v1878
      %v1908 = vadd.f32 %v1869, %v1878
      %v1909 = vadd.f32 %v1870, %v1878
      %v1910 = vadd.f32 %v1871, %v1878
      %v1911 = vadd.f32 %v1872, %v1878
      %v1912 = vmax.f32 %v1880, 0.0
      %v1913 = vmax.f32 %v1881, 0.0
      %v1914 = vmax.f32 %v1882, 0.0
      %v1915 = vmax.f32 %v1883, 0.0
      %v1916 = vmax.f32 %v1884, 0.0
      %v1917 = vmax.f32 %v1885, 0.0
      %v1918 = vmax.f32 %v1886, 0.0
      %v1919 = vmax.f32 %v1887, 0.0
      %v1920 = vmax.f32 %v1888, 0.0
      %v1921 = vmax.f32 %v1889, 0.0
      %v1922 = vmax.f32 %v1890, 0.0
      %v1923 = vmax.f32 %v1891, 0.0
      %v1924 = vmax.f32 %v1892, 0.0
      %v1925 = vmax.f32 %v1893, 0.0
      %v1926 = vmax.f32 %v1894, 0.0
      %v1927 = vmax.f32 %v1895, 0.0
      %v1928 = vmax.f32 %v1896, 0.0
      %v1929 = vmax.f32 %v1897, 0.0
      %v1930 = vmax.f32 %v1898, 0.0
      %v1931 = vmax.f32 %v1899, 0.0
      %v1932 = vmax.f32 %v1900, 0.0
      %v1933 = vmax.f32 %v1901, 0.0
      %v1934 = vmax.f32 %v1902, 0.0
      %v1935 = vmax.f32 %v1903, 0.0
      %v1936 = vmax.f32 %v1904, 0.0
      %v1937 = vmax.f32 %v1905, 0.0
      %v1938 = vmax.f32 %v1906, 0.0
      %v1939 = vmax.f32 %v1907, 0.0
      %v1940 = vmax.f32 %v1908, 0.0
      %v1941 = vmax.f32 %v1909, 0.0
      %v1942 = vmax.f32 %v1910, 0.0
      %v1943 = vmax.f32 %v1911, 0.0
      %vm1944 = vcmask 64512
      %1945 = vst.msk [vmem:[#allocation3] sm:$0xff] %vm1944, 0.0
      %1946 = vst.msk [vmem:[#allocation3 + $0x8] sm:$0xff] %vm1944, 0.0
      %vm1947 = vcmask 58368
      %1948 = vst.msk [vmem:[#allocation3 + $0x10] sm:$0x3] %vm1947, 0.0
      %1949 = vst.msk [vmem:[#allocation3 + $0x18] sm:$0xff] %vm1944, 0.0
      %1950 = vst.msk [vmem:[#allocation3 + $0x20] sm:$0xff] %vm1944, 0.0
      %1951 = vst.msk [vmem:[#allocation3 + $0x28] sm:$0x3] %vm1947, 0.0
      %1952 = vst.msk [vmem:[#allocation3 + $0x30] sm:$0xff] %vm1944, 0.0
      %1953 = vst.msk [vmem:[#allocation3 + $0x38] sm:$0xff] %vm1944, 0.0
      %1954 = vst.msk [vmem:[#allocation3 + $0x40] sm:$0x3] %vm1947, 0.0
      %1955 = vst.msk [vmem:[#allocation3 + $0x48] sm:$0xff] %vm1944, 0.0
      %1956 = vst.msk [vmem:[#allocation3 + $0x50] sm:$0xff] %vm1944, 0.0
      %1957 = vst.msk [vmem:[#allocation3 + $0x58] sm:$0x3] %vm1947, 0.0
      %1958 = vst.msk [vmem:[#allocation3 + $0x60] sm:$0xff] %vm1944, 0.0
      %1959 = vst.msk [vmem:[#allocation3 + $0x68] sm:$0xff] %vm1944, 0.0
      %1960 = vst.msk [vmem:[#allocation3 + $0x70] sm:$0x3] %vm1947, 0.0
      %1961 = vst.msk [vmem:[#allocation3 + $0x78] sm:$0xff] %vm1944, 0.0
      %1962 = vst.msk [vmem:[#allocation3 + $0x80] sm:$0xff] %vm1944, 0.0
      %1963 = vst.msk [vmem:[#allocation3 + $0x88] sm:$0x3] %vm1947, 0.0
      %1964 = vst.msk [vmem:[#allocation3 + $0x90] sm:$0xff] %vm1944, 0.0
      %1965 = vst.msk [vmem:[#allocation3 + $0x98] sm:$0xff] %vm1944, 0.0
      %1966 = vst.msk [vmem:[#allocation3 + $0xa0] sm:$0x3] %vm1947, 0.0
      %1967 = vst.msk [vmem:[#allocation3 + $0xa8] sm:$0xff] %vm1944, 0.0
      %1968 = vst.msk [vmem:[#allocation3 + $0xb0] sm:$0xff] %vm1944, 0.0
      %1969 = vst.msk [vmem:[#allocation3 + $0xb8] sm:$0x3] %vm1947, 0.0
      %1970 = vst.msk [vmem:[#allocation3 + $0xc0] sm:$0xff] %vm1944, 0.0
      %1971 = vst.msk [vmem:[#allocation3 + $0xc8] sm:$0xff] %vm1944, 0.0
      %1972 = vst.msk [vmem:[#allocation3 + $0xd0] sm:$0x3] %vm1947, 0.0
      %1973 = vst.msk [vmem:[#allocation3 + $0xd8] sm:$0xff] %vm1944, 0.0
      %1974 = vst.msk [vmem:[#allocation3 + $0xe0] sm:$0xff] %vm1944, 0.0
      %1975 = vst.msk [vmem:[#allocation3 + $0xe8] sm:$0x3] %vm1947, 0.0
      %1976 = vst.msk [vmem:[#allocation3 + $0xf0] sm:$0xff] %vm1944, 0.0
      %1977 = vst.msk [vmem:[#allocation3 + $0xf8] sm:$0xff] %vm1944, 0.0
      %1978 = vst.msk [vmem:[#allocation3 + $0x100] sm:$0x3] %vm1947, 0.0
      %1979 = vst.msk [vmem:[#allocation3 + $0x108] sm:$0xff] %vm1944, 0.0
      %1980 = vst.msk [vmem:[#allocation3 + $0x110] sm:$0xff] %vm1944, 0.0
      %1981 = vst.msk [vmem:[#allocation3 + $0x118] sm:$0x3] %vm1947, 0.0
      %1982 = vst.msk [vmem:[#allocation3 + $0x120] sm:$0xff] %vm1944, 0.0
      %1983 = vst.msk [vmem:[#allocation3 + $0x128] sm:$0xff] %vm1944, 0.0
      %1984 = vst.msk [vmem:[#allocation3 + $0x130] sm:$0x3] %vm1947, 0.0
      %1985 = vst.msk [vmem:[#allocation3 + $0x138] sm:$0xff] %vm1944, 0.0
      %1986 = vst.msk [vmem:[#allocation3 + $0x140] sm:$0xff] %vm1944, 0.0
      %1987 = vst.msk [vmem:[#allocation3 + $0x148] sm:$0x3] %vm1947, 0.0
      %1988 = vst.msk [vmem:[#allocation3 + $0x150] sm:$0xff] %vm1944, 0.0
      %1989 = vst.msk [vmem:[#allocation3 + $0x158] sm:$0xff] %vm1944, 0.0
      %1990 = vst.msk [vmem:[#allocation3 + $0x160] sm:$0x3] %vm1947, 0.0
      %1991 = vst.msk [vmem:[#allocation3 + $0x168] sm:$0xff] %vm1944, 0.0
      %1992 = vst.msk [vmem:[#allocation3 + $0x170] sm:$0xff] %vm1944, 0.0
      %1993 = vst.msk [vmem:[#allocation3 + $0x178] sm:$0x3] %vm1947, 0.0
      %1994 = vst.msk [vmem:[#allocation3 + $0x180] sm:$0xff] %vm1944, 0.0
      %1995 = vst.msk [vmem:[#allocation3 + $0x188] sm:$0xff] %vm1944, 0.0
      %1996 = vst.msk [vmem:[#allocation3 + $0x190] sm:$0x3] %vm1947, 0.0
      %1997 = vst.msk [vmem:[#allocation3 + $0x198] sm:$0xff] %vm1944, 0.0
      %1998 = vst.msk [vmem:[#allocation3 + $0x1a0] sm:$0xff] %vm1944, 0.0
      %1999 = vst.msk [vmem:[#allocation3 + $0x1a8] sm:$0x3] %vm1947, 0.0
      %s2000 = scalar_lea.vmem [#allocation3], 24
      %2001 = vst.msk [vmem:[%s2000 + $0x1] sm:$0xff] %vm1944, %v1912
      %2002 = vst.msk [vmem:[%s2000 + $0x9] sm:$0xff] %vm1944, %v1913
      %2003 = vst.msk [vmem:[%s2000 + $0x19] sm:$0xff] %vm1944, %v1914
      %2004 = vst.msk [vmem:[%s2000 + $0x21] sm:$0xff] %vm1944, %v1915
      %2005 = vst.msk [vmem:[%s2000 + $0x31] sm:$0xff] %vm1944, %v1916
      %2006 = vst.msk [vmem:[%s2000 + $0x39] sm:$0xff] %vm1944, %v1917
      %2007 = vst.msk [vmem:[%s2000 + $0x49] sm:$0xff] %vm1944, %v1918
      %2008 = vst.msk [vmem:[%s2000 + $0x51] sm:$0xff] %vm1944, %v1919
      %2009 = vst.msk [vmem:[%s2000 + $0x61] sm:$0xff] %vm1944, %v1920
      %2010 = vst.msk [vmem:[%s2000 + $0x69] sm:$0xff] %vm1944, %v1921
      %2011 = vst.msk [vmem:[%s2000 + $0x79] sm:$0xff] %vm1944, %v1922
      %2012 = vst.msk [vmem:[%s2000 + $0x81] sm:$0xff] %vm1944, %v1923
      %2013 = vst.msk [vmem:[%s2000 + $0x91] sm:$0xff] %vm1944, %v1924
      %2014 = vst.msk [vmem:[%s2000 + $0x99] sm:$0xff] %vm1944, %v1925
      %2015 = vst.msk [vmem:[%s2000 + $0xa9] sm:$0xff] %vm1944, %v1926
      %2016 = vst.msk [vmem:[%s2000 + $0xb1] sm:$0xff] %vm1944, %v1927
      %2017 = vst.msk [vmem:[%s2000 + $0xc1] sm:$0xff] %vm1944, %v1928
      %2018 = vst.msk [vmem:[%s2000 + $0xc9] sm:$0xff] %vm1944, %v1929
      %2019 = vst.msk [vmem:[%s2000 + $0xd9] sm:$0xff] %vm1944, %v1930
      %2020 = vst.msk [vmem:[%s2000 + $0xe1] sm:$0xff] %vm1944, %v1931
      %2021 = vst.msk [vmem:[%s2000 + $0xf1] sm:$0xff] %vm1944, %v1932
      %2022 = vst.msk [vmem:[%s2000 + $0xf9] sm:$0xff] %vm1944, %v1933
      %2023 = vst.msk [vmem:[%s2000 + $0x109] sm:$0xff] %vm1944, %v1934
      %2024 = vst.msk [vmem:[%s2000 + $0x111] sm:$0xff] %vm1944, %v1935
      %2025 = vst.msk [vmem:[%s2000 + $0x121] sm:$0xff] %vm1944, %v1936
      %2026 = vst.msk [vmem:[%s2000 + $0x129] sm:$0xff] %vm1944, %v1937
      %2027 = vst.msk [vmem:[%s2000 + $0x139] sm:$0xff] %vm1944, %v1938
      %2028 = vst.msk [vmem:[%s2000 + $0x141] sm:$0xff] %vm1944, %v1939
      %2029 = vst.msk [vmem:[%s2000 + $0x151] sm:$0xff] %vm1944, %v1940
      %2030 = vst.msk [vmem:[%s2000 + $0x159] sm:$0xff] %vm1944, %v1941
      %2031 = vst.msk [vmem:[%s2000 + $0x169] sm:$0xff] %vm1944, %v1942
      %2032 = vst.msk [vmem:[%s2000 + $0x171] sm:$0xff] %vm1944, %v1943
      %v2033 = vld [vmem:[#allocation3] sm:$0xff]
      %v2034 = vld [vmem:[#allocation3 + $0x8] sm:$0xff]
      %v2035 = vld [vmem:[#allocation3 + $0x18] sm:$0xff]
      %v2036 = vld [vmem:[#allocation3 + $0x20] sm:$0xff]
      %v2037 = vld [vmem:[#allocation3 + $0x30] sm:$0xff]
      %v2038 = vld [vmem:[#allocation3 + $0x38] sm:$0xff]
      %v2039 = vld [vmem:[#allocation3 + $0x48] sm:$0xff]
      %v2040 = vld [vmem:[#allocation3 + $0x50] sm:$0xff]
      %v2041 = vld [vmem:[#allocation3 + $0x60] sm:$0xff]
      %v2042 = vld [vmem:[#allocation3 + $0x68] sm:$0xff]
      %v2043 = vld [vmem:[#allocation3 + $0x78] sm:$0xff]
      %v2044 = vld [vmem:[#allocation3 + $0x80] sm:$0xff]
      %v2045 = vld [vmem:[#allocation3 + $0x90] sm:$0xff]
      %v2046 = vld [vmem:[#allocation3 + $0x98] sm:$0xff]
      %v2047 = vld [vmem:[#allocation3 + $0xa8] sm:$0xff]
      %v2048 = vld [vmem:[#allocation3 + $0xb0] sm:$0xff]
      %v2049 = vld [vmem:[#allocation3 + $0xc0] sm:$0xff]
      %v2050 = vld [vmem:[#allocation3 + $0xc8] sm:$0xff]
      %v2051 = vld [vmem:[#allocation3 + $0xd8] sm:$0xff]
      %v2052 = vld [vmem:[#allocation3 + $0xe0] sm:$0xff]
      %v2053 = vld [vmem:[#allocation3 + $0xf0] sm:$0xff]
      %v2054 = vld [vmem:[#allocation3 + $0xf8] sm:$0xff]
      %v2055 = vld [vmem:[#allocation3 + $0x108] sm:$0xff]
      %v2056 = vld [vmem:[#allocation3 + $0x110] sm:$0xff]
      %v2057 = vld [vmem:[#allocation3 + $0x120] sm:$0xff]
      %v2058 = vld [vmem:[#allocation3 + $0x128] sm:$0xff]
      %v2059 = vld [vmem:[#allocation3 + $0x138] sm:$0xff]
      %v2060 = vld [vmem:[#allocation3 + $0x140] sm:$0xff]
      %v2061 = vld [vmem:[#allocation3 + $0x150] sm:$0xff]
      %v2062 = vld [vmem:[#allocation3 + $0x158] sm:$0xff]
      %v2063 = vld [vmem:[#allocation3 + $0x168] sm:$0xff]
      %v2064 = vld [vmem:[#allocation3 + $0x170] sm:$0xff]
      %v2065 = vpack.c.bf16 %v2034, %v2033
      %v2066 = vpack.c.bf16 %v2036, %v2035
      %v2067 = vpack.c.bf16 %v2038, %v2037
      %v2068 = vpack.c.bf16 %v2040, %v2039
      %v2069 = vpack.c.bf16 %v2042, %v2041
      %v2070 = vpack.c.bf16 %v2044, %v2043
      %v2071 = vpack.c.bf16 %v2046, %v2045
      %v2072 = vpack.c.bf16 %v2048, %v2047
      %v2073 = vpack.c.bf16 %v2050, %v2049
      %v2074 = vpack.c.bf16 %v2052, %v2051
      %v2075 = vpack.c.bf16 %v2054, %v2053
      %v2076 = vpack.c.bf16 %v2056, %v2055
      %v2077 = vpack.c.bf16 %v2058, %v2057
      %v2078 = vpack.c.bf16 %v2060, %v2059
      %v2079 = vpack.c.bf16 %v2062, %v2061
      %v2080 = vpack.c.bf16 %v2064, %v2063
      %2081 = vst.msk [vmem:[#allocation5] sm:$0xff] %vm1944, %v2065
      %2082 = vst.msk [vmem:[#allocation5 + $0x8] sm:$0xff] %vm1944, %v2066
      %2083 = vst.msk [vmem:[#allocation5 + $0x10] sm:$0xff] %vm1944, %v2067
      %2084 = vst.msk [vmem:[#allocation5 + $0x18] sm:$0xff] %vm1944, %v2068
      %2085 = vst.msk [vmem:[#allocation5 + $0x20] sm:$0xff] %vm1944, %v2069
      %2086 = vst.msk [vmem:[#allocation5 + $0x28] sm:$0xff] %vm1944, %v2070
      %2087 = vst.msk [vmem:[#allocation5 + $0x30] sm:$0xff] %vm1944, %v2071
      %2088 = vst.msk [vmem:[#allocation5 + $0x38] sm:$0xff] %vm1944, %v2072
      %2089 = vst.msk [vmem:[#allocation5 + $0x40] sm:$0xff] %vm1944, %v2073
      %2090 = vst.msk [vmem:[#allocation5 + $0x48] sm:$0xff] %vm1944, %v2074
      %2091 = vst.msk [vmem:[#allocation5 + $0x50] sm:$0xff] %vm1944, %v2075
      %2092 = vst.msk [vmem:[#allocation5 + $0x58] sm:$0xff] %vm1944, %v2076
      %2093 = vst.msk [vmem:[#allocation5 + $0x60] sm:$0xff] %vm1944, %v2077
      %2094 = vst.msk [vmem:[#allocation5 + $0x68] sm:$0xff] %vm1944, %v2078
      %2095 = vst.msk [vmem:[#allocation5 + $0x70] sm:$0xff] %vm1944, %v2079
      %2096 = vst.msk [vmem:[#allocation5 + $0x78] sm:$0xff] %vm1944, %v2080
      %v2097 = vld [vmem:[#allocation3 + $0x1] sm:$0xff]
      %v2098 = vld [vmem:[#allocation3 + $0x9] sm:$0xff]
      %v2099 = vld [vmem:[#allocation3 + $0x19] sm:$0xff]
      %v2100 = vld [vmem:[#allocation3 + $0x21] sm:$0xff]
      %v2101 = vld [vmem:[#allocation3 + $0x31] sm:$0xff]
      %v2102 = vld [vmem:[#allocation3 + $0x39] sm:$0xff]
      %v2103 = vld [vmem:[#allocation3 + $0x49] sm:$0xff]
      %v2104 = vld [vmem:[#allocation3 + $0x51] sm:$0xff]
      %v2105 = vld [vmem:[#allocation3 + $0x61] sm:$0xff]
      %v2106 = vld [vmem:[#allocation3 + $0x69] sm:$0xff]
      %v2107 = vld [vmem:[#allocation3 + $0x79] sm:$0xff]
      %v2108 = vld [vmem:[#allocation3 + $0x81] sm:$0xff]
      %v2109 = vld [vmem:[#allocation3 + $0x91] sm:$0xff]
      %v2110 = vld [vmem:[#allocation3 + $0x99] sm:$0xff]
      %v2111 = vld [vmem:[#allocation3 + $0xa9] sm:$0xff]
      %v2112 = vld [vmem:[#allocation3 + $0xb1] sm:$0xff]
      %v2113 = vld [vmem:[#allocation3 + $0xc1] sm:$0xff]
      %v2114 = vld [vmem:[#allocation3 + $0xc9] sm:$0xff]
      %v2115 = vld [vmem:[#allocation3 + $0xd9] sm:$0xff]
      %v2116 = vld [vmem:[#allocation3 + $0xe1] sm:$0xff]
      %v2117 = vld [vmem:[#allocation3 + $0xf1] sm:$0xff]
      %v2118 = vld [vmem:[#allocation3 + $0xf9] sm:$0xff]
      %v2119 = vld [vmem:[#allocation3 + $0x109] sm:$0xff]
      %v2120 = vld [vmem:[#allocation3 + $0x111] sm:$0xff]
      %v2121 = vld [vmem:[#allocation3 + $0x121] sm:$0xff]
      %v2122 = vld [vmem:[#allocation3 + $0x129] sm:$0xff]
      %v2123 = vld [vmem:[#allocation3 + $0x139] sm:$0xff]
      %v2124 = vld [vmem:[#allocation3 + $0x141] sm:$0xff]
      %v2125 = vld [vmem:[#allocation3 + $0x151] sm:$0xff]
      %v2126 = vld [vmem:[#allocation3 + $0x159] sm:$0xff]
      %v2127 = vld [vmem:[#allocation3 + $0x169] sm:$0xff]
      %v2128 = vld [vmem:[#allocation3 + $0x171] sm:$0xff]
      %v2129 = vpack.c.bf16 %v2098, %v2097
      %v2130 = vpack.c.bf16 %v2100, %v2099
      %v2131 = vpack.c.bf16 %v2102, %v2101
      %v2132 = vpack.c.bf16 %v2104, %v2103
      %v2133 = vpack.c.bf16 %v2106, %v2105
      %v2134 = vpack.c.bf16 %v2108, %v2107
      %v2135 = vpack.c.bf16 %v2110, %v2109
      %v2136 = vpack.c.bf16 %v2112, %v2111
      %v2137 = vpack.c.bf16 %v2114, %v2113
      %v2138 = vpack.c.bf16 %v2116, %v2115
      %v2139 = vpack.c.bf16 %v2118, %v2117
      %v2140 = vpack.c.bf16 %v2120, %v2119
      %v2141 = vpack.c.bf16 %v2122, %v2121
      %v2142 = vpack.c.bf16 %v2124, %v2123
      %v2143 = vpack.c.bf16 %v2126, %v2125
      %v2144 = vpack.c.bf16 %v2128, %v2127
      %2161 = vrot.lane.b32.xlu0 %v2129, 8
      %v2162 = vpop.permute.xlu0 %2161
      %2163 = vrot.lane.b32.xlu0 %v2130, 8
      %v2164 = vpop.permute.xlu0 %2163
      %2165 = vrot.lane.b32.xlu0 %v2131, 8
      %v2166 = vpop.permute.xlu0 %2165
      %2167 = vrot.lane.b32.xlu0 %v2132, 8
      %v2168 = vpop.permute.xlu0 %2167
      %2169 = vrot.lane.b32.xlu0 %v2133, 8
      %v2170 = vpop.permute.xlu0 %2169
      %2171 = vrot.lane.b32.xlu0 %v2134, 8
      %v2172 = vpop.permute.xlu0 %2171
      %2173 = vrot.lane.b32.xlu0 %v2135, 8
      %v2174 = vpop.permute.xlu0 %2173
      %2175 = vrot.lane.b32.xlu0 %v2136, 8
      %v2176 = vpop.permute.xlu0 %2175
      %2177 = vrot.lane.b32.xlu0 %v2137, 8
      %v2178 = vpop.permute.xlu0 %2177
      %2179 = vrot.lane.b32.xlu0 %v2138, 8
      %v2180 = vpop.permute.xlu0 %2179
      %2181 = vrot.lane.b32.xlu0 %v2139, 8
      %v2182 = vpop.permute.xlu0 %2181
      %2183 = vrot.lane.b32.xlu0 %v2140, 8
      %v2184 = vpop.permute.xlu0 %2183
      %2185 = vrot.lane.b32.xlu0 %v2141, 8
      %v2186 = vpop.permute.xlu0 %2185
      %2187 = vrot.lane.b32.xlu0 %v2142, 8
      %v2188 = vpop.permute.xlu0 %2187
      %2189 = vrot.lane.b32.xlu0 %v2143, 8
      %v2190 = vpop.permute.xlu0 %2189
      %2191 = vrot.lane.b32.xlu0 %v2144, 8
      %v2192 = vpop.permute.xlu0 %2191
      %vm2209 = vcmask 130112
      %2210 = vst.msk [vmem:[#allocation5] sm:$0xff] %vm2209, %v2162
      %2211 = vst.msk [vmem:[#allocation5 + $0x8] sm:$0xff] %vm2209, %v2164
      %2212 = vst.msk [vmem:[#allocation5 + $0x10] sm:$0xff] %vm2209, %v2166
      %2213 = vst.msk [vmem:[#allocation5 + $0x18] sm:$0xff] %vm2209, %v2168
      %2214 = vst.msk [vmem:[#allocation5 + $0x20] sm:$0xff] %vm2209, %v2170
      %2215 = vst.msk [vmem:[#allocation5 + $0x28] sm:$0xff] %vm2209, %v2172
      %2216 = vst.msk [vmem:[#allocation5 + $0x30] sm:$0xff] %vm2209, %v2174
      %2217 = vst.msk [vmem:[#allocation5 + $0x38] sm:$0xff] %vm2209, %v2176
      %2218 = vst.msk [vmem:[#allocation5 + $0x40] sm:$0xff] %vm2209, %v2178
      %2219 = vst.msk [vmem:[#allocation5 + $0x48] sm:$0xff] %vm2209, %v2180
      %2220 = vst.msk [vmem:[#allocation5 + $0x50] sm:$0xff] %vm2209, %v2182
      %2221 = vst.msk [vmem:[#allocation5 + $0x58] sm:$0xff] %vm2209, %v2184
      %2222 = vst.msk [vmem:[#allocation5 + $0x60] sm:$0xff] %vm2209, %v2186
      %2223 = vst.msk [vmem:[#allocation5 + $0x68] sm:$0xff] %vm2209, %v2188
      %2224 = vst.msk [vmem:[#allocation5 + $0x70] sm:$0xff] %vm2209, %v2190
      %2225 = vst.msk [vmem:[#allocation5 + $0x78] sm:$0xff] %vm2209, %v2192
      %v2226 = vld [vmem:[#allocation3 + $0x2] sm:$0xff]
      %v2227 = vld [vmem:[#allocation3 + $0xa] sm:$0xff]
      %v2228 = vld [vmem:[#allocation3 + $0x1a] sm:$0xff]
      %v2229 = vld [vmem:[#allocation3 + $0x22] sm:$0xff]
      %v2230 = vld [vmem:[#allocation3 + $0x32] sm:$0xff]
      %v2231 = vld [vmem:[#allocation3 + $0x3a] sm:$0xff]
      %v2232 = vld [vmem:[#allocation3 + $0x4a] sm:$0xff]
      %v2233 = vld [vmem:[#allocation3 + $0x52] sm:$0xff]
      %v2234 = vld [vmem:[#allocation3 + $0x62] sm:$0xff]
      %v2235 = vld [vmem:[#allocation3 + $0x6a] sm:$0xff]
      %v2236 = vld [vmem:[#allocation3 + $0x7a] sm:$0xff]
      %v2237 = vld [vmem:[#allocation3 + $0x82] sm:$0xff]
      %v2238 = vld [vmem:[#allocation3 + $0x92] sm:$0xff]
      %v2239 = vld [vmem:[#allocation3 + $0x9a] sm:$0xff]
      %v2240 = vld [vmem:[#allocation3 + $0xaa] sm:$0xff]
      %v2241 = vld [vmem:[#allocation3 + $0xb2] sm:$0xff]
      %v2242 = vld [vmem:[#allocation3 + $0xc2] sm:$0xff]
      %v2243 = vld [vmem:[#allocation3 + $0xca] sm:$0xff]
      %v2244 = vld [vmem:[#allocation3 + $0xda] sm:$0xff]
      %v2245 = vld [vmem:[#allocation3 + $0xe2] sm:$0xff]
      %v2246 = vld [vmem:[#allocation3 + $0xf2] sm:$0xff]
      %v2247 = vld [vmem:[#allocation3 + $0xfa] sm:$0xff]
      %v2248 = vld [vmem:[#allocation3 + $0x10a] sm:$0xff]
      %v2249 = vld [vmem:[#allocation3 + $0x112] sm:$0xff]
      %v2250 = vld [vmem:[#allocation3 + $0x122] sm:$0xff]
      %v2251 = vld [vmem:[#allocation3 + $0x12a] sm:$0xff]
      %v2252 = vld [vmem:[#allocation3 + $0x13a] sm:$0xff]
      %v2253 = vld [vmem:[#allocation3 + $0x142] sm:$0xff]
      %v2254 = vld [vmem:[#allocation3 + $0x152] sm:$0xff]
      %v2255 = vld [vmem:[#allocation3 + $0x15a] sm:$0xff]
      %v2256 = vld [vmem:[#allocation3 + $0x16a] sm:$0xff]
      %v2257 = vld [vmem:[#allocation3 + $0x172] sm:$0xff]
      %v2258 = vpack.c.bf16 %v2227, %v2226
      %v2259 = vpack.c.bf16 %v2229, %v2228
      %v2260 = vpack.c.bf16 %v2231, %v2230
      %v2261 = vpack.c.bf16 %v2233, %v2232
      %v2262 = vpack.c.bf16 %v2235, %v2234
      %v2263 = vpack.c.bf16 %v2237, %v2236
      %v2264 = vpack.c.bf16 %v2239, %v2238
      %v2265 = vpack.c.bf16 %v2241, %v2240
      %v2266 = vpack.c.bf16 %v2243, %v2242
      %v2267 = vpack.c.bf16 %v2245, %v2244
      %v2268 = vpack.c.bf16 %v2247, %v2246
      %v2269 = vpack.c.bf16 %v2249, %v2248
      %v2270 = vpack.c.bf16 %v2251, %v2250
      %v2271 = vpack.c.bf16 %v2253, %v2252
      %v2272 = vpack.c.bf16 %v2255, %v2254
      %v2273 = vpack.c.bf16 %v2257, %v2256
      %2290 = vrot.lane.b32.xlu0 %v2258, 16
      %v2291 = vpop.permute.xlu0 %2290
      %2292 = vrot.lane.b32.xlu0 %v2259, 16
      %v2293 = vpop.permute.xlu0 %2292
      %2294 = vrot.lane.b32.xlu0 %v2260, 16
      %v2295 = vpop.permute.xlu0 %2294
      %2296 = vrot.lane.b32.xlu0 %v2261, 16
      %v2297 = vpop.permute.xlu0 %2296
      %2298 = vrot.lane.b32.xlu0 %v2262, 16
      %v2299 = vpop.permute.xlu0 %2298
      %2300 = vrot.lane.b32.xlu0 %v2263, 16
      %v2301 = vpop.permute.xlu0 %2300
      %2302 = vrot.lane.b32.xlu0 %v2264, 16
      %v2303 = vpop.permute.xlu0 %2302
      %2304 = vrot.lane.b32.xlu0 %v2265, 16
      %v2305 = vpop.permute.xlu0 %2304
      %2306 = vrot.lane.b32.xlu0 %v2266, 16
      %v2307 = vpop.permute.xlu0 %2306
      %2308 = vrot.lane.b32.xlu0 %v2267, 16
      %v2309 = vpop.permute.xlu0 %2308
      %2310 = vrot.lane.b32.xlu0 %v2268, 16
      %v2311 = vpop.permute.xlu0 %2310
      %2312 = vrot.lane.b32.xlu0 %v2269, 16
      %v2313 = vpop.permute.xlu0 %2312
      %2314 = vrot.lane.b32.xlu0 %v2270, 16
      %v2315 = vpop.permute.xlu0 %2314
      %2316 = vrot.lane.b32.xlu0 %v2271, 16
      %v2317 = vpop.permute.xlu0 %2316
      %2318 = vrot.lane.b32.xlu0 %v2272, 16
      %v2319 = vpop.permute.xlu0 %2318
      %2320 = vrot.lane.b32.xlu0 %v2273, 16
      %v2321 = vpop.permute.xlu0 %2320
      %vm2338 = vcmask 195712
      %2339 = vst.msk [vmem:[#allocation5] sm:$0xff] %vm2338, %v2291
      %2340 = vst.msk [vmem:[#allocation5 + $0x8] sm:$0xff] %vm2338, %v2293
      %2341 = vst.msk [vmem:[#allocation5 + $0x10] sm:$0xff] %vm2338, %v2295
      %2342 = vst.msk [vmem:[#allocation5 + $0x18] sm:$0xff] %vm2338, %v2297
      %2343 = vst.msk [vmem:[#allocation5 + $0x20] sm:$0xff] %vm2338, %v2299
      %2344 = vst.msk [vmem:[#allocation5 + $0x28] sm:$0xff] %vm2338, %v2301
      %2345 = vst.msk [vmem:[#allocation5 + $0x30] sm:$0xff] %vm2338, %v2303
      %2346 = vst.msk [vmem:[#allocation5 + $0x38] sm:$0xff] %vm2338, %v2305
      %2347 = vst.msk [vmem:[#allocation5 + $0x40] sm:$0xff] %vm2338, %v2307
      %2348 = vst.msk [vmem:[#allocation5 + $0x48] sm:$0xff] %vm2338, %v2309
      %2349 = vst.msk [vmem:[#allocation5 + $0x50] sm:$0xff] %vm2338, %v2311
      %2350 = vst.msk [vmem:[#allocation5 + $0x58] sm:$0xff] %vm2338, %v2313
      %2351 = vst.msk [vmem:[#allocation5 + $0x60] sm:$0xff] %vm2338, %v2315
      %2352 = vst.msk [vmem:[#allocation5 + $0x68] sm:$0xff] %vm2338, %v2317
      %2353 = vst.msk [vmem:[#allocation5 + $0x70] sm:$0xff] %vm2338, %v2319
      %2354 = vst.msk [vmem:[#allocation5 + $0x78] sm:$0xff] %vm2338, %v2321
      %v2355 = vld [vmem:[%s2000] sm:$0xff]
      %v2356 = vld [vmem:[%s2000 + $0x8] sm:$0xff]
      %v2357 = vld [vmem:[%s2000 + $0x18] sm:$0xff]
      %v2358 = vld [vmem:[%s2000 + $0x20] sm:$0xff]
      %v2359 = vld [vmem:[%s2000 + $0x30] sm:$0xff]
      %v2360 = vld [vmem:[%s2000 + $0x38] sm:$0xff]
      %v2361 = vld [vmem:[%s2000 + $0x48] sm:$0xff]
      %v2362 = vld [vmem:[%s2000 + $0x50] sm:$0xff]
      %v2363 = vld [vmem:[%s2000 + $0x60] sm:$0xff]
      %v2364 = vld [vmem:[%s2000 + $0x68] sm:$0xff]
      %v2365 = vld [vmem:[%s2000 + $0x78] sm:$0xff]
      %v2366 = vld [vmem:[%s2000 + $0x80] sm:$0xff]
      %v2367 = vld [vmem:[%s2000 + $0x90] sm:$0xff]
      %v2368 = vld [vmem:[%s2000 + $0x98] sm:$0xff]
      %v2369 = vld [vmem:[%s2000 + $0xa8] sm:$0xff]
      %v2370 = vld [vmem:[%s2000 + $0xb0] sm:$0xff]
      %v2371 = vld [vmem:[%s2000 + $0xc0] sm:$0xff]
      %v2372 = vld [vmem:[%s2000 + $0xc8] sm:$0xff]
      %v2373 = vld [vmem:[%s2000 + $0xd8] sm:$0xff]
      %v2374 = vld [vmem:[%s2000 + $0xe0] sm:$0xff]
      %v2375 = vld [vmem:[%s2000 + $0xf0] sm:$0xff]
      %v2376 = vld [vmem:[%s2000 + $0xf8] sm:$0xff]
      %v2377 = vld [vmem:[%s2000 + $0x108] sm:$0xff]
      %v2378 = vld [vmem:[%s2000 + $0x110] sm:$0xff]
      %v2379 = vld [vmem:[%s2000 + $0x120] sm:$0xff]
      %v2380 = vld [vmem:[%s2000 + $0x128] sm:$0xff]
      %v2381 = vld [vmem:[%s2000 + $0x138] sm:$0xff]
      %v2382 = vld [vmem:[%s2000 + $0x140] sm:$0xff]
      %v2383 = vld [vmem:[%s2000 + $0x150] sm:$0xff]
      %v2384 = vld [vmem:[%s2000 + $0x158] sm:$0xff]
      %v2385 = vld [vmem:[%s2000 + $0x168] sm:$0xff]
      %v2386 = vld [vmem:[%s2000 + $0x170] sm:$0xff]
      %v2387 = vpack.c.bf16 %v2356, %v2355
      %v2388 = vpack.c.bf16 %v2358, %v2357
      %v2389 = vpack.c.bf16 %v2360, %v2359
      %v2390 = vpack.c.bf16 %v2362, %v2361
      %v2391 = vpack.c.bf16 %v2364, %v2363
      %v2392 = vpack.c.bf16 %v2366, %v2365
      %v2393 = vpack.c.bf16 %v2368, %v2367
      %v2394 = vpack.c.bf16 %v2370, %v2369
      %v2395 = vpack.c.bf16 %v2372, %v2371
      %v2396 = vpack.c.bf16 %v2374, %v2373
      %v2397 = vpack.c.bf16 %v2376, %v2375
      %v2398 = vpack.c.bf16 %v2378, %v2377
      %v2399 = vpack.c.bf16 %v2380, %v2379
      %v2400 = vpack.c.bf16 %v2382, %v2381
      %v2401 = vpack.c.bf16 %v2384, %v2383
      %v2402 = vpack.c.bf16 %v2386, %v2385
      %2419 = vrot.lane.b32.xlu0 %v2387, 24
      %v2420 = vpop.permute.xlu0 %2419
      %2421 = vrot.lane.b32.xlu0 %v2388, 24
      %v2422 = vpop.permute.xlu0 %2421
      %2423 = vrot.lane.b32.xlu0 %v2389, 24
      %v2424 = vpop.permute.xlu0 %2423
      %2425 = vrot.lane.b32.xlu0 %v2390, 24
      %v2426 = vpop.permute.xlu0 %2425
      %2427 = vrot.lane.b32.xlu0 %v2391, 24
      %v2428 = vpop.permute.xlu0 %2427
      %2429 = vrot.lane.b32.xlu0 %v2392, 24
      %v2430 = vpop.permute.xlu0 %2429
      %2431 = vrot.lane.b32.xlu0 %v2393, 24
      %v2432 = vpop.permute.xlu0 %2431
      %2433 = vrot.lane.b32.xlu0 %v2394, 24
      %v2434 = vpop.permute.xlu0 %2433
      %2435 = vrot.lane.b32.xlu0 %v2395, 24
      %v2436 = vpop.permute.xlu0 %2435
      %2437 = vrot.lane.b32.xlu0 %v2396, 24
      %v2438 = vpop.permute.xlu0 %2437
      %2439 = vrot.lane.b32.xlu0 %v2397, 24
      %v2440 = vpop.permute.xlu0 %2439
      %2441 = vrot.lane.b32.xlu0 %v2398, 24
      %v2442 = vpop.permute.xlu0 %2441
      %2443 = vrot.lane.b32.xlu0 %v2399, 24
      %v2444 = vpop.permute.xlu0 %2443
      %2445 = vrot.lane.b32.xlu0 %v2400, 24
      %v2446 = vpop.permute.xlu0 %2445
      %2447 = vrot.lane.b32.xlu0 %v2401, 24
      %v2448 = vpop.permute.xlu0 %2447
      %2449 = vrot.lane.b32.xlu0 %v2402, 24
      %v2450 = vpop.permute.xlu0 %2449
      %vm2467 = vcmask 261312
      %2468 = vst.msk [vmem:[#allocation5] sm:$0xff] %vm2467, %v2420
      %2469 = vst.msk [vmem:[#allocation5 + $0x8] sm:$0xff] %vm2467, %v2422
      %2470 = vst.msk [vmem:[#allocation5 + $0x10] sm:$0xff] %vm2467, %v2424
      %2471 = vst.msk [vmem:[#allocation5 + $0x18] sm:$0xff] %vm2467, %v2426
      %2472 = vst.msk [vmem:[#allocation5 + $0x20] sm:$0xff] %vm2467, %v2428
      %2473 = vst.msk [vmem:[#allocation5 + $0x28] sm:$0xff] %vm2467, %v2430
      %2474 = vst.msk [vmem:[#allocation5 + $0x30] sm:$0xff] %vm2467, %v2432
      %2475 = vst.msk [vmem:[#allocation5 + $0x38] sm:$0xff] %vm2467, %v2434
      %2476 = vst.msk [vmem:[#allocation5 + $0x40] sm:$0xff] %vm2467, %v2436
      %2477 = vst.msk [vmem:[#allocation5 + $0x48] sm:$0xff] %vm2467, %v2438
      %2478 = vst.msk [vmem:[#allocation5 + $0x50] sm:$0xff] %vm2467, %v2440
      %2479 = vst.msk [vmem:[#allocation5 + $0x58] sm:$0xff] %vm2467, %v2442
      %2480 = vst.msk [vmem:[#allocation5 + $0x60] sm:$0xff] %vm2467, %v2444
      %2481 = vst.msk [vmem:[#allocation5 + $0x68] sm:$0xff] %vm2467, %v2446
      %2482 = vst.msk [vmem:[#allocation5 + $0x70] sm:$0xff] %vm2467, %v2448
      %2483 = vst.msk [vmem:[#allocation5 + $0x78] sm:$0xff] %vm2467, %v2450
      %v2484 = vld [vmem:[%s2000 + $0x1] sm:$0xff]
      %v2485 = vld [vmem:[%s2000 + $0x9] sm:$0xff]
      %v2486 = vld [vmem:[%s2000 + $0x19] sm:$0xff]
      %v2487 = vld [vmem:[%s2000 + $0x21] sm:$0xff]
      %v2488 = vld [vmem:[%s2000 + $0x31] sm:$0xff]
      %v2489 = vld [vmem:[%s2000 + $0x39] sm:$0xff]
      %v2490 = vld [vmem:[%s2000 + $0x49] sm:$0xff]
      %v2491 = vld [vmem:[%s2000 + $0x51] sm:$0xff]
      %v2492 = vld [vmem:[%s2000 + $0x61] sm:$0xff]
      %v2493 = vld [vmem:[%s2000 + $0x69] sm:$0xff]
      %v2494 = vld [vmem:[%s2000 + $0x79] sm:$0xff]
      %v2495 = vld [vmem:[%s2000 + $0x81] sm:$0xff]
      %v2496 = vld [vmem:[%s2000 + $0x91] sm:$0xff]
      %v2497 = vld [vmem:[%s2000 + $0x99] sm:$0xff]
      %v2498 = vld [vmem:[%s2000 + $0xa9] sm:$0xff]
      %v2499 = vld [vmem:[%s2000 + $0xb1] sm:$0xff]
      %v2500 = vld [vmem:[%s2000 + $0xc1] sm:$0xff]
      %v2501 = vld [vmem:[%s2000 + $0xc9] sm:$0xff]
      %v2502 = vld [vmem:[%s2000 + $0xd9] sm:$0xff]
      %v2503 = vld [vmem:[%s2000 + $0xe1] sm:$0xff]
      %v2504 = vld [vmem:[%s2000 + $0xf1] sm:$0xff]
      %v2505 = vld [vmem:[%s2000 + $0xf9] sm:$0xff]
      %v2506 = vld [vmem:[%s2000 + $0x109] sm:$0xff]
      %v2507 = vld [vmem:[%s2000 + $0x111] sm:$0xff]
      %v2508 = vld [vmem:[%s2000 + $0x121] sm:$0xff]
      %v2509 = vld [vmem:[%s2000 + $0x129] sm:$0xff]
      %v2510 = vld [vmem:[%s2000 + $0x139] sm:$0xff]
      %v2511 = vld [vmem:[%s2000 + $0x141] sm:$0xff]
      %v2512 = vld [vmem:[%s2000 + $0x151] sm:$0xff]
      %v2513 = vld [vmem:[%s2000 + $0x159] sm:$0xff]
      %v2514 = vld [vmem:[%s2000 + $0x169] sm:$0xff]
      %v2515 = vld [vmem:[%s2000 + $0x171] sm:$0xff]
      %v2516 = vpack.c.bf16 %v2485, %v2484
      %v2517 = vpack.c.bf16 %v2487, %v2486
      %v2518 = vpack.c.bf16 %v2489, %v2488
      %v2519 = vpack.c.bf16 %v2491, %v2490
      %v2520 = vpack.c.bf16 %v2493, %v2492
      %v2521 = vpack.c.bf16 %v2495, %v2494
      %v2522 = vpack.c.bf16 %v2497, %v2496
      %v2523 = vpack.c.bf16 %v2499, %v2498
      %v2524 = vpack.c.bf16 %v2501, %v2500
      %v2525 = vpack.c.bf16 %v2503, %v2502
      %v2526 = vpack.c.bf16 %v2505, %v2504
      %v2527 = vpack.c.bf16 %v2507, %v2506
      %v2528 = vpack.c.bf16 %v2509, %v2508
      %v2529 = vpack.c.bf16 %v2511, %v2510
      %v2530 = vpack.c.bf16 %v2513, %v2512
      %v2531 = vpack.c.bf16 %v2515, %v2514
      %2548 = vrot.lane.b32.xlu0 %v2516, 32
      %v2549 = vpop.permute.xlu0 %2548
      %2550 = vrot.lane.b32.xlu0 %v2517, 32
      %v2551 = vpop.permute.xlu0 %2550
      %2552 = vrot.lane.b32.xlu0 %v2518, 32
      %v2553 = vpop.permute.xlu0 %2552
      %2554 = vrot.lane.b32.xlu0 %v2519, 32
      %v2555 = vpop.permute.xlu0 %2554
      %2556 = vrot.lane.b32.xlu0 %v2520, 32
      %v2557 = vpop.permute.xlu0 %2556
      %2558 = vrot.lane.b32.xlu0 %v2521, 32
      %v2559 = vpop.permute.xlu0 %2558
      %2560 = vrot.lane.b32.xlu0 %v2522, 32
      %v2561 = vpop.permute.xlu0 %2560
      %2562 = vrot.lane.b32.xlu0 %v2523, 32
      %v2563 = vpop.permute.xlu0 %2562
      %2564 = vrot.lane.b32.xlu0 %v2524, 32
      %v2565 = vpop.permute.xlu0 %2564
      %2566 = vrot.lane.b32.xlu0 %v2525, 32
      %v2567 = vpop.permute.xlu0 %2566
      %2568 = vrot.lane.b32.xlu0 %v2526, 32
      %v2569 = vpop.permute.xlu0 %2568
      %2570 = vrot.lane.b32.xlu0 %v2527, 32
      %v2571 = vpop.permute.xlu0 %2570
      %2572 = vrot.lane.b32.xlu0 %v2528, 32
      %v2573 = vpop.permute.xlu0 %2572
      %2574 = vrot.lane.b32.xlu0 %v2529, 32
      %v2575 = vpop.permute.xlu0 %2574
      %2576 = vrot.lane.b32.xlu0 %v2530, 32
      %v2577 = vpop.permute.xlu0 %2576
      %2578 = vrot.lane.b32.xlu0 %v2531, 32
      %v2579 = vpop.permute.xlu0 %2578
      %vm2596 = vcmask 326912
      %2597 = vst.msk [vmem:[#allocation5] sm:$0xff] %vm2596, %v2549
      %2598 = vst.msk [vmem:[#allocation5 + $0x8] sm:$0xff] %vm2596, %v2551
      %2599 = vst.msk [vmem:[#allocation5 + $0x10] sm:$0xff] %vm2596, %v2553
      %2600 = vst.msk [vmem:[#allocation5 + $0x18] sm:$0xff] %vm2596, %v2555
      %2601 = vst.msk [vmem:[#allocation5 + $0x20] sm:$0xff] %vm2596, %v2557
      %2602 = vst.msk [vmem:[#allocation5 + $0x28] sm:$0xff] %vm2596, %v2559
      %2603 = vst.msk [vmem:[#allocation5 + $0x30] sm:$0xff] %vm2596, %v2561
      %2604 = vst.msk [vmem:[#allocation5 + $0x38] sm:$0xff] %vm2596, %v2563
      %2605 = vst.msk [vmem:[#allocation5 + $0x40] sm:$0xff] %vm2596, %v2565
      %2606 = vst.msk [vmem:[#allocation5 + $0x48] sm:$0xff] %vm2596, %v2567
      %2607 = vst.msk [vmem:[#allocation5 + $0x50] sm:$0xff] %vm2596, %v2569
      %2608 = vst.msk [vmem:[#allocation5 + $0x58] sm:$0xff] %vm2596, %v2571
      %2609 = vst.msk [vmem:[#allocation5 + $0x60] sm:$0xff] %vm2596, %v2573
      %2610 = vst.msk [vmem:[#allocation5 + $0x68] sm:$0xff] %vm2596, %v2575
      %2611 = vst.msk [vmem:[#allocation5 + $0x70] sm:$0xff] %vm2596, %v2577
      %2612 = vst.msk [vmem:[#allocation5 + $0x78] sm:$0xff] %vm2596, %v2579
      %v2613 = vld [vmem:[%s2000 + $0x2] sm:$0xff]
      %v2614 = vld [vmem:[%s2000 + $0xa] sm:$0xff]
      %v2615 = vld [vmem:[%s2000 + $0x1a] sm:$0xff]
      %v2616 = vld [vmem:[%s2000 + $0x22] sm:$0xff]
      %v2617 = vld [vmem:[%s2000 + $0x32] sm:$0xff]
      %v2618 = vld [vmem:[%s2000 + $0x3a] sm:$0xff]
      %v2619 = vld [vmem:[%s2000 + $0x4a] sm:$0xff]
      %v2620 = vld [vmem:[%s2000 + $0x52] sm:$0xff]
      %v2621 = vld [vmem:[%s2000 + $0x62] sm:$0xff]
      %v2622 = vld [vmem:[%s2000 + $0x6a] sm:$0xff]
      %v2623 = vld [vmem:[%s2000 + $0x7a] sm:$0xff]
      %v2624 = vld [vmem:[%s2000 + $0x82] sm:$0xff]
      %v2625 = vld [vmem:[%s2000 + $0x92] sm:$0xff]
      %v2626 = vld [vmem:[%s2000 + $0x9a] sm:$0xff]
      %v2627 = vld [vmem:[%s2000 + $0xaa] sm:$0xff]
      %v2628 = vld [vmem:[%s2000 + $0xb2] sm:$0xff]
      %v2629 = vld [vmem:[%s2000 + $0xc2] sm:$0xff]
      %v2630 = vld [vmem:[%s2000 + $0xca] sm:$0xff]
      %v2631 = vld [vmem:[%s2000 + $0xda] sm:$0xff]
      %v2632 = vld [vmem:[%s2000 + $0xe2] sm:$0xff]
      %v2633 = vld [vmem:[%s2000 + $0xf2] sm:$0xff]
      %v2634 = vld [vmem:[%s2000 + $0xfa] sm:$0xff]
      %v2635 = vld [vmem:[%s2000 + $0x10a] sm:$0xff]
      %v2636 = vld [vmem:[%s2000 + $0x112] sm:$0xff]
      %v2637 = vld [vmem:[%s2000 + $0x122] sm:$0xff]
      %v2638 = vld [vmem:[%s2000 + $0x12a] sm:$0xff]
      %v2639 = vld [vmem:[%s2000 + $0x13a] sm:$0xff]
      %v2640 = vld [vmem:[%s2000 + $0x142] sm:$0xff]
      %v2641 = vld [vmem:[%s2000 + $0x152] sm:$0xff]
      %v2642 = vld [vmem:[%s2000 + $0x15a] sm:$0xff]
      %v2643 = vld [vmem:[%s2000 + $0x16a] sm:$0xff]
      %v2644 = vld [vmem:[%s2000 + $0x172] sm:$0xff]
      %v2645 = vpack.c.bf16 %v2614, %v2613
      %v2646 = vpack.c.bf16 %v2616, %v2615
      %v2647 = vpack.c.bf16 %v2618, %v2617
      %v2648 = vpack.c.bf16 %v2620, %v2619
      %v2649 = vpack.c.bf16 %v2622, %v2621
      %v2650 = vpack.c.bf16 %v2624, %v2623
      %v2651 = vpack.c.bf16 %v2626, %v2625
      %v2652 = vpack.c.bf16 %v2628, %v2627
      %v2653 = vpack.c.bf16 %v2630, %v2629
      %v2654 = vpack.c.bf16 %v2632, %v2631
      %v2655 = vpack.c.bf16 %v2634, %v2633
      %v2656 = vpack.c.bf16 %v2636, %v2635
      %v2657 = vpack.c.bf16 %v2638, %v2637
      %v2658 = vpack.c.bf16 %v2640, %v2639
      %v2659 = vpack.c.bf16 %v2642, %v2641
      %v2660 = vpack.c.bf16 %v2644, %v2643
      %2677 = vrot.lane.b32.xlu0 %v2645, 40
      %v2678 = vpop.permute.xlu0 %2677
      %2679 = vrot.lane.b32.xlu0 %v2646, 40
      %v2680 = vpop.permute.xlu0 %2679
      %2681 = vrot.lane.b32.xlu0 %v2647, 40
      %v2682 = vpop.permute.xlu0 %2681
      %2683 = vrot.lane.b32.xlu0 %v2648, 40
      %v2684 = vpop.permute.xlu0 %2683
      %2685 = vrot.lane.b32.xlu0 %v2649, 40
      %v2686 = vpop.permute.xlu0 %2685
      %2687 = vrot.lane.b32.xlu0 %v2650, 40
      %v2688 = vpop.permute.xlu0 %2687
      %2689 = vrot.lane.b32.xlu0 %v2651, 40
      %v2690 = vpop.permute.xlu0 %2689
      %2691 = vrot.lane.b32.xlu0 %v2652, 40
      %v2692 = vpop.permute.xlu0 %2691
      %2693 = vrot.lane.b32.xlu0 %v2653, 40
      %v2694 = vpop.permute.xlu0 %2693
      %2695 = vrot.lane.b32.xlu0 %v2654, 40
      %v2696 = vpop.permute.xlu0 %2695
      %2697 = vrot.lane.b32.xlu0 %v2655, 40
      %v2698 = vpop.permute.xlu0 %2697
      %2699 = vrot.lane.b32.xlu0 %v2656, 40
      %v2700 = vpop.permute.xlu0 %2699
      %2701 = vrot.lane.b32.xlu0 %v2657, 40
      %v2702 = vpop.permute.xlu0 %2701
      %2703 = vrot.lane.b32.xlu0 %v2658, 40
      %v2704 = vpop.permute.xlu0 %2703
      %2705 = vrot.lane.b32.xlu0 %v2659, 40
      %v2706 = vpop.permute.xlu0 %2705
      %2707 = vrot.lane.b32.xlu0 %v2660, 40
      %v2708 = vpop.permute.xlu0 %2707
      %vm2725 = vcmask 392512
      %2726 = vst.msk [vmem:[#allocation5] sm:$0xff] %vm2725, %v2678
      %2727 = vst.msk [vmem:[#allocation5 + $0x8] sm:$0xff] %vm2725, %v2680
      %2728 = vst.msk [vmem:[#allocation5 + $0x10] sm:$0xff] %vm2725, %v2682
      %2729 = vst.msk [vmem:[#allocation5 + $0x18] sm:$0xff] %vm2725, %v2684
      %2730 = vst.msk [vmem:[#allocation5 + $0x20] sm:$0xff] %vm2725, %v2686
      %2731 = vst.msk [vmem:[#allocation5 + $0x28] sm:$0xff] %vm2725, %v2688
      %2732 = vst.msk [vmem:[#allocation5 + $0x30] sm:$0xff] %vm2725, %v2690
      %2733 = vst.msk [vmem:[#allocation5 + $0x38] sm:$0xff] %vm2725, %v2692
      %2734 = vst.msk [vmem:[#allocation5 + $0x40] sm:$0xff] %vm2725, %v2694
      %2735 = vst.msk [vmem:[#allocation5 + $0x48] sm:$0xff] %vm2725, %v2696
      %2736 = vst.msk [vmem:[#allocation5 + $0x50] sm:$0xff] %vm2725, %v2698
      %2737 = vst.msk [vmem:[#allocation5 + $0x58] sm:$0xff] %vm2725, %v2700
      %2738 = vst.msk [vmem:[#allocation5 + $0x60] sm:$0xff] %vm2725, %v2702
      %2739 = vst.msk [vmem:[#allocation5 + $0x68] sm:$0xff] %vm2725, %v2704
      %2740 = vst.msk [vmem:[#allocation5 + $0x70] sm:$0xff] %vm2725, %v2706
      %2741 = vst.msk [vmem:[#allocation5 + $0x78] sm:$0xff] %vm2725, %v2708
      %s2742 = scalar_lea.vmem [#allocation3], 48
      %v2743 = vld [vmem:[%s2742] sm:$0xff]
      %v2744 = vld [vmem:[%s2742 + $0x8] sm:$0xff]
      %v2745 = vld [vmem:[%s2742 + $0x18] sm:$0xff]
      %v2746 = vld [vmem:[%s2742 + $0x20] sm:$0xff]
      %v2747 = vld [vmem:[%s2742 + $0x30] sm:$0xff]
      %v2748 = vld [vmem:[%s2742 + $0x38] sm:$0xff]
      %v2749 = vld [vmem:[%s2742 + $0x48] sm:$0xff]
      %v2750 = vld [vmem:[%s2742 + $0x50] sm:$0xff]
      %v2751 = vld [vmem:[%s2742 + $0x60] sm:$0xff]
      %v2752 = vld [vmem:[%s2742 + $0x68] sm:$0xff]
      %v2753 = vld [vmem:[%s2742 + $0x78] sm:$0xff]
      %v2754 = vld [vmem:[%s2742 + $0x80] sm:$0xff]
      %v2755 = vld [vmem:[%s2742 + $0x90] sm:$0xff]
      %v2756 = vld [vmem:[%s2742 + $0x98] sm:$0xff]
      %v2757 = vld [vmem:[%s2742 + $0xa8] sm:$0xff]
      %v2758 = vld [vmem:[%s2742 + $0xb0] sm:$0xff]
      %v2759 = vld [vmem:[%s2742 + $0xc0] sm:$0xff]
      %v2760 = vld [vmem:[%s2742 + $0xc8] sm:$0xff]
      %v2761 = vld [vmem:[%s2742 + $0xd8] sm:$0xff]
      %v2762 = vld [vmem:[%s2742 + $0xe0] sm:$0xff]
      %v2763 = vld [vmem:[%s2742 + $0xf0] sm:$0xff]
      %v2764 = vld [vmem:[%s2742 + $0xf8] sm:$0xff]
      %v2765 = vld [vmem:[%s2742 + $0x108] sm:$0xff]
      %v2766 = vld [vmem:[%s2742 + $0x110] sm:$0xff]
      %v2767 = vld [vmem:[%s2742 + $0x120] sm:$0xff]
      %v2768 = vld [vmem:[%s2742 + $0x128] sm:$0xff]
      %v2769 = vld [vmem:[%s2742 + $0x138] sm:$0xff]
      %v2770 = vld [vmem:[%s2742 + $0x140] sm:$0xff]
      %v2771 = vld [vmem:[%s2742 + $0x150] sm:$0xff]
      %v2772 = vld [vmem:[%s2742 + $0x158] sm:$0xff]
      %v2773 = vld [vmem:[%s2742 + $0x168] sm:$0xff]
      %v2774 = vld [vmem:[%s2742 + $0x170] sm:$0xff]
      %v2775 = vpack.c.bf16 %v2744, %v2743
      %v2776 = vpack.c.bf16 %v2746, %v2745
      %v2777 = vpack.c.bf16 %v2748, %v2747
      %v2778 = vpack.c.bf16 %v2750, %v2749
      %v2779 = vpack.c.bf16 %v2752, %v2751
      %v2780 = vpack.c.bf16 %v2754, %v2753
      %v2781 = vpack.c.bf16 %v2756, %v2755
      %v2782 = vpack.c.bf16 %v2758, %v2757
      %v2783 = vpack.c.bf16 %v2760, %v2759
      %v2784 = vpack.c.bf16 %v2762, %v2761
      %v2785 = vpack.c.bf16 %v2764, %v2763
      %v2786 = vpack.c.bf16 %v2766, %v2765
      %v2787 = vpack.c.bf16 %v2768, %v2767
      %v2788 = vpack.c.bf16 %v2770, %v2769
      %v2789 = vpack.c.bf16 %v2772, %v2771
      %v2790 = vpack.c.bf16 %v2774, %v2773
      %2807 = vrot.lane.b32.xlu0 %v2775, 48
      %v2808 = vpop.permute.xlu0 %2807
      %2809 = vrot.lane.b32.xlu0 %v2776, 48
      %v2810 = vpop.permute.xlu0 %2809
      %2811 = vrot.lane.b32.xlu0 %v2777, 48
      %v2812 = vpop.permute.xlu0 %2811
      %2813 = vrot.lane.b32.xlu0 %v2778, 48
      %v2814 = vpop.permute.xlu0 %2813
      %2815 = vrot.lane.b32.xlu0 %v2779, 48
      %v2816 = vpop.permute.xlu0 %2815
      %2817 = vrot.lane.b32.xlu0 %v2780, 48
      %v2818 = vpop.permute.xlu0 %2817
      %2819 = vrot.lane.b32.xlu0 %v2781, 48
      %v2820 = vpop.permute.xlu0 %2819
      %2821 = vrot.lane.b32.xlu0 %v2782, 48
      %v2822 = vpop.permute.xlu0 %2821
      %2823 = vrot.lane.b32.xlu0 %v2783, 48
      %v2824 = vpop.permute.xlu0 %2823
      %2825 = vrot.lane.b32.xlu0 %v2784, 48
      %v2826 = vpop.permute.xlu0 %2825
      %2827 = vrot.lane.b32.xlu0 %v2785, 48
      %v2828 = vpop.permute.xlu0 %2827
      %2829 = vrot.lane.b32.xlu0 %v2786, 48
      %v2830 = vpop.permute.xlu0 %2829
      %2831 = vrot.lane.b32.xlu0 %v2787, 48
      %v2832 = vpop.permute.xlu0 %2831
      %2833 = vrot.lane.b32.xlu0 %v2788, 48
      %v2834 = vpop.permute.xlu0 %2833
      %2835 = vrot.lane.b32.xlu0 %v2789, 48
      %v2836 = vpop.permute.xlu0 %2835
      %2837 = vrot.lane.b32.xlu0 %v2790, 48
      %v2838 = vpop.permute.xlu0 %2837
      %vm2855 = vcmask 458112
      %2856 = vst.msk [vmem:[#allocation5] sm:$0xff] %vm2855, %v2808
      %2857 = vst.msk [vmem:[#allocation5 + $0x8] sm:$0xff] %vm2855, %v2810
      %2858 = vst.msk [vmem:[#allocation5 + $0x10] sm:$0xff] %vm2855, %v2812
      %2859 = vst.msk [vmem:[#allocation5 + $0x18] sm:$0xff] %vm2855, %v2814
      %2860 = vst.msk [vmem:[#allocation5 + $0x20] sm:$0xff] %vm2855, %v2816
      %2861 = vst.msk [vmem:[#allocation5 + $0x28] sm:$0xff] %vm2855, %v2818
      %2862 = vst.msk [vmem:[#allocation5 + $0x30] sm:$0xff] %vm2855, %v2820
      %2863 = vst.msk [vmem:[#allocation5 + $0x38] sm:$0xff] %vm2855, %v2822
      %2864 = vst.msk [vmem:[#allocation5 + $0x40] sm:$0xff] %vm2855, %v2824
      %2865 = vst.msk [vmem:[#allocation5 + $0x48] sm:$0xff] %vm2855, %v2826
      %2866 = vst.msk [vmem:[#allocation5 + $0x50] sm:$0xff] %vm2855, %v2828
      %2867 = vst.msk [vmem:[#allocation5 + $0x58] sm:$0xff] %vm2855, %v2830
      %2868 = vst.msk [vmem:[#allocation5 + $0x60] sm:$0xff] %vm2855, %v2832
      %2869 = vst.msk [vmem:[#allocation5 + $0x68] sm:$0xff] %vm2855, %v2834
      %2870 = vst.msk [vmem:[#allocation5 + $0x70] sm:$0xff] %vm2855, %v2836
      %2871 = vst.msk [vmem:[#allocation5 + $0x78] sm:$0xff] %vm2855, %v2838
      %v2872 = vld [vmem:[%s2742 + $0x1] sm:$0xff]
      %v2873 = vld [vmem:[%s2742 + $0x9] sm:$0xff]
      %v2874 = vld [vmem:[%s2742 + $0x19] sm:$0xff]
      %v2875 = vld [vmem:[%s2742 + $0x21] sm:$0xff]
      %v2876 = vld [vmem:[%s2742 + $0x31] sm:$0xff]
      %v2877 = vld [vmem:[%s2742 + $0x39] sm:$0xff]
      %v2878 = vld [vmem:[%s2742 + $0x49] sm:$0xff]
      %v2879 = vld [vmem:[%s2742 + $0x51] sm:$0xff]
      %v2880 = vld [vmem:[%s2742 + $0x61] sm:$0xff]
      %v2881 = vld [vmem:[%s2742 + $0x69] sm:$0xff]
      %v2882 = vld [vmem:[%s2742 + $0x79] sm:$0xff]
      %v2883 = vld [vmem:[%s2742 + $0x81] sm:$0xff]
      %v2884 = vld [vmem:[%s2742 + $0x91] sm:$0xff]
      %v2885 = vld [vmem:[%s2742 + $0x99] sm:$0xff]
      %v2886 = vld [vmem:[%s2742 + $0xa9] sm:$0xff]
      %v2887 = vld [vmem:[%s2742 + $0xb1] sm:$0xff]
      %v2888 = vld [vmem:[%s2742 + $0xc1] sm:$0xff]
      %v2889 = vld [vmem:[%s2742 + $0xc9] sm:$0xff]
      %v2890 = vld [vmem:[%s2742 + $0xd9] sm:$0xff]
      %v2891 = vld [vmem:[%s2742 + $0xe1] sm:$0xff]
      %v2892 = vld [vmem:[%s2742 + $0xf1] sm:$0xff]
      %v2893 = vld [vmem:[%s2742 + $0xf9] sm:$0xff]
      %v2894 = vld [vmem:[%s2742 + $0x109] sm:$0xff]
      %v2895 = vld [vmem:[%s2742 + $0x111] sm:$0xff]
      %v2896 = vld [vmem:[%s2742 + $0x121] sm:$0xff]
      %v2897 = vld [vmem:[%s2742 + $0x129] sm:$0xff]
      %v2898 = vld [vmem:[%s2742 + $0x139] sm:$0xff]
      %v2899 = vld [vmem:[%s2742 + $0x141] sm:$0xff]
      %v2900 = vld [vmem:[%s2742 + $0x151] sm:$0xff]
      %v2901 = vld [vmem:[%s2742 + $0x159] sm:$0xff]
      %v2902 = vld [vmem:[%s2742 + $0x169] sm:$0xff]
      %v2903 = vld [vmem:[%s2742 + $0x171] sm:$0xff]
      %v2904 = vpack.c.bf16 %v2873, %v2872
      %v2905 = vpack.c.bf16 %v2875, %v2874
      %v2906 = vpack.c.bf16 %v2877, %v2876
      %v2907 = vpack.c.bf16 %v2879, %v2878
      %v2908 = vpack.c.bf16 %v2881, %v2880
      %v2909 = vpack.c.bf16 %v2883, %v2882
      %v2910 = vpack.c.bf16 %v2885, %v2884
      %v2911 = vpack.c.bf16 %v2887, %v2886
      %v2912 = vpack.c.bf16 %v2889, %v2888
      %v2913 = vpack.c.bf16 %v2891, %v2890
      %v2914 = vpack.c.bf16 %v2893, %v2892
      %v2915 = vpack.c.bf16 %v2895, %v2894
      %v2916 = vpack.c.bf16 %v2897, %v2896
      %v2917 = vpack.c.bf16 %v2899, %v2898
      %v2918 = vpack.c.bf16 %v2901, %v2900
      %v2919 = vpack.c.bf16 %v2903, %v2902
      %2936 = vrot.lane.b32.xlu0 %v2904, 56
      %v2937 = vpop.permute.xlu0 %2936
      %2938 = vrot.lane.b32.xlu0 %v2905, 56
      %v2939 = vpop.permute.xlu0 %2938
      %2940 = vrot.lane.b32.xlu0 %v2906, 56
      %v2941 = vpop.permute.xlu0 %2940
      %2942 = vrot.lane.b32.xlu0 %v2907, 56
      %v2943 = vpop.permute.xlu0 %2942
      %2944 = vrot.lane.b32.xlu0 %v2908, 56
      %v2945 = vpop.permute.xlu0 %2944
      %2946 = vrot.lane.b32.xlu0 %v2909, 56
      %v2947 = vpop.permute.xlu0 %2946
      %2948 = vrot.lane.b32.xlu0 %v2910, 56
      %v2949 = vpop.permute.xlu0 %2948
      %2950 = vrot.lane.b32.xlu0 %v2911, 56
      %v2951 = vpop.permute.xlu0 %2950
      %2952 = vrot.lane.b32.xlu0 %v2912, 56
      %v2953 = vpop.permute.xlu0 %2952
      %2954 = vrot.lane.b32.xlu0 %v2913, 56
      %v2955 = vpop.permute.xlu0 %2954
      %2956 = vrot.lane.b32.xlu0 %v2914, 56
      %v2957 = vpop.permute.xlu0 %2956
      %2958 = vrot.lane.b32.xlu0 %v2915, 56
      %v2959 = vpop.permute.xlu0 %2958
      %2960 = vrot.lane.b32.xlu0 %v2916, 56
      %v2961 = vpop.permute.xlu0 %2960
      %2962 = vrot.lane.b32.xlu0 %v2917, 56
      %v2963 = vpop.permute.xlu0 %2962
      %2964 = vrot.lane.b32.xlu0 %v2918, 56
      %v2965 = vpop.permute.xlu0 %2964
      %2966 = vrot.lane.b32.xlu0 %v2919, 56
      %v2967 = vpop.permute.xlu0 %2966
      %vm2984 = vcmask 523712
      %2985 = vst.msk [vmem:[#allocation5] sm:$0xff] %vm2984, %v2937
      %2986 = vst.msk [vmem:[#allocation5 + $0x8] sm:$0xff] %vm2984, %v2939
      %2987 = vst.msk [vmem:[#allocation5 + $0x10] sm:$0xff] %vm2984, %v2941
      %2988 = vst.msk [vmem:[#allocation5 + $0x18] sm:$0xff] %vm2984, %v2943
      %2989 = vst.msk [vmem:[#allocation5 + $0x20] sm:$0xff] %vm2984, %v2945
      %2990 = vst.msk [vmem:[#allocation5 + $0x28] sm:$0xff] %vm2984, %v2947
      %2991 = vst.msk [vmem:[#allocation5 + $0x30] sm:$0xff] %vm2984, %v2949
      %2992 = vst.msk [vmem:[#allocation5 + $0x38] sm:$0xff] %vm2984, %v2951
      %2993 = vst.msk [vmem:[#allocation5 + $0x40] sm:$0xff] %vm2984, %v2953
      %2994 = vst.msk [vmem:[#allocation5 + $0x48] sm:$0xff] %vm2984, %v2955
      %2995 = vst.msk [vmem:[#allocation5 + $0x50] sm:$0xff] %vm2984, %v2957
      %2996 = vst.msk [vmem:[#allocation5 + $0x58] sm:$0xff] %vm2984, %v2959
      %2997 = vst.msk [vmem:[#allocation5 + $0x60] sm:$0xff] %vm2984, %v2961
      %2998 = vst.msk [vmem:[#allocation5 + $0x68] sm:$0xff] %vm2984, %v2963
      %2999 = vst.msk [vmem:[#allocation5 + $0x70] sm:$0xff] %vm2984, %v2965
      %3000 = vst.msk [vmem:[#allocation5 + $0x78] sm:$0xff] %vm2984, %v2967
      %v3001 = vld [vmem:[%s2742 + $0x2] sm:$0xff]
      %v3002 = vld [vmem:[%s2742 + $0xa] sm:$0xff]
      %v3003 = vld [vmem:[%s2742 + $0x1a] sm:$0xff]
      %v3004 = vld [vmem:[%s2742 + $0x22] sm:$0xff]
      %v3005 = vld [vmem:[%s2742 + $0x32] sm:$0xff]
      %v3006 = vld [vmem:[%s2742 + $0x3a] sm:$0xff]
      %v3007 = vld [vmem:[%s2742 + $0x4a] sm:$0xff]
      %v3008 = vld [vmem:[%s2742 + $0x52] sm:$0xff]
      %v3009 = vld [vmem:[%s2742 + $0x62] sm:$0xff]
      %v3010 = vld [vmem:[%s2742 + $0x6a] sm:$0xff]
      %v3011 = vld [vmem:[%s2742 + $0x7a] sm:$0xff]
      %v3012 = vld [vmem:[%s2742 + $0x82] sm:$0xff]
      %v3013 = vld [vmem:[%s2742 + $0x92] sm:$0xff]
      %v3014 = vld [vmem:[%s2742 + $0x9a] sm:$0xff]
      %v3015 = vld [vmem:[%s2742 + $0xaa] sm:$0xff]
      %v3016 = vld [vmem:[%s2742 + $0xb2] sm:$0xff]
      %v3017 = vld [vmem:[%s2742 + $0xc2] sm:$0xff]
      %v3018 = vld [vmem:[%s2742 + $0xca] sm:$0xff]
      %v3019 = vld [vmem:[%s2742 + $0xda] sm:$0xff]
      %v3020 = vld [vmem:[%s2742 + $0xe2] sm:$0xff]
      %v3021 = vld [vmem:[%s2742 + $0xf2] sm:$0xff]
      %v3022 = vld [vmem:[%s2742 + $0xfa] sm:$0xff]
      %v3023 = vld [vmem:[%s2742 + $0x10a] sm:$0xff]
      %v3024 = vld [vmem:[%s2742 + $0x112] sm:$0xff]
      %v3025 = vld [vmem:[%s2742 + $0x122] sm:$0xff]
      %v3026 = vld [vmem:[%s2742 + $0x12a] sm:$0xff]
      %v3027 = vld [vmem:[%s2742 + $0x13a] sm:$0xff]
      %v3028 = vld [vmem:[%s2742 + $0x142] sm:$0xff]
      %v3029 = vld [vmem:[%s2742 + $0x152] sm:$0xff]
      %v3030 = vld [vmem:[%s2742 + $0x15a] sm:$0xff]
      %v3031 = vld [vmem:[%s2742 + $0x16a] sm:$0xff]
      %v3032 = vld [vmem:[%s2742 + $0x172] sm:$0xff]
      %v3033 = vpack.c.bf16 %v3002, %v3001
      %v3034 = vpack.c.bf16 %v3004, %v3003
      %v3035 = vpack.c.bf16 %v3006, %v3005
      %v3036 = vpack.c.bf16 %v3008, %v3007
      %v3037 = vpack.c.bf16 %v3010, %v3009
      %v3038 = vpack.c.bf16 %v3012, %v3011
      %v3039 = vpack.c.bf16 %v3014, %v3013
      %v3040 = vpack.c.bf16 %v3016, %v3015
      %v3041 = vpack.c.bf16 %v3018, %v3017
      %v3042 = vpack.c.bf16 %v3020, %v3019
      %v3043 = vpack.c.bf16 %v3022, %v3021
      %v3044 = vpack.c.bf16 %v3024, %v3023
      %v3045 = vpack.c.bf16 %v3026, %v3025
      %v3046 = vpack.c.bf16 %v3028, %v3027
      %v3047 = vpack.c.bf16 %v3030, %v3029
      %v3048 = vpack.c.bf16 %v3032, %v3031
      %3065 = vrot.lane.b32.xlu0 %v3033, 64
      %v3066 = vpop.permute.xlu0 %3065
      %3067 = vrot.lane.b32.xlu0 %v3034, 64
      %v3068 = vpop.permute.xlu0 %3067
      %3069 = vrot.lane.b32.xlu0 %v3035, 64
      %v3070 = vpop.permute.xlu0 %3069
      %3071 = vrot.lane.b32.xlu0 %v3036, 64
      %v3072 = vpop.permute.xlu0 %3071
      %3073 = vrot.lane.b32.xlu0 %v3037, 64
      %v3074 = vpop.permute.xlu0 %3073
      %3075 = vrot.lane.b32.xlu0 %v3038, 64
      %v3076 = vpop.permute.xlu0 %3075
      %3077 = vrot.lane.b32.xlu0 %v3039, 64
      %v3078 = vpop.permute.xlu0 %3077
      %3079 = vrot.lane.b32.xlu0 %v3040, 64
      %v3080 = vpop.permute.xlu0 %3079
      %3081 = vrot.lane.b32.xlu0 %v3041, 64
      %v3082 = vpop.permute.xlu0 %3081
      %3083 = vrot.lane.b32.xlu0 %v3042, 64
      %v3084 = vpop.permute.xlu0 %3083
      %3085 = vrot.lane.b32.xlu0 %v3043, 64
      %v3086 = vpop.permute.xlu0 %3085
      %3087 = vrot.lane.b32.xlu0 %v3044, 64
      %v3088 = vpop.permute.xlu0 %3087
      %3089 = vrot.lane.b32.xlu0 %v3045, 64
      %v3090 = vpop.permute.xlu0 %3089
      %3091 = vrot.lane.b32.xlu0 %v3046, 64
      %v3092 = vpop.permute.xlu0 %3091
      %3093 = vrot.lane.b32.xlu0 %v3047, 64
      %v3094 = vpop.permute.xlu0 %3093
      %3095 = vrot.lane.b32.xlu0 %v3048, 64
      %v3096 = vpop.permute.xlu0 %3095
      %vm3113 = vcmask 589312
      %3114 = vst.msk [vmem:[#allocation5] sm:$0xff] %vm3113, %v3066
      %3115 = vst.msk [vmem:[#allocation5 + $0x8] sm:$0xff] %vm3113, %v3068
      %3116 = vst.msk [vmem:[#allocation5 + $0x10] sm:$0xff] %vm3113, %v3070
      %3117 = vst.msk [vmem:[#allocation5 + $0x18] sm:$0xff] %vm3113, %v3072
      %3118 = vst.msk [vmem:[#allocation5 + $0x20] sm:$0xff] %vm3113, %v3074
      %3119 = vst.msk [vmem:[#allocation5 + $0x28] sm:$0xff] %vm3113, %v3076
      %3120 = vst.msk [vmem:[#allocation5 + $0x30] sm:$0xff] %vm3113, %v3078
      %3121 = vst.msk [vmem:[#allocation5 + $0x38] sm:$0xff] %vm3113, %v3080
      %3122 = vst.msk [vmem:[#allocation5 + $0x40] sm:$0xff] %vm3113, %v3082
      %3123 = vst.msk [vmem:[#allocation5 + $0x48] sm:$0xff] %vm3113, %v3084
      %3124 = vst.msk [vmem:[#allocation5 + $0x50] sm:$0xff] %vm3113, %v3086
      %3125 = vst.msk [vmem:[#allocation5 + $0x58] sm:$0xff] %vm3113, %v3088
      %3126 = vst.msk [vmem:[#allocation5 + $0x60] sm:$0xff] %vm3113, %v3090
      %3127 = vst.msk [vmem:[#allocation5 + $0x68] sm:$0xff] %vm3113, %v3092
      %3128 = vst.msk [vmem:[#allocation5 + $0x70] sm:$0xff] %vm3113, %v3094
      %3129 = vst.msk [vmem:[#allocation5 + $0x78] sm:$0xff] %vm3113, %v3096
      %v3130 = vld [vmem:[#allocation5] sm:$0xff]
      %v3131 = vld [vmem:[#allocation5 + $0x8] sm:$0xff]
      %v3132 = vld [vmem:[#allocation5 + $0x10] sm:$0xff]
      %v3133 = vld [vmem:[#allocation5 + $0x18] sm:$0xff]
      %v3134 = vld [vmem:[#allocation5 + $0x20] sm:$0xff]
      %v3135 = vld [vmem:[#allocation5 + $0x28] sm:$0xff]
      %v3136 = vld [vmem:[#allocation5 + $0x30] sm:$0xff]
      %v3137 = vld [vmem:[#allocation5 + $0x38] sm:$0xff]
      %v3138 = vld [vmem:[#allocation5 + $0x40] sm:$0xff]
      %v3139 = vld [vmem:[#allocation5 + $0x48] sm:$0xff]
      %v3140 = vld [vmem:[#allocation5 + $0x50] sm:$0xff]
      %v3141 = vld [vmem:[#allocation5 + $0x58] sm:$0xff]
      %v3142 = vld [vmem:[#allocation5 + $0x60] sm:$0xff]
      %v3143 = vld [vmem:[#allocation5 + $0x68] sm:$0xff]
      %v3144 = vld [vmem:[#allocation5 + $0x70] sm:$0xff]
      %v3145 = vld [vmem:[#allocation5 + $0x78] sm:$0xff]
      %v3146 = vld [vmem:[%s4] sm:$0xf]
      %v3147 = vld [vmem:[%s4 + $0x4] sm:$0xf]
      %v3148 = vld [vmem:[%s4 + $0x8] sm:$0xf]
      %v3149 = vld [vmem:[%s4 + $0xc] sm:$0xf]
      %v3150 = vld [vmem:[%s4 + $0x10] sm:$0xf]
      %v3151 = vld [vmem:[%s4 + $0x14] sm:$0xf]
      %v3152 = vld [vmem:[%s4 + $0x18] sm:$0xf]
      %v3153 = vld [vmem:[%s4 + $0x1c] sm:$0xf]
      %v3154 = vld [vmem:[%s4 + $0x20] sm:$0xf]
      %v3164 = vunpack.c.l.b16 %v3146
      %v3165 = vunpack.c.l.b16 %v3147
      %v3166 = vunpack.c.l.b16 %v3148
      %v3167 = vunpack.c.l.b16 %v3149
      %v3168 = vunpack.c.l.b16 %v3150
      %v3169 = vunpack.c.l.b16 %v3151
      %v3170 = vunpack.c.l.b16 %v3152
      %v3171 = vunpack.c.l.b16 %v3153
      %v3172 = vunpack.c.l.b16 %v3154
      %v3173 = vpack.c.b16 %v3165, %v3164
      %v3174 = vpack.c.b16 %v3167, %v3166
      %v3175 = vpack.c.b16 %v3169, %v3168
      %v3176 = vpack.c.b16 %v3171, %v3170
      %v3177 = vpack.c.b16 %v3172, %v3172
      %vm3182 = vcmask 588800
      %v3184 = vsel %vm3182, %v3130, 0
      %v3187 = vsel %vm3182, %v3131, 0
      %v3190 = vsel %vm3182, %v3132, 0
      %v3193 = vsel %vm3182, %v3133, 0
      %v3196 = vsel %vm3182, %v3134, 0
      %v3199 = vsel %vm3182, %v3135, 0
      %v3202 = vsel %vm3182, %v3136, 0
      %v3205 = vsel %vm3182, %v3137, 0
      %v3208 = vsel %vm3182, %v3138, 0
      %v3211 = vsel %vm3182, %v3139, 0
      %v3214 = vsel %vm3182, %v3140, 0
      %v3217 = vsel %vm3182, %v3141, 0
      %v3220 = vsel %vm3182, %v3142, 0
      %v3223 = vsel %vm3182, %v3143, 0
      %v3226 = vsel %vm3182, %v3144, 0
      %v3229 = vsel %vm3182, %v3145, 0
      %vm3231 = vcmask 1043456
      %v3233 = vsel %vm3231, %v3177, 0
      %3235 = vmatprep.subr.bf16.mxu0 0
      %3236 = vmatpush1.bf16.msra.mxu0 %v3173
      %3237 = vmatprep.subr.bf16.mxu0 0
      %3238 = vmatpush1.bf16.msra.mxu0 %v3174
      %3239 = vmatprep.subr.bf16.mxu0 0
      %3240 = vmatpush1.bf16.msra.mxu0 %v3175
      %3241 = vmatprep.subr.bf16.mxu0 0
      %3242 = vmatpush1.bf16.msra.mxu0 %v3176
      %3243 = vmatprep.subr.bf16.mxu0 0
      %3244 = vmatpush1.bf16.msra.mxu0 %v3233
      %3245 = vmatprep.subr.bf16.mxu0 0
      %3246 = vmatpush1.bf16.msra.mxu0 0
      %3247 = vmatprep.subr.bf16.mxu0 0
      %3248 = vmatpush1.bf16.msra.mxu0 0
      %3249 = vmatprep.subr.bf16.mxu0 0
      %3250 = vmatpush1.bf16.msra.mxu0 0
      %3251 = vmatprep.subr.bf16.mxu0 0
      %3252 = vmatpush1.bf16.msra.mxu0 0
      %3253 = vmatprep.subr.bf16.mxu0 0
      %3254 = vmatpush1.bf16.msra.mxu0 0
      %3255 = vmatprep.subr.bf16.mxu0 0
      %3256 = vmatpush1.bf16.msra.mxu0 0
      %3257 = vmatprep.subr.bf16.mxu0 0
      %3258 = vmatpush1.bf16.msra.mxu0 0
      %3259 = vmatprep.subr.bf16.mxu0 0
      %3260 = vmatpush1.bf16.msra.mxu0 0
      %3261 = vmatprep.subr.bf16.mxu0 0
      %3262 = vmatpush1.bf16.msra.mxu0 0
      %3263 = vmatprep.subr.bf16.mxu0 0
      %3264 = vmatpush1.bf16.msra.mxu0 0
      %3265 = vmatprep.subr.bf16.mxu0 0
      %3266 = vmatpush1.bf16.msra.mxu0 0
      %3267 = vmatprep.mubr.bf16.mxu0 0
      %3268 = vmatmul.mubr.bf16.gmra.mrb[0].mxu0 %v3184
      %v3269 = vpop.f32.mrb[0].mxu0
      %v3270 = vadd.f32 0.0, %v3269
      %v3271 = vpop.f32.mrb[0].mxu0
      %v3272 = vpop.f32.mrb[0].mxu0
      %v3273 = vadd.f32 0.0, %v3272
      %v3274 = vpop.f32.mrb[0].mxu0
      %3275 = vmatprep.mubr.bf16.mxu0 0
      %3276 = vmatmul.mubr.bf16.gmra.mrb[0].mxu0 %v3187
      %v3277 = vpop.f32.mrb[0].mxu0
      %v3278 = vadd.f32 0.0, %v3277
      %v3279 = vpop.f32.mrb[0].mxu0
      %v3280 = vpop.f32.mrb[0].mxu0
      %v3281 = vadd.f32 0.0, %v3280
      %v3282 = vpop.f32.mrb[0].mxu0
      %3283 = vmatprep.mubr.bf16.mxu0 0
      %3284 = vmatmul.mubr.bf16.gmra.mrb[0].mxu0 %v3190
      %v3285 = vpop.f32.mrb[0].mxu0
      %v3286 = vadd.f32 0.0, %v3285
      %v3287 = vpop.f32.mrb[0].mxu0
      %v3288 = vpop.f32.mrb[0].mxu0
      %v3289 = vadd.f32 0.0, %v3288
      %v3290 = vpop.f32.mrb[0].mxu0
      %3291 = vmatprep.mubr.bf16.mxu0 0
      %3292 = vmatmul.mubr.bf16.gmra.mrb[0].mxu0 %v3193
      %v3293 = vpop.f32.mrb[0].mxu0
      %v3294 = vadd.f32 0.0, %v3293
      %v3295 = vpop.f32.mrb[0].mxu0
      %v3296 = vpop.f32.mrb[0].mxu0
      %v3297 = vadd.f32 0.0, %v3296
      %v3298 = vpop.f32.mrb[0].mxu0
      %3299 = vmatprep.mubr.bf16.mxu0 0
      %3300 = vmatmul.mubr.bf16.gmra.mrb[0].mxu0 %v3196
      %v3301 = vpop.f32.mrb[0].mxu0
      %v3302 = vadd.f32 0.0, %v3301
      %v3303 = vpop.f32.mrb[0].mxu0
      %v3304 = vpop.f32.mrb[0].mxu0
      %v3305 = vadd.f32 0.0, %v3304
      %v3306 = vpop.f32.mrb[0].mxu0
      %3307 = vmatprep.mubr.bf16.mxu0 0
      %3308 = vmatmul.mubr.bf16.gmra.mrb[0].mxu0 %v3199
      %v3309 = vpop.f32.mrb[0].mxu0
      %v3310 = vadd.f32 0.0, %v3309
      %v3311 = vpop.f32.mrb[0].mxu0
      %v3312 = vpop.f32.mrb[0].mxu0
      %v3313 = vadd.f32 0.0, %v3312
      %v3314 = vpop.f32.mrb[0].mxu0
      %3315 = vmatprep.mubr.bf16.mxu0 0
      %3316 = vmatmul.mubr.bf16.gmra.mrb[0].mxu0 %v3202
      %v3317 = vpop.f32.mrb[0].mxu0
      %v3318 = vadd.f32 0.0, %v3317
      %v3319 = vpop.f32.mrb[0].mxu0
      %v3320 = vpop.f32.mrb[0].mxu0
      %v3321 = vadd.f32 0.0, %v3320
      %v3322 = vpop.f32.mrb[0].mxu0
      %3323 = vmatprep.mubr.bf16.mxu0 0
      %3324 = vmatmul.mubr.bf16.gmra.mrb[0].mxu0 %v3205
      %v3325 = vpop.f32.mrb[0].mxu0
      %v3326 = vadd.f32 0.0, %v3325
      %v3327 = vpop.f32.mrb[0].mxu0
      %v3328 = vpop.f32.mrb[0].mxu0
      %v3329 = vadd.f32 0.0, %v3328
      %v3330 = vpop.f32.mrb[0].mxu0
      %3331 = vmatprep.mubr.bf16.mxu0 0
      %3332 = vmatmul.mubr.bf16.gmra.mrb[0].mxu0 %v3208
      %v3333 = vpop.f32.mrb[0].mxu0
      %v3334 = vadd.f32 0.0, %v3333
      %v3335 = vpop.f32.mrb[0].mxu0
      %v3336 = vpop.f32.mrb[0].mxu0
      %v3337 = vadd.f32 0.0, %v3336
      %v3338 = vpop.f32.mrb[0].mxu0
      %3339 = vmatprep.mubr.bf16.mxu0 0
      %3340 = vmatmul.mubr.bf16.gmra.mrb[0].mxu0 %v3211
      %v3341 = vpop.f32.mrb[0].mxu0
      %v3342 = vadd.f32 0.0, %v3341
      %v3343 = vpop.f32.mrb[0].mxu0
      %v3344 = vpop.f32.mrb[0].mxu0
      %v3345 = vadd.f32 0.0, %v3344
      %v3346 = vpop.f32.mrb[0].mxu0
      %3347 = vmatprep.mubr.bf16.mxu0 0
      %3348 = vmatmul.mubr.bf16.gmra.mrb[0].mxu0 %v3214
      %v3349 = vpop.f32.mrb[0].mxu0
      %v3350 = vadd.f32 0.0, %v3349
      %v3351 = vpop.f32.mrb[0].mxu0
      %v3352 = vpop.f32.mrb[0].mxu0
      %v3353 = vadd.f32 0.0, %v3352
      %v3354 = vpop.f32.mrb[0].mxu0
      %3355 = vmatprep.mubr.bf16.mxu0 0
      %3356 = vmatmul.mubr.bf16.gmra.mrb[0].mxu0 %v3217
      %v3357 = vpop.f32.mrb[0].mxu0
      %v3358 = vadd.f32 0.0, %v3357
      %v3359 = vpop.f32.mrb[0].mxu0
      %v3360 = vpop.f32.mrb[0].mxu0
      %v3361 = vadd.f32 0.0, %v3360
      %v3362 = vpop.f32.mrb[0].mxu0
      %3363 = vmatprep.mubr.bf16.mxu0 0
      %3364 = vmatmul.mubr.bf16.gmra.mrb[0].mxu0 %v3220
      %v3365 = vpop.f32.mrb[0].mxu0
      %v3366 = vadd.f32 0.0, %v3365
      %v3367 = vpop.f32.mrb[0].mxu0
      %v3368 = vpop.f32.mrb[0].mxu0
      %v3369 = vadd.f32 0.0, %v3368
      %v3370 = vpop.f32.mrb[0].mxu0
      %3371 = vmatprep.mubr.bf16.mxu0 0
      %3372 = vmatmul.mubr.bf16.gmra.mrb[0].mxu0 %v3223
      %v3373 = vpop.f32.mrb[0].mxu0
      %v3374 = vadd.f32 0.0, %v3373
      %v3375 = vpop.f32.mrb[0].mxu0
      %v3376 = vpop.f32.mrb[0].mxu0
      %v3377 = vadd.f32 0.0, %v3376
      %v3378 = vpop.f32.mrb[0].mxu0
      %3379 = vmatprep.mubr.bf16.mxu0 0
      %3380 = vmatmul.mubr.bf16.gmra.mrb[0].mxu0 %v3226
      %v3381 = vpop.f32.mrb[0].mxu0
      %v3382 = vadd.f32 0.0, %v3381
      %v3383 = vpop.f32.mrb[0].mxu0
      %v3384 = vpop.f32.mrb[0].mxu0
      %v3385 = vadd.f32 0.0, %v3384
      %v3386 = vpop.f32.mrb[0].mxu0
      %3387 = vmatprep.mubr.bf16.mxu0 0
      %3388 = vmatmul.mubr.bf16.gmra.mrb[0].mxu0 %v3229
      %v3389 = vpop.f32.mrb[0].mxu0
      %v3390 = vadd.f32 0.0, %v3389
      %v3391 = vpop.f32.mrb[0].mxu0
      %v3392 = vpop.f32.mrb[0].mxu0
      %v3393 = vadd.f32 0.0, %v3392
      %v3394 = vpop.f32.mrb[0].mxu0
      %3395 = vdwg.mxu0
      %v3396 = vld [vmem:[%s5] sm:$0x1]
      %v3398 = vlaneseq
      %v3399 = vshrl.u32 %v3398, 7
      %v3400 = vsub.s32 0, %v3399
      %v3401 = vrot.slane %v3396, %v3400
      %v3403 = vmul.f32 %v3270, %v3401
      %v3404 = vmul.f32 %v3273, %v3401
      %v3405 = vmul.f32 %v3278, %v3401
      %v3406 = vmul.f32 %v3281, %v3401
      %v3407 = vmul.f32 %v3286, %v3401
      %v3408 = vmul.f32 %v3289, %v3401
      %v3409 = vmul.f32 %v3294, %v3401
      %v3410 = vmul.f32 %v3297, %v3401
      %v3411 = vmul.f32 %v3302, %v3401
      %v3412 = vmul.f32 %v3305, %v3401
      %v3413 = vmul.f32 %v3310, %v3401
      %v3414 = vmul.f32 %v3313, %v3401
      %v3415 = vmul.f32 %v3318, %v3401
      %v3416 = vmul.f32 %v3321, %v3401
      %v3417 = vmul.f32 %v3326, %v3401
      %v3418 = vmul.f32 %v3329, %v3401
      %v3419 = vmul.f32 %v3334, %v3401
      %v3420 = vmul.f32 %v3337, %v3401
      %v3421 = vmul.f32 %v3342, %v3401
      %v3422 = vmul.f32 %v3345, %v3401
      %v3423 = vmul.f32 %v3350, %v3401
      %v3424 = vmul.f32 %v3353, %v3401
      %v3425 = vmul.f32 %v3358, %v3401
      %v3426 = vmul.f32 %v3361, %v3401
      %v3427 = vmul.f32 %v3366, %v3401
      %v3428 = vmul.f32 %v3369, %v3401
      %v3429 = vmul.f32 %v3374, %v3401
      %v3430 = vmul.f32 %v3377, %v3401
      %v3431 = vmul.f32 %v3382, %v3401
      %v3432 = vmul.f32 %v3385, %v3401
      %v3433 = vmul.f32 %v3390, %v3401
      %v3434 = vmul.f32 %v3393, %v3401
      %v3435 = vld [vmem:[%s6] sm:$0x1]
      %v3437 = vlaneseq
      %v3438 = vshrl.u32 %v3437, 7
      %v3439 = vsub.s32 0, %v3438
      %v3440 = vrot.slane %v3435, %v3439
      %v3442 = vadd.f32 %v3403, %v3440
      %v3443 = vadd.f32 %v3404, %v3440
      %v3444 = vadd.f32 %v3405, %v3440
      %v3445 = vadd.f32 %v3406, %v3440
      %v3446 = vadd.f32 %v3407, %v3440
      %v3447 = vadd.f32 %v3408, %v3440
      %v3448 = vadd.f32 %v3409, %v3440
      %v3449 = vadd.f32 %v3410, %v3440
      %v3450 = vadd.f32 %v3411, %v3440
      %v3451 = vadd.f32 %v3412, %v3440
      %v3452 = vadd.f32 %v3413, %v3440
      %v3453 = vadd.f32 %v3414, %v3440
      %v3454 = vadd.f32 %v3415, %v3440
      %v3455 = vadd.f32 %v3416, %v3440
      %v3456 = vadd.f32 %v3417, %v3440
      %v3457 = vadd.f32 %v3418, %v3440
      %v3458 = vadd.f32 %v3419, %v3440
      %v3459 = vadd.f32 %v3420, %v3440
      %v3460 = vadd.f32 %v3421, %v3440
      %v3461 = vadd.f32 %v3422, %v3440
      %v3462 = vadd.f32 %v3423, %v3440
      %v3463 = vadd.f32 %v3424, %v3440
      %v3464 = vadd.f32 %v3425, %v3440
      %v3465 = vadd.f32 %v3426, %v3440
      %v3466 = vadd.f32 %v3427, %v3440
      %v3467 = vadd.f32 %v3428, %v3440
      %v3468 = vadd.f32 %v3429, %v3440
      %v3469 = vadd.f32 %v3430, %v3440
      %v3470 = vadd.f32 %v3431, %v3440
      %v3471 = vadd.f32 %v3432, %v3440
      %v3472 = vadd.f32 %v3433, %v3440
      %v3473 = vadd.f32 %v3434, %v3440
      %v3474 = vmax.f32 %v3442, 0.0
      %v3475 = vmax.f32 %v3443, 0.0
      %v3476 = vmax.f32 %v3444, 0.0
      %v3477 = vmax.f32 %v3445, 0.0
      %v3478 = vmax.f32 %v3446, 0.0
      %v3479 = vmax.f32 %v3447, 0.0
      %v3480 = vmax.f32 %v3448, 0.0
      %v3481 = vmax.f32 %v3449, 0.0
      %v3482 = vmax.f32 %v3450, 0.0
      %v3483 = vmax.f32 %v3451, 0.0
      %v3484 = vmax.f32 %v3452, 0.0
      %v3485 = vmax.f32 %v3453, 0.0
      %v3486 = vmax.f32 %v3454, 0.0
      %v3487 = vmax.f32 %v3455, 0.0
      %v3488 = vmax.f32 %v3456, 0.0
      %v3489 = vmax.f32 %v3457, 0.0
      %v3490 = vmax.f32 %v3458, 0.0
      %v3491 = vmax.f32 %v3459, 0.0
      %v3492 = vmax.f32 %v3460, 0.0
      %v3493 = vmax.f32 %v3461, 0.0
      %v3494 = vmax.f32 %v3462, 0.0
      %v3495 = vmax.f32 %v3463, 0.0
      %v3496 = vmax.f32 %v3464, 0.0
      %v3497 = vmax.f32 %v3465, 0.0
      %v3498 = vmax.f32 %v3466, 0.0
      %v3499 = vmax.f32 %v3467, 0.0
      %v3500 = vmax.f32 %v3468, 0.0
      %v3501 = vmax.f32 %v3469, 0.0
      %v3502 = vmax.f32 %v3470, 0.0
      %v3503 = vmax.f32 %v3471, 0.0
      %v3504 = vmax.f32 %v3472, 0.0
      %v3505 = vmax.f32 %v3473, 0.0
      %v3506 = vld [vmem:[%s327] sm:$0xf]
      %v3507 = vld [vmem:[%s327 + $0x4] sm:$0xf]
      %v3508 = vld [vmem:[%s327 + $0x8] sm:$0xf]
      %v3509 = vld [vmem:[%s327 + $0xc] sm:$0xf]
      %v3510 = vld [vmem:[%s327 + $0x10] sm:$0xf]
      %v3511 = vld [vmem:[%s327 + $0x14] sm:$0xf]
      %v3512 = vld [vmem:[%s327 + $0x18] sm:$0xf]
      %v3513 = vld [vmem:[%s327 + $0x1c] sm:$0xf]
      %v3514 = vld [vmem:[%s327 + $0x20] sm:$0xf]
      %v3515 = vld [vmem:[%s327 + $0x24] sm:$0xf]
      %v3516 = vld [vmem:[%s327 + $0x28] sm:$0xf]
      %v3517 = vld [vmem:[%s327 + $0x2c] sm:$0xf]
      %v3518 = vld [vmem:[%s327 + $0x30] sm:$0xf]
      %v3519 = vld [vmem:[%s327 + $0x34] sm:$0xf]
      %v3520 = vld [vmem:[%s327 + $0x38] sm:$0xf]
      %v3521 = vld [vmem:[%s327 + $0x3c] sm:$0xf]
      %v3522 = vld [vmem:[%s327 + $0x40] sm:$0xf]
      %v3523 = vld [vmem:[%s327 + $0x44] sm:$0xf]
      %v3524 = vld [vmem:[%s327 + $0x48] sm:$0xf]
      %v3525 = vld [vmem:[%s327 + $0x4c] sm:$0xf]
      %v3526 = vld [vmem:[%s327 + $0x50] sm:$0xf]
      %v3527 = vld [vmem:[%s327 + $0x54] sm:$0xf]
      %v3528 = vld [vmem:[%s327 + $0x58] sm:$0xf]
      %v3529 = vld [vmem:[%s327 + $0x5c] sm:$0xf]
      %v3530 = vld [vmem:[%s327 + $0x60] sm:$0xf]
      %v3531 = vld [vmem:[%s327 + $0x64] sm:$0xf]
      %v3532 = vld [vmem:[%s327 + $0x68] sm:$0xf]
      %v3533 = vld [vmem:[%s327 + $0x6c] sm:$0xf]
      %v3534 = vld [vmem:[%s327 + $0x70] sm:$0xf]
      %v3535 = vld [vmem:[%s327 + $0x74] sm:$0xf]
      %v3536 = vld [vmem:[%s327 + $0x78] sm:$0xf]
      %v3537 = vld [vmem:[%s327 + $0x7c] sm:$0xf]
      %v3538 = vld [vmem:[%s7] sm:$0x3]
      %v3539 = vld [vmem:[%s8] sm:$0x1]
      %v3541 = vlaneseq
      %v3542 = vshrl.u32 %v3541, 7
      %v3543 = vsub.s32 0, %v3542
      %v3544 = vrot.slane %v3539, %v3543
      %v3578 = vunpack.c.l.b16 %v3506
      %v3579 = vunpack.c.l.b16 %v3507
      %v3580 = vunpack.c.l.b16 %v3508
      %v3581 = vunpack.c.l.b16 %v3509
      %v3582 = vunpack.c.l.b16 %v3510
      %v3583 = vunpack.c.l.b16 %v3511
      %v3584 = vunpack.c.l.b16 %v3512
      %v3585 = vunpack.c.l.b16 %v3513
      %v3586 = vunpack.c.l.b16 %v3514
      %v3587 = vunpack.c.l.b16 %v3515
      %v3588 = vunpack.c.l.b16 %v3516
      %v3589 = vunpack.c.l.b16 %v3517
      %v3590 = vunpack.c.l.b16 %v3518
      %v3591 = vunpack.c.l.b16 %v3519
      %v3592 = vunpack.c.l.b16 %v3520
      %v3593 = vunpack.c.l.b16 %v3521
      %v3594 = vunpack.c.l.b16 %v3522
      %v3595 = vunpack.c.l.b16 %v3523
      %v3596 = vunpack.c.l.b16 %v3524
      %v3597 = vunpack.c.l.b16 %v3525
      %v3598 = vunpack.c.l.b16 %v3526
      %v3599 = vunpack.c.l.b16 %v3527
      %v3600 = vunpack.c.l.b16 %v3528
      %v3601 = vunpack.c.l.b16 %v3529
      %v3602 = vunpack.c.l.b16 %v3530
      %v3603 = vunpack.c.l.b16 %v3531
      %v3604 = vunpack.c.l.b16 %v3532
      %v3605 = vunpack.c.l.b16 %v3533
      %v3606 = vunpack.c.l.b16 %v3534
      %v3607 = vunpack.c.l.b16 %v3535
      %v3608 = vunpack.c.l.b16 %v3536
      %v3609 = vunpack.c.l.b16 %v3537
      %v3610 = vpack.c.b16 %v3579, %v3578
      %v3611 = vpack.c.b16 %v3581, %v3580
      %v3612 = vpack.c.b16 %v3583, %v3582
      %v3613 = vpack.c.b16 %v3585, %v3584
      %v3614 = vpack.c.b16 %v3587, %v3586
      %v3615 = vpack.c.b16 %v3589, %v3588
      %v3616 = vpack.c.b16 %v3591, %v3590
      %v3617 = vpack.c.b16 %v3593, %v3592
      %v3618 = vpack.c.b16 %v3595, %v3594
      %v3619 = vpack.c.b16 %v3597, %v3596
      %v3620 = vpack.c.b16 %v3599, %v3598
      %v3621 = vpack.c.b16 %v3601, %v3600
      %v3622 = vpack.c.b16 %v3603, %v3602
      %v3623 = vpack.c.b16 %v3605, %v3604
      %v3624 = vpack.c.b16 %v3607, %v3606
      %v3625 = vpack.c.b16 %v3609, %v3608
      %v3627 = vsel %vm334, %v3610, 0
      %v3630 = vsel %vm334, %v3611, 0
      %v3633 = vsel %vm334, %v3612, 0
      %v3636 = vsel %vm334, %v3613, 0
      %v3639 = vsel %vm334, %v3614, 0
      %v3642 = vsel %vm334, %v3615, 0
      %v3645 = vsel %vm334, %v3616, 0
      %v3648 = vsel %vm334, %v3617, 0
      %v3651 = vsel %vm334, %v3618, 0
      %v3654 = vsel %vm334, %v3619, 0
      %v3657 = vsel %vm334, %v3620, 0
      %v3660 = vsel %vm334, %v3621, 0
      %v3663 = vsel %vm334, %v3622, 0
      %v3666 = vsel %vm334, %v3623, 0
      %v3669 = vsel %vm334, %v3624, 0
      %v3672 = vsel %vm334, %v3625, 0
      %v3675 = vsel %vm1669, %v3538, 0
      %3677 = vmatprep.subr.bf16.mxu0 0
      %3678 = vmatpush1.bf16.msra.mxu0 %v3675
      %3679 = vmatprep.subr.bf16.mxu0 0
      %3680 = vmatpush1.bf16.msra.mxu0 0
      %3681 = vmatprep.subr.bf16.mxu0 0
      %3682 = vmatpush1.bf16.msra.mxu0 0
      %3683 = vmatprep.subr.bf16.mxu0 0
      %3684 = vmatpush1.bf16.msra.mxu0 0
      %3685 = vmatprep.subr.bf16.mxu0 0
      %3686 = vmatpush1.bf16.msra.mxu0 0
      %3687 = vmatprep.subr.bf16.mxu0 0
      %3688 = vmatpush1.bf16.msra.mxu0 0
      %3689 = vmatprep.subr.bf16.mxu0 0
      %3690 = vmatpush1.bf16.msra.mxu0 0
      %3691 = vmatprep.subr.bf16.mxu0 0
      %3692 = vmatpush1.bf16.msra.mxu0 0
      %3693 = vmatprep.subr.bf16.mxu0 0
      %3694 = vmatpush1.bf16.msra.mxu0 0
      %3695 = vmatprep.subr.bf16.mxu0 0
      %3696 = vmatpush1.bf16.msra.mxu0 0
      %3697 = vmatprep.subr.bf16.mxu0 0
      %3698 = vmatpush1.bf16.msra.mxu0 0
      %3699 = vmatprep.subr.bf16.mxu0 0
      %3700 = vmatpush1.bf16.msra.mxu0 0
      %3701 = vmatprep.subr.bf16.mxu0 0
      %3702 = vmatpush1.bf16.msra.mxu0 0
      %3703 = vmatprep.subr.bf16.mxu0 0
      %3704 = vmatpush1.bf16.msra.mxu0 0
      %3705 = vmatprep.subr.bf16.mxu0 0
      %3706 = vmatpush1.bf16.msra.mxu0 0
      %3707 = vmatprep.subr.bf16.mxu0 0
      %3708 = vmatpush1.bf16.msra.mxu0 0
      %3709 = vmatprep.mubr.bf16.mxu0 0
      %3710 = vmatmul.mubr.bf16.gmra.mrb[0].mxu0 %v3627
      %v3711 = vpop.f32.mrb[0].mxu0
      %v3712 = vadd.f32 %v3544, %v3711
      %v3713 = vpop.f32.mrb[0].mxu0
      %v3714 = vpop.f32.mrb[0].mxu0
      %v3715 = vadd.f32 %v3544, %v3714
      %v3716 = vpop.f32.mrb[0].mxu0
      %3717 = vmatprep.mubr.bf16.mxu0 0
      %3718 = vmatmul.mubr.bf16.gmra.mrb[0].mxu0 %v3630
      %v3719 = vpop.f32.mrb[0].mxu0
      %v3720 = vadd.f32 %v3544, %v3719
      %v3721 = vpop.f32.mrb[0].mxu0
      %v3722 = vpop.f32.mrb[0].mxu0
      %v3723 = vadd.f32 %v3544, %v3722
      %v3724 = vpop.f32.mrb[0].mxu0
      %3725 = vmatprep.mubr.bf16.mxu0 0
      %3726 = vmatmul.mubr.bf16.gmra.mrb[0].mxu0 %v3633
      %v3727 = vpop.f32.mrb[0].mxu0
      %v3728 = vadd.f32 %v3544, %v3727
      %v3729 = vpop.f32.mrb[0].mxu0
      %v3730 = vpop.f32.mrb[0].mxu0
      %v3731 = vadd.f32 %v3544, %v3730
      %v3732 = vpop.f32.mrb[0].mxu0
      %3733 = vmatprep.mubr.bf16.mxu0 0
      %3734 = vmatmul.mubr.bf16.gmra.mrb[0].mxu0 %v3636
      %v3735 = vpop.f32.mrb[0].mxu0
      %v3736 = vadd.f32 %v3544, %v3735
      %v3737 = vpop.f32.mrb[0].mxu0
      %v3738 = vpop.f32.mrb[0].mxu0
      %v3739 = vadd.f32 %v3544, %v3738
      %v3740 = vpop.f32.mrb[0].mxu0
      %3741 = vmatprep.mubr.bf16.mxu0 0
      %3742 = vmatmul.mubr.bf16.gmra.mrb[0].mxu0 %v3639
      %v3743 = vpop.f32.mrb[0].mxu0
      %v3744 = vadd.f32 %v3544, %v3743
      %v3745 = vpop.f32.mrb[0].mxu0
      %v3746 = vpop.f32.mrb[0].mxu0
      %v3747 = vadd.f32 %v3544, %v3746
      %v3748 = vpop.f32.mrb[0].mxu0
      %3749 = vmatprep.mubr.bf16.mxu0 0
      %3750 = vmatmul.mubr.bf16.gmra.mrb[0].mxu0 %v3642
      %v3751 = vpop.f32.mrb[0].mxu0
      %v3752 = vadd.f32 %v3544, %v3751
      %v3753 = vpop.f32.mrb[0].mxu0
      %v3754 = vpop.f32.mrb[0].mxu0
      %v3755 = vadd.f32 %v3544, %v3754
      %v3756 = vpop.f32.mrb[0].mxu0
      %3757 = vmatprep.mubr.bf16.mxu0 0
      %3758 = vmatmul.mubr.bf16.gmra.mrb[0].mxu0 %v3645
      %v3759 = vpop.f32.mrb[0].mxu0
      %v3760 = vadd.f32 %v3544, %v3759
      %v3761 = vpop.f32.mrb[0].mxu0
      %v3762 = vpop.f32.mrb[0].mxu0
      %v3763 = vadd.f32 %v3544, %v3762
      %v3764 = vpop.f32.mrb[0].mxu0
      %3765 = vmatprep.mubr.bf16.mxu0 0
      %3766 = vmatmul.mubr.bf16.gmra.mrb[0].mxu0 %v3648
      %v3767 = vpop.f32.mrb[0].mxu0
      %v3768 = vadd.f32 %v3544, %v3767
      %v3769 = vpop.f32.mrb[0].mxu0
      %v3770 = vpop.f32.mrb[0].mxu0
      %v3771 = vadd.f32 %v3544, %v3770
      %v3772 = vpop.f32.mrb[0].mxu0
      %3773 = vmatprep.mubr.bf16.mxu0 0
      %3774 = vmatmul.mubr.bf16.gmra.mrb[0].mxu0 %v3651
      %v3775 = vpop.f32.mrb[0].mxu0
      %v3776 = vadd.f32 %v3544, %v3775
      %v3777 = vpop.f32.mrb[0].mxu0
      %v3778 = vpop.f32.mrb[0].mxu0
      %v3779 = vadd.f32 %v3544, %v3778
      %v3780 = vpop.f32.mrb[0].mxu0
      %3781 = vmatprep.mubr.bf16.mxu0 0
      %3782 = vmatmul.mubr.bf16.gmra.mrb[0].mxu0 %v3654
      %v3783 = vpop.f32.mrb[0].mxu0
      %v3784 = vadd.f32 %v3544, %v3783
      %v3785 = vpop.f32.mrb[0].mxu0
      %v3786 = vpop.f32.mrb[0].mxu0
      %v3787 = vadd.f32 %v3544, %v3786
      %v3788 = vpop.f32.mrb[0].mxu0
      %3789 = vmatprep.mubr.bf16.mxu0 0
      %3790 = vmatmul.mubr.bf16.gmra.mrb[0].mxu0 %v3657
      %v3791 = vpop.f32.mrb[0].mxu0
      %v3792 = vadd.f32 %v3544, %v3791
      %v3793 = vpop.f32.mrb[0].mxu0
      %v3794 = vpop.f32.mrb[0].mxu0
      %v3795 = vadd.f32 %v3544, %v3794
      %v3796 = vpop.f32.mrb[0].mxu0
      %3797 = vmatprep.mubr.bf16.mxu0 0
      %3798 = vmatmul.mubr.bf16.gmra.mrb[0].mxu0 %v3660
      %v3799 = vpop.f32.mrb[0].mxu0
      %v3800 = vadd.f32 %v3544, %v3799
      %v3801 = vpop.f32.mrb[0].mxu0
      %v3802 = vpop.f32.mrb[0].mxu0
      %v3803 = vadd.f32 %v3544, %v3802
      %v3804 = vpop.f32.mrb[0].mxu0
      %3805 = vmatprep.mubr.bf16.mxu0 0
      %3806 = vmatmul.mubr.bf16.gmra.mrb[0].mxu0 %v3663
      %v3807 = vpop.f32.mrb[0].mxu0
      %v3808 = vadd.f32 %v3544, %v3807
      %v3809 = vpop.f32.mrb[0].mxu0
      %v3810 = vpop.f32.mrb[0].mxu0
      %v3811 = vadd.f32 %v3544, %v3810
      %v3812 = vpop.f32.mrb[0].mxu0
      %3813 = vmatprep.mubr.bf16.mxu0 0
      %3814 = vmatmul.mubr.bf16.gmra.mrb[0].mxu0 %v3666
      %v3815 = vpop.f32.mrb[0].mxu0
      %v3816 = vadd.f32 %v3544, %v3815
      %v3817 = vpop.f32.mrb[0].mxu0
      %v3818 = vpop.f32.mrb[0].mxu0
      %v3819 = vadd.f32 %v3544, %v3818
      %v3820 = vpop.f32.mrb[0].mxu0
      %3821 = vmatprep.mubr.bf16.mxu0 0
      %3822 = vmatmul.mubr.bf16.gmra.mrb[0].mxu0 %v3669
      %v3823 = vpop.f32.mrb[0].mxu0
      %v3824 = vadd.f32 %v3544, %v3823
      %v3825 = vpop.f32.mrb[0].mxu0
      %v3826 = vpop.f32.mrb[0].mxu0
      %v3827 = vadd.f32 %v3544, %v3826
      %v3828 = vpop.f32.mrb[0].mxu0
      %3829 = vmatprep.mubr.bf16.mxu0 0
      %3830 = vmatmul.mubr.bf16.gmra.mrb[0].mxu0 %v3672
      %v3831 = vpop.f32.mrb[0].mxu0
      %v3832 = vadd.f32 %v3544, %v3831
      %v3833 = vpop.f32.mrb[0].mxu0
      %v3834 = vpop.f32.mrb[0].mxu0
      %v3835 = vadd.f32 %v3544, %v3834
      %v3836 = vpop.f32.mrb[0].mxu0
      %3837 = vdwg.mxu0
      %v3838 = vadd.f32 %v3474, %v3712
      %v3839 = vadd.f32 %v3475, %v3715
      %v3840 = vadd.f32 %v3476, %v3720
      %v3841 = vadd.f32 %v3477, %v3723
      %v3842 = vadd.f32 %v3478, %v3728
      %v3843 = vadd.f32 %v3479, %v3731
      %v3844 = vadd.f32 %v3480, %v3736
      %v3845 = vadd.f32 %v3481, %v3739
      %v3846 = vadd.f32 %v3482, %v3744
      %v3847 = vadd.f32 %v3483, %v3747
      %v3848 = vadd.f32 %v3484, %v3752
      %v3849 = vadd.f32 %v3485, %v3755
      %v3850 = vadd.f32 %v3486, %v3760
      %v3851 = vadd.f32 %v3487, %v3763
      %v3852 = vadd.f32 %v3488, %v3768
      %v3853 = vadd.f32 %v3489, %v3771
      %v3854 = vadd.f32 %v3490, %v3776
      %v3855 = vadd.f32 %v3491, %v3779
      %v3856 = vadd.f32 %v3492, %v3784
      %v3857 = vadd.f32 %v3493, %v3787
      %v3858 = vadd.f32 %v3494, %v3792
      %v3859 = vadd.f32 %v3495, %v3795
      %v3860 = vadd.f32 %v3496, %v3800
      %v3861 = vadd.f32 %v3497, %v3803
      %v3862 = vadd.f32 %v3498, %v3808
      %v3863 = vadd.f32 %v3499, %v3811
      %v3864 = vadd.f32 %v3500, %v3816
      %v3865 = vadd.f32 %v3501, %v3819
      %v3866 = vadd.f32 %v3502, %v3824
      %v3867 = vadd.f32 %v3503, %v3827
      %v3868 = vadd.f32 %v3504, %v3832
      %v3869 = vadd.f32 %v3505, %v3835
      %3870 = vst.msk [vmem:[%s332] sm:$0xff] %vm1944, %v3838
      %3871 = vst.msk [vmem:[%s332 + $0x8] sm:$0xff] %vm1944, %v3839
      %3872 = vst.msk [vmem:[%s332 + $0x10] sm:$0xff] %vm1944, %v3840
      %3873 = vst.msk [vmem:[%s332 + $0x18] sm:$0xff] %vm1944, %v3841
      %3874 = vst.msk [vmem:[%s332 + $0x20] sm:$0xff] %vm1944, %v3842
      %3875 = vst.msk [vmem:[%s332 + $0x28] sm:$0xff] %vm1944, %v3843
      %3876 = vst.msk [vmem:[%s332 + $0x30] sm:$0xff] %vm1944, %v3844
      %3877 = vst.msk [vmem:[%s332 + $0x38] sm:$0xff] %vm1944, %v3845
      %3878 = vst.msk [vmem:[%s332 + $0x40] sm:$0xff] %vm1944, %v3846
      %3879 = vst.msk [vmem:[%s332 + $0x48] sm:$0xff] %vm1944, %v3847
      %3880 = vst.msk [vmem:[%s332 + $0x50] sm:$0xff] %vm1944, %v3848
      %3881 = vst.msk [vmem:[%s332 + $0x58] sm:$0xff] %vm1944, %v3849
      %3882 = vst.msk [vmem:[%s332 + $0x60] sm:$0xff] %vm1944, %v3850
      %3883 = vst.msk [vmem:[%s332 + $0x68] sm:$0xff] %vm1944, %v3851
      %3884 = vst.msk [vmem:[%s332 + $0x70] sm:$0xff] %vm1944, %v3852
      %3885 = vst.msk [vmem:[%s332 + $0x78] sm:$0xff] %vm1944, %v3853
      %3886 = vst.msk [vmem:[%s332 + $0x80] sm:$0xff] %vm1944, %v3854
      %3887 = vst.msk [vmem:[%s332 + $0x88] sm:$0xff] %vm1944, %v3855
      %3888 = vst.msk [vmem:[%s332 + $0x90] sm:$0xff] %vm1944, %v3856
      %3889 = vst.msk [vmem:[%s332 + $0x98] sm:$0xff] %vm1944, %v3857
      %3890 = vst.msk [vmem:[%s332 + $0xa0] sm:$0xff] %vm1944, %v3858
      %3891 = vst.msk [vmem:[%s332 + $0xa8] sm:$0xff] %vm1944, %v3859
      %3892 = vst.msk [vmem:[%s332 + $0xb0] sm:$0xff] %vm1944, %v3860
      %3893 = vst.msk [vmem:[%s332 + $0xb8] sm:$0xff] %vm1944, %v3861
      %3894 = vst.msk [vmem:[%s332 + $0xc0] sm:$0xff] %vm1944, %v3862
      %3895 = vst.msk [vmem:[%s332 + $0xc8] sm:$0xff] %vm1944, %v3863
      %3896 = vst.msk [vmem:[%s332 + $0xd0] sm:$0xff] %vm1944, %v3864
      %3897 = vst.msk [vmem:[%s332 + $0xd8] sm:$0xff] %vm1944, %v3865
      %3898 = vst.msk [vmem:[%s332 + $0xe0] sm:$0xff] %vm1944, %v3866
      %3899 = vst.msk [vmem:[%s332 + $0xe8] sm:$0xff] %vm1944, %v3867
      %3900 = vst.msk [vmem:[%s332 + $0xf0] sm:$0xff] %vm1944, %v3868
      %3901 = vst.msk [vmem:[%s332 + $0xf8] sm:$0xff] %vm1944, %v3869
      %p3902 = scmp.lt.s32.totalorder %s20, 1
      %s3903 = scalar_select %p3902, %s20, 1
      %s3904 = smul.addr %s3903, 32
      %s3905 = smul.addr %s3904, 8
      %s3906 = scalar_lea.vmem %s9, %s3905
      // Predicated region
      $region57: #{tpu_custom_call.1} parent=55 // pred_check
        %p3907 = pneg %p232
      $region58: #{tpu_custom_call.1} parent=55 // pred_check_branch
        %3909 = sbr.rel (%p3907) target = $region60
      $region59: #{tpu_custom_call.1} parent=55 // pred_region
        _
      $region60: #{tpu_custom_call.1} parent=55 // pred_fallthru
        _
    $region56: #{tpu_custom_call.1} parent=5 // pred_fallthru
      _
    %p3910 = scmp.le.s32.totalorder 2, %s15
    // Predicated region
    $region61: #{tpu_custom_call.1} parent=5 // pred_check
      %p3911 = pneg %p3910
    $region62: #{tpu_custom_call.1} parent=5 // pred_check_branch
      %3913 = sbr.rel (%p3911) target = $region64
    $region63: #{tpu_custom_call.1} parent=5 // pred_region
      %s3914 = ssub.s32 %s15, 2
      // Predicated region
      $region65: #{tpu_custom_call.1} parent=63 // pred_check
        %p3915 = pneg %p238
      $region66: #{tpu_custom_call.1} parent=63 // pred_check_branch
        %3917 = sbr.rel (%p3915) target = $region68
      $region67: #{tpu_custom_call.1} parent=63 // pred_region
        %p3918 = scmp.lt.s32.totalorder %s21, 1
        %s3919 = scalar_select %p3918, %s21, 1
        %s3920 = smul.addr %s3919, 32
        %s3921 = smul.addr %s3920, 8
        %s3922 = scalar_lea.vmem %s9, %s3921
      $region68: #{tpu_custom_call.1} parent=63 // pred_fallthru
        _
    $region64: #{tpu_custom_call.1} parent=5 // pred_fallthru
      _
  $region6: #{tpu_custom_call.1} parent=0 // loop_footer
    %s19 = sadd.s32 1, %s15
  $region7: #{tpu_custom_call.1} parent=0 // loop_footer_branch
    %14 = sbr.rel target = $region3
  $region8: #{tpu_custom_call.1} parent=0 // loop_exit
    _

</llo_original>
